<compile_context>
chip_gen: v5e
topology: v5e:2x2
jax: 0.10.0
libtpu: 0.0.40
codegen_flags: <defaults>
</compile_context>

<pallas_src>
from functools import partial

import jax
import jax.numpy as jnp
from jax.experimental import pallas as pl
from jax.experimental.pallas import tpu as pltpu


# ---------------------------------------------------------------------------
# Small helpers
# ---------------------------------------------------------------------------
def _round_up(v, m):
    return ((v + m - 1) // m) * m


def _tap_compute_dtype():
    """bf16 tap/im2col math on v6e/v7x (native bf16 VPU); f32 on v5 and older."""
    try:
        kind = jax.devices()[0].device_kind.lower()
    except Exception:
        return jnp.bfloat16
    if any(old in kind for old in ("v2", "v3", "v4", "v5")):
        return jnp.float32
    return jnp.bfloat16


def _vmem_working_budget_bytes():
    """Per-block working-set budget: a fraction of this generation's VMEM."""
    try:
        vmem = pltpu.get_tpu_info().vmem_capacity_bytes
    except Exception:
        vmem = 32 * 1024 * 1024
    return max(vmem // 4, 8 * 1024 * 1024)


def _pick_block_imgs(n_imgs, cin_p, cout_p, hw, tap_itemsize):
    """Largest divisor of n_imgs whose per-block working set fits the budget.

    Using a divisor keeps every batch block fully populated, so no padded
    samples ever pollute the BatchNorm statistics.
    """
    budget = _vmem_working_budget_bytes()
    best = 1
    for nb in range(1, n_imgs + 1):
        if n_imgs % nb:
            continue
        lanes = nb * hw
        work = (2 * cin_p * lanes * tap_itemsize      # double-buffered x blocks
                + 9 * cin_p * lanes * tap_itemsize    # im2col patches
                + cout_p * lanes * 4                  # f32 conv output y
                + cout_p * lanes * 2                  # bf16 y-cache slice
                + 2 * cout_p * lanes * 4)             # double-buffered out blocks
        if work <= budget:
            best = nb
    return best


def _make_border_code(H, W, nb):
    """int32 (1, nb*H*W) bit codes: 1=w==0, 2=w==W-1, 4=h==0, 8=h==H-1."""
    p = jnp.arange(H * W, dtype=jnp.int32)
    col = p % W
    row = p // W
    code = ((col == 0).astype(jnp.int32)
            | ((col == W - 1).astype(jnp.int32) << 1)
            | ((row == 0).astype(jnp.int32) << 2)
            | ((row == H - 1).astype(jnp.int32) << 3))
    return jnp.tile(code, nb).reshape(1, nb * H * W)


# ---------------------------------------------------------------------------
# Fused Conv3x3(reflect, s=1, p=1) + BatchNorm2d(batch stats) + ReLU kernel.
# ---------------------------------------------------------------------------
def _conv_bn_relu_kernel(border_ref, x_ref, w_ref, g_ref, b_ref, o_ref,
                         cache_ref, sum_sc, sq_sc, *,
                         W, eps, count, add_residual, compute_dtype):
    """Grid = (phase, batch_block).  Phase 0: conv + stats + cache.
    Phase 1: normalize + affine + ReLU (+ residual) + store.

    border_ref : (1, L) int32     reflect-boundary bit codes (resident)
    x_ref      : (Cin_p, L)       channel-major activations, L = Nb*H*W lanes
    w_ref      : (Cout_p, 9*Cin_p) bf16 weights, tap-major / channel-minor
    g_ref/b_ref: (Cout_p, 1)      BatchNorm gamma / beta
    o_ref      : (Cout_p, L)      output block
    cache_ref  : (num_blocks, Cout_p, L) bf16 cache of the phase-0 conv output
    sum_sc/sq_sc: (Cout_p, 1) f32 running per-channel sum / sum of squares
    """
    ph = pl.program_id(0)
    n = pl.program_id(1)

    @pl.when((ph == 0) & (n == 0))
    def _init_stats():
        sum_sc[...] = jnp.zeros_like(sum_sc)
        sq_sc[...] = jnp.zeros_like(sq_sc)

    @pl.when(ph == 0)
    def _conv_and_stats():
        x = x_ref[...].astype(compute_dtype)                  # (Cin_p, L)
        code = border_ref[...]                                # (1, L)
        at_w_lo = (code & 1) != 0
        at_w_hi = (code & 2) != 0
        at_h_lo = (code & 4) != 0
        at_h_hi = (code & 8) != 0

        # Reflect-padded 3x3 taps from cyclic lane rolls + boundary selects.
        # Rolls that wrap across a row / image boundary only ever land on
        # lanes the boundary selects overwrite, so flattening several images
        # onto the lane axis is safe.
        x_wp = jnp.roll(x, -1, axis=-1)                       # x[h, w+1] (cyclic)
        x_wm = jnp.roll(x, 1, axis=-1)                        # x[h, w-1] (cyclic)
        col_taps = {
            -1: jnp.where(at_w_lo, x_wp, x_wm),               # x[h, reflect(w-1)]
            0: x,
            1: jnp.where(at_w_hi, x_wm, x_wp),                # x[h, reflect(w+1)]
        }
        up_taps, dn_taps = {}, {}
        for dx in (-1, 0, 1):
            c = col_taps[dx]
            c_hp = jnp.roll(c, -W, axis=-1)                   # c[h+1, w] (cyclic)
            c_hm = jnp.roll(c, W, axis=-1)                    # c[h-1, w] (cyclic)
            up_taps[dx] = jnp.where(at_h_lo, c_hp, c_hm)      # c[reflect(h-1), w]
            dn_taps[dx] = jnp.where(at_h_hi, c_hm, c_hp)      # c[reflect(h+1), w]

        # im2col: (9*Cin_p, L); row order (ky, kx, ci) matches wmat columns.
        patches = jnp.concatenate(
            [up_taps[-1], up_taps[0], up_taps[1],
             col_taps[-1], col_taps[0], col_taps[1],
             dn_taps[-1], dn_taps[0], dn_taps[1]], axis=0)

        # bf16 MXU operands, f32 accumulation.  (Conv bias omitted: exactly
        # cancelled by the BatchNorm mean subtraction that follows.)
        y = jnp.dot(w_ref[...], patches.astype(jnp.bfloat16),
                    preferred_element_type=jnp.float32)       # (Cout_p, L)

        # Single-pass f32 sum / sum-of-squares.  Accumulating from the f32 y
        # is numerically better here than a "two-pass" variance read back
        # from the bf16 cache (good to |mean|/std ~ 3e3).
        sum_sc[...] += jnp.sum(y, axis=1, keepdims=True)
        sq_sc[...] += jnp.sum(y * y, axis=1, keepdims=True)

        # Cache the conv output so phase 1 only normalizes: no tap/matmul
        # recompute and no second HBM read of x.
        cache_ref[n] = y.astype(jnp.bfloat16)

    @pl.when(ph == 1)
    def _normalize_and_store():
        y = cache_ref[n].astype(jnp.float32)                  # (Cout_p, L)
        inv_count = 1.0 / count
        mean = sum_sc[...] * inv_count
        var = jnp.maximum(sq_sc[...] * inv_count - mean * mean, 0.0)
        scale = g_ref[...] * jax.lax.rsqrt(var + eps)
        shift = b_ref[...] - mean * scale
        out = jnp.maximum(y * scale + shift, 0.0)             # BN + ReLU
        if add_residual:
            out = out + x_ref[...].astype(jnp.float32)        # x + block(x)
        o_ref[...] = out.astype(o_ref.dtype)


def conv_bn_relu(x_cm, w, gamma, beta, *, H, W, n_imgs, eps=1e-5,
                 add_residual=False, out_dtype=jnp.bfloat16,
                 compute_dtype=jnp.bfloat16):
    """One ConvLayer block (Conv3x3 reflect + BatchNorm2d + ReLU) on
    channel-major activations.  All ConvLayers in DownConvBlock use last_relu.

    x_cm   : (Cin_p, n_imgs*H*W)  channels (zero-padded to a multiple of 8) on
                                  sublanes, flattened batch*spatial on lanes
    w      : (3, 3, Cin, Cout)    conv weights (HWIO)
    gamma  : (Cout,)              BatchNorm weight
    beta   : (Cout,)              BatchNorm bias
    returns: (Cout_p, n_imgs*H*W) in out_dtype; padded channel rows are zero.
    """
    cin_p, L = x_cm.shape
    hw = H * W
    assert L == n_imgs * hw and H >= 2 and W >= 2
    cin, cout = w.shape[2], w.shape[3]
    assert cin <= cin_p
    cout_p = _round_up(cout, 8)
    if add_residual:
        assert cin_p == cout_p, "residual add requires matching channel pads"

    # Zero-pad weights / affine params so padded channels stay exactly zero
    # through the whole stack (gamma=beta=0 -> BN output 0 on padded rows).
    w_p = jnp.zeros((3, 3, cin_p, cout_p), jnp.float32)
    w_p = w_p.at[:, :, :cin, :cout].set(w.astype(jnp.float32))
    # (ky, kx, ci, co) -> (co, (ky*3 + kx)*Cin_p + ci), matching im2col rows.
    wmat = jnp.transpose(w_p, (3, 0, 1, 2)).reshape(cout_p, 9 * cin_p)
    wmat = wmat.astype(jnp.bfloat16)
    g_p = jnp.zeros((cout_p, 1), jnp.float32).at[:cout, 0].set(gamma)
    b_p = jnp.zeros((cout_p, 1), jnp.float32).at[:cout, 0].set(beta)

    nb = _pick_block_imgs(n_imgs, cin_p, cout_p, hw,
                          jnp.dtype(compute_dtype).itemsize)
    num_blocks = n_imgs // nb
    lanes = nb * hw
    border = _make_border_code(H, W, nb)

    # TODO(synk): at production scale gate the whole-tensor y-cache on VMEM
    # (fall back to phase-1 recompute or H-strip tiling with halos) and shard
    # the batch axis across v7x's two TensorCores with a cross-core stats
    # reduction; not needed at these sizes.

    last = num_blocks - 1
    if add_residual:
        x_map = lambda ph, n: (0, n)        # phase 1 needs x for the residual
    else:
        # Park x at its last block during phase 1: the block index never
        # changes, so no input DMA is issued -> x is read from HBM only once.
        x_map = lambda ph, n: (0, (1 - ph) * n + ph * last)

    kernel = partial(_conv_bn_relu_kernel, W=W, eps=eps, count=n_imgs * hw,
                     add_residual=add_residual, compute_dtype=compute_dtype)

    return pl.pallas_call(
        kernel,
        out_shape=jax.ShapeDtypeStruct((cout_p, n_imgs * hw), out_dtype),
        grid=(2, num_blocks),
        in_specs=[
            pl.BlockSpec((1, lanes), lambda ph, n: (0, 0)),         # border code
            pl.BlockSpec((cin_p, lanes), x_map),                    # activations
            pl.BlockSpec((cout_p, 9 * cin_p), lambda ph, n: (0, 0)),
            pl.BlockSpec((cout_p, 1), lambda ph, n: (0, 0)),
            pl.BlockSpec((cout_p, 1), lambda ph, n: (0, 0)),
        ],
        # Phase 0 never writes the output.  Parking the (unwritten) output
        # block at index (0, 0) for the whole of phase 0 means no writeback is
        # issued until phase 1 has overwritten the resident buffer with real
        # data, so only real data is ever DMA'd back to HBM.  This relies only
        # on the standard "no writeback while the output block index is
        # unchanged" accumulator semantics.
        out_specs=pl.BlockSpec((cout_p, lanes), lambda ph, n: (0, ph * n)),
        scratch_shapes=[
            pltpu.VMEM((num_blocks, cout_p, lanes), jnp.bfloat16),  # y-cache
            pltpu.VMEM((cout_p, 1), jnp.float32),                   # sum
            pltpu.VMEM((cout_p, 1), jnp.float32),                   # sum of sq
        ],
        compiler_params=pltpu.CompilerParams(
            dimension_semantics=("arbitrary", "arbitrary"),
            vmem_limit_bytes=32 * 1024 * 1024),
    )(border, x_cm, wmat, g_p, b_p)


# ---------------------------------------------------------------------------
# DownConvBlock forward (and the TemporallySharedBlock smart_forward wrapper)
# ---------------------------------------------------------------------------
def down_conv_block_forward(x_nchw, params, *, eps=1e-5):
    """DownConvBlock.forward for 4-D NCHW input (3x3, s=1, p=1 ConvLayers)."""
    # TODO(synk): general (k, s, p) for the `down` ConvLayer (e.g. a strided
    # down-convolution) is not implemented; this covers k=3, s=1, p=1.
    N, C, H, W = x_nchw.shape
    compute_dtype = _tap_compute_dtype()
    cin_p = _round_up(C, 8)

    # NCHW -> channel-major (C_p, N*H*W): channels on sublanes, batch*spatial
    # flattened on the lane-dense last axis.  One transpose in, one out; all
    # inter-layer activations stay in this layout (bf16).
    x_cm = jnp.transpose(x_nchw, (1, 0, 2, 3)).reshape(C, N * H * W)
    if cin_p != C:
        x_cm = jnp.pad(x_cm, ((0, cin_p - C), (0, 0)))

    h0 = conv_bn_relu(x_cm, *params["down"], H=H, W=W, n_imgs=N, eps=eps,
                      out_dtype=jnp.bfloat16, compute_dtype=compute_dtype)
    h1 = conv_bn_relu(h0, *params["conv1"], H=H, W=W, n_imgs=N, eps=eps,
                      out_dtype=jnp.bfloat16, compute_dtype=compute_dtype)
    out_cm = conv_bn_relu(h1, *params["conv2"], H=H, W=W, n_imgs=N, eps=eps,
                          add_residual=True, out_dtype=jnp.float32,
                          compute_dtype=compute_dtype)
    # TODO(synk): for small deployment shapes all three ConvLayers could be
    # fused into a single pallas_call holding h0/h1 in VMEM scratch (removes
    # the two inter-layer HBM round trips); kept as three calls for generality.

    d_out = params["conv2"][0].shape[-1]
    out = out_cm[:d_out].reshape(d_out, N, H, W)
    return jnp.transpose(out, (1, 0, 2, 3))


def down_conv_block_smart_forward(x, params, *, eps=1e-5):
    """TemporallySharedBlock.smart_forward: fold (B, T) into the batch dim."""
    if x.ndim == 4:
        return down_conv_block_forward(x, params, eps=eps)
    b, t, c, h, w = x.shape
    out = down_conv_block_forward(x.reshape(b * t, c, h, w), params, eps=eps)
    # TODO(synk): the pad_value masking branch of smart_forward is not implemented.
    return out.reshape(b, t, *out.shape[1:])


def make_down_conv_block_params(key, d_in, d_out):
    """Conv weights in HWIO layout, U(+-1/sqrt(fan_in)) like nn.Conv2d.
    Conv bias is omitted (exactly cancelled by the following BatchNorm).
    BatchNorm affine params are perturbed from the PyTorch defaults so the
    affine path is exercised by the self-check."""
    def conv_layer(k, cin, cout):
        kw, kg, kb = jax.random.split(k, 3)
        bound = 1.0 / (cin * 9) ** 0.5
        w = jax.random.uniform(kw, (3, 3, cin, cout), jnp.float32, -bound, bound)
        gamma = 1.0 + 0.1 * jax.random.uniform(kg, (cout,), jnp.float32, -1.0, 1.0)
        beta = 0.1 * jax.random.uniform(kb, (cout,), jnp.float32, -1.0, 1.0)
        return (w, gamma, beta)

    k1, k2, k3 = jax.random.split(key, 3)
    return {
        "down": conv_layer(k1, d_in, d_in),
        "conv1": conv_layer(k2, d_in, d_out),
        "conv2": conv_layer(k3, d_out, d_out),
    }


# ---------------------------------------------------------------------------
# Pure-JAX reference (f32) for the correctness self-check.
# ---------------------------------------------------------------------------
def _ref_conv_layer(x, w, gamma, beta, *, eps=1e-5):
    xp = jnp.pad(x, ((0, 0), (0, 0), (1, 1), (1, 1)), mode="reflect")
    y = jax.lax.conv_general_dilated(
        xp, w, window_strides=(1, 1), padding="VALID",
        dimension_numbers=("NCHW", "HWIO", "NCHW"),
        precision=jax.lax.Precision.HIGHEST)
    mean = jnp.mean(y, axis=(0, 2, 3), keepdims=True)
    var = jnp.mean((y - mean) ** 2, axis=(0, 2, 3), keepdims=True)
    y = (y - mean) * jax.lax.rsqrt(var + eps)
    y = y * gamma.reshape(1, -1, 1, 1) + beta.reshape(1, -1, 1, 1)
    return jnp.maximum(y, 0.0)


def _ref_down_conv_block(x, params, *, eps=1e-5):
    h0 = _ref_conv_layer(x, *params["down"], eps=eps)
    h1 = _ref_conv_layer(h0, *params["conv1"], eps=eps)
    return h1 + _ref_conv_layer(h1, *params["conv2"], eps=eps)


if __name__ == "__main__":
    key = jax.random.PRNGKey(0)
    k_x, k_p = jax.random.split(key)

    N, d_in, d_out, H, W = 2, 4, 8, 16, 16
    x = jax.random.normal(k_x, (N, d_in, H, W), dtype=jnp.float32)
    params = make_down_conv_block_params(k_p, d_in, d_out)

    fwd = jax.jit(down_conv_block_forward)
    out = jax.block_until_ready(fwd(x, params))
    assert out.shape == (N, d_out, H, W), out.shape
    assert bool(jnp.all(jnp.isfinite(out)))

    # Correctness self-check against a pure-JAX f32 reference.  Tolerances
    # account for bf16 MXU operands, bf16 inter-layer activations and the
    # bf16 conv-output cache used for normalization.
    ref = _ref_down_conv_block(x, params)
    max_err = float(jnp.max(jnp.abs(out - ref)))
    rms_err = float(jnp.sqrt(jnp.mean((out - ref) ** 2)))
    assert max_err < 1.5e-1, f"max |pallas - ref| = {max_err}"
    assert rms_err < 4e-2, f"rms |pallas - ref| = {rms_err}"
    print("KERNEL_OK")
</pallas_src>

<mosaic_0001>
module attributes {stable_mosaic.version = 11 : i64} {
  func.func @_conv_bn_relu_kernel(%arg0: i32, %arg1: i32, %arg2: memref<1x512xi32, #tpu.memory_space<vmem>>, %arg3: memref<8x512xbf16, #tpu.memory_space<vmem>>, %arg4: memref<8x72xbf16, #tpu.memory_space<vmem>>, %arg5: memref<8x1xf32, #tpu.memory_space<vmem>>, %arg6: memref<8x1xf32, #tpu.memory_space<vmem>>, %arg7: memref<8x512xbf16, #tpu.memory_space<vmem>>, %arg8: memref<1x8x512xbf16, #tpu.memory_space<vmem>>, %arg9: memref<8x1xf32, #tpu.memory_space<vmem>>, %arg10: memref<8x1xf32, #tpu.memory_space<vmem>>) attributes {dimension_semantics = [#tpu.dimension_semantics<arbitrary>, #tpu.dimension_semantics<arbitrary>], iteration_bounds = array<i64: 2, 1>, scalar_prefetch = 0 : i64, scratch_operands = 3 : i64, tpu.core_type = #tpu.core_type<tc>, window_params = [{pipeline_mode = #tpu.pipeline_mode<synchronous>, transform_indices = @transform_0, window_bounds = array<i64: 1, 512>}, {transform_indices = @transform_1, window_bounds = array<i64: 8, 512>}, {pipeline_mode = #tpu.pipeline_mode<synchronous>, transform_indices = @transform_2, window_bounds = array<i64: 8, 72>}, {pipeline_mode = #tpu.pipeline_mode<synchronous>, transform_indices = @transform_3, window_bounds = array<i64: 8, 1>}, {pipeline_mode = #tpu.pipeline_mode<synchronous>, transform_indices = @transform_4, window_bounds = array<i64: 8, 1>}, {transform_indices = @transform_5, window_bounds = array<i64: 8, 512>}]} {
    %c0_i32 = arith.constant 0 : i32
    %0 = arith.cmpi eq, %arg0, %c0_i32 : i32
    %c0_i32_0 = arith.constant 0 : i32
    %1 = arith.cmpi eq, %arg1, %c0_i32_0 : i32
    %2 = arith.andi %0, %1 : i1
    %3 = arith.extui %2 : i1 to i32
    %c0_i32_1 = arith.constant 0 : i32
    %4 = arith.cmpi ne, %3, %c0_i32_1 : i32
    scf.if %4 {
      %cst = arith.constant 0.000000e+00 : f32
      %11 = vector.broadcast %cst : f32 to vector<8x1xf32>
      %c0 = arith.constant 0 : index
      %c0_5 = arith.constant 0 : index
      %12 = vector.load %arg9[%c0, %c0_5] : memref<8x1xf32, #tpu.memory_space<vmem>>, vector<8x1xf32>
      tpu.vector_store %arg9[%c0, %c0_5], %11 {strides = array<i32>} : memref<8x1xf32, #tpu.memory_space<vmem>>, vector<8x1xf32>,
      %cst_6 = arith.constant 0.000000e+00 : f32
      %13 = vector.broadcast %cst_6 : f32 to vector<8x1xf32>
      %c0_7 = arith.constant 0 : index
      %c0_8 = arith.constant 0 : index
      %14 = vector.load %arg10[%c0_7, %c0_8] : memref<8x1xf32, #tpu.memory_space<vmem>>, vector<8x1xf32>
      tpu.vector_store %arg10[%c0_7, %c0_8], %13 {strides = array<i32>} : memref<8x1xf32, #tpu.memory_space<vmem>>, vector<8x1xf32>,
    } else {
    }
    %c0_i32_2 = arith.constant 0 : i32
    %5 = arith.cmpi eq, %arg0, %c0_i32_2 : i32
    %6 = arith.extui %5 : i1 to i32
    %c0_i32_3 = arith.constant 0 : i32
    %7 = arith.cmpi ne, %6, %c0_i32_3 : i32
    scf.if %7 {
      %c0 = arith.constant 0 : index
      %c0_5 = arith.constant 0 : index
      %11 = vector.load %arg3[%c0, %c0_5] : memref<8x512xbf16, #tpu.memory_space<vmem>>, vector<8x512xbf16>
      %c0_6 = arith.constant 0 : index
      %c0_7 = arith.constant 0 : index
      %12 = vector.load %arg2[%c0_6, %c0_7] : memref<1x512xi32, #tpu.memory_space<vmem>>, vector<1x512xi32>
      %c1_i32_8 = arith.constant 1 : i32
      %13 = vector.broadcast %c1_i32_8 : i32 to vector<1x512xi32>
      %14 = arith.andi %12, %13 : vector<1x512xi32>
      %c0_i32_9 = arith.constant 0 : i32
      %15 = vector.broadcast %c0_i32_9 : i32 to vector<1x512xi32>
      %16 = arith.cmpi ne, %14, %15 : vector<1x512xi32>
      %c2_i32 = arith.constant 2 : i32
      %17 = vector.broadcast %c2_i32 : i32 to vector<1x512xi32>
      %18 = arith.andi %12, %17 : vector<1x512xi32>
      %c0_i32_10 = arith.constant 0 : i32
      %19 = vector.broadcast %c0_i32_10 : i32 to vector<1x512xi32>
      %20 = arith.cmpi ne, %18, %19 : vector<1x512xi32>
      %c4_i32 = arith.constant 4 : i32
      %21 = vector.broadcast %c4_i32 : i32 to vector<1x512xi32>
      %22 = arith.andi %12, %21 : vector<1x512xi32>
      %c0_i32_11 = arith.constant 0 : i32
      %23 = vector.broadcast %c0_i32_11 : i32 to vector<1x512xi32>
      %24 = arith.cmpi ne, %22, %23 : vector<1x512xi32>
      %c8_i32 = arith.constant 8 : i32
      %25 = vector.broadcast %c8_i32 : i32 to vector<1x512xi32>
      %26 = arith.andi %12, %25 : vector<1x512xi32>
      %c0_i32_12 = arith.constant 0 : i32
      %27 = vector.broadcast %c0_i32_12 : i32 to vector<1x512xi32>
      %28 = arith.cmpi ne, %26, %27 : vector<1x512xi32>
      %29 = vector.extract_strided_slice %11 {offsets = [0, 1], sizes = [8, 511], strides = [1, 1]} : vector<8x512xbf16> to vector<8x511xbf16>
      %30 = vector.extract_strided_slice %11 {offsets = [0, 0], sizes = [8, 1], strides = [1, 1]} : vector<8x512xbf16> to vector<8x1xbf16>
      %31 = tpu.concatenate %29, %30 in 1 : vector<8x511xbf16>, vector<8x1xbf16> -> vector<8x512xbf16>
      %32 = vector.extract_strided_slice %11 {offsets = [0, 511], sizes = [8, 1], strides = [1, 1]} : vector<8x512xbf16> to vector<8x1xbf16>
      %33 = vector.extract_strided_slice %11 {offsets = [0, 0], sizes = [8, 511], strides = [1, 1]} : vector<8x512xbf16> to vector<8x511xbf16>
      %34 = tpu.concatenate %32, %33 in 1 : vector<8x1xbf16>, vector<8x511xbf16> -> vector<8x512xbf16>
      %35 = vector.shape_cast %16 : vector<1x512xi1> to vector<1x512xi1>
      %36 = vector.broadcast %35 : vector<1x512xi1> to vector<8x512xi1>
      %37 = arith.select %36, %31, %34 : vector<8x512xi1>, vector<8x512xbf16>
      %38 = vector.shape_cast %20 : vector<1x512xi1> to vector<1x512xi1>
      %39 = vector.broadcast %38 : vector<1x512xi1> to vector<8x512xi1>
      %40 = arith.select %39, %34, %31 : vector<8x512xi1>, vector<8x512xbf16>
      %41 = vector.extract_strided_slice %37 {offsets = [0, 16], sizes = [8, 496], strides = [1, 1]} : vector<8x512xbf16> to vector<8x496xbf16>
      %42 = vector.extract_strided_slice %37 {offsets = [0, 0], sizes = [8, 16], strides = [1, 1]} : vector<8x512xbf16> to vector<8x16xbf16>
      %43 = tpu.concatenate %41, %42 in 1 : vector<8x496xbf16>, vector<8x16xbf16> -> vector<8x512xbf16>
      %44 = vector.extract_strided_slice %37 {offsets = [0, 496], sizes = [8, 16], strides = [1, 1]} : vector<8x512xbf16> to vector<8x16xbf16>
      %45 = vector.extract_strided_slice %37 {offsets = [0, 0], sizes = [8, 496], strides = [1, 1]} : vector<8x512xbf16> to vector<8x496xbf16>
      %46 = tpu.concatenate %44, %45 in 1 : vector<8x16xbf16>, vector<8x496xbf16> -> vector<8x512xbf16>
      %47 = vector.shape_cast %24 : vector<1x512xi1> to vector<1x512xi1>
      %48 = vector.broadcast %47 : vector<1x512xi1> to vector<8x512xi1>
      %49 = arith.select %48, %43, %46 : vector<8x512xi1>, vector<8x512xbf16>
      %50 = vector.shape_cast %28 : vector<1x512xi1> to vector<1x512xi1>
      %51 = vector.broadcast %50 : vector<1x512xi1> to vector<8x512xi1>
      %52 = arith.select %51, %46, %43 : vector<8x512xi1>, vector<8x512xbf16>
      %53 = vector.extract_strided_slice %11 {offsets = [0, 16], sizes = [8, 496], strides = [1, 1]} : vector<8x512xbf16> to vector<8x496xbf16>
      %54 = vector.extract_strided_slice %11 {offsets = [0, 0], sizes = [8, 16], strides = [1, 1]} : vector<8x512xbf16> to vector<8x16xbf16>
      %55 = tpu.concatenate %53, %54 in 1 : vector<8x496xbf16>, vector<8x16xbf16> -> vector<8x512xbf16>
      %56 = vector.extract_strided_slice %11 {offsets = [0, 496], sizes = [8, 16], strides = [1, 1]} : vector<8x512xbf16> to vector<8x16xbf16>
      %57 = vector.extract_strided_slice %11 {offsets = [0, 0], sizes = [8, 496], strides = [1, 1]} : vector<8x512xbf16> to vector<8x496xbf16>
      %58 = tpu.concatenate %56, %57 in 1 : vector<8x16xbf16>, vector<8x496xbf16> -> vector<8x512xbf16>
      %59 = vector.shape_cast %24 : vector<1x512xi1> to vector<1x512xi1>
      %60 = vector.broadcast %59 : vector<1x512xi1> to vector<8x512xi1>
      %61 = arith.select %60, %55, %58 : vector<8x512xi1>, vector<8x512xbf16>
      %62 = vector.shape_cast %28 : vector<1x512xi1> to vector<1x512xi1>
      %63 = vector.broadcast %62 : vector<1x512xi1> to vector<8x512xi1>
      %64 = arith.select %63, %58, %55 : vector<8x512xi1>, vector<8x512xbf16>
      %65 = vector.extract_strided_slice %40 {offsets = [0, 16], sizes = [8, 496], strides = [1, 1]} : vector<8x512xbf16> to vector<8x496xbf16>
      %66 = vector.extract_strided_slice %40 {offsets = [0, 0], sizes = [8, 16], strides = [1, 1]} : vector<8x512xbf16> to vector<8x16xbf16>
      %67 = tpu.concatenate %65, %66 in 1 : vector<8x496xbf16>, vector<8x16xbf16> -> vector<8x512xbf16>
      %68 = vector.extract_strided_slice %40 {offsets = [0, 496], sizes = [8, 16], strides = [1, 1]} : vector<8x512xbf16> to vector<8x16xbf16>
      %69 = vector.extract_strided_slice %40 {offsets = [0, 0], sizes = [8, 496], strides = [1, 1]} : vector<8x512xbf16> to vector<8x496xbf16>
      %70 = tpu.concatenate %68, %69 in 1 : vector<8x16xbf16>, vector<8x496xbf16> -> vector<8x512xbf16>
      %71 = vector.shape_cast %24 : vector<1x512xi1> to vector<1x512xi1>
      %72 = vector.broadcast %71 : vector<1x512xi1> to vector<8x512xi1>
      %73 = arith.select %72, %67, %70 : vector<8x512xi1>, vector<8x512xbf16>
      %74 = vector.shape_cast %28 : vector<1x512xi1> to vector<1x512xi1>
      %75 = vector.broadcast %74 : vector<1x512xi1> to vector<8x512xi1>
      %76 = arith.select %75, %70, %67 : vector<8x512xi1>, vector<8x512xbf16>
      %77 = tpu.concatenate %49, %61, %73, %37, %11, %40, %52, %64, %76 in 0 : vector<8x512xbf16>, vector<8x512xbf16>, vector<8x512xbf16>, vector<8x512xbf16>, vector<8x512xbf16>, vector<8x512xbf16>, vector<8x512xbf16>, vector<8x512xbf16>, vector<8x512xbf16> -> vector<72x512xbf16>
      %c0_13 = arith.constant 0 : index
      %c0_14 = arith.constant 0 : index
      %78 = vector.load %arg4[%c0_13, %c0_14] : memref<8x72xbf16, #tpu.memory_space<vmem>>, vector<8x72xbf16>
      %cst = arith.constant dense<0.000000e+00> : vector<8x512xf32>
      %79 = tpu.matmul %78, %77, %cst {dimension_numbers = #tpu.dot_dimension_numbers<[1], [0], [0], [1], [0, 0, 1, 1], [], []>} : vector<8x72xbf16>, vector<72x512xbf16>, vector<8x512xf32> -> vector<8x512xf32>
      %c0_15 = arith.constant 0 : index
      %c0_16 = arith.constant 0 : index
      %80 = vector.load %arg9[%c0_15, %c0_16] : memref<8x1xf32, #tpu.memory_space<vmem>>, vector<8x1xf32>
      %cst_17 = arith.constant dense<0.000000e+00> : vector<8xf32>
      %81 = vector.multi_reduction <add>, %79, %cst_17 [1] : vector<8x512xf32> to vector<8xf32>
      %82 = vector.shape_cast %81 : vector<8xf32> to vector<8x1xf32>
      %83 = arith.addf %80, %82 : vector<8x1xf32>
      %c0_18 = arith.constant 0 : index
      %c0_19 = arith.constant 0 : index
      %84 = vector.load %arg9[%c0_18, %c0_19] : memref<8x1xf32, #tpu.memory_space<vmem>>, vector<8x1xf32>
      tpu.vector_store %arg9[%c0_18, %c0_19], %83 {strides = array<i32>} : memref<8x1xf32, #tpu.memory_space<vmem>>, vector<8x1xf32>,
      %c0_20 = arith.constant 0 : index
      %c0_21 = arith.constant 0 : index
      %85 = vector.load %arg10[%c0_20, %c0_21] : memref<8x1xf32, #tpu.memory_space<vmem>>, vector<8x1xf32>
      %86 = arith.mulf %79, %79 : vector<8x512xf32>
      %cst_22 = arith.constant dense<0.000000e+00> : vector<8xf32>
      %87 = vector.multi_reduction <add>, %86, %cst_22 [1] : vector<8x512xf32> to vector<8xf32>
      %88 = vector.shape_cast %87 : vector<8xf32> to vector<8x1xf32>
      %89 = arith.addf %85, %88 : vector<8x1xf32>
      %c0_23 = arith.constant 0 : index
      %c0_24 = arith.constant 0 : index
      %90 = vector.load %arg10[%c0_23, %c0_24] : memref<8x1xf32, #tpu.memory_space<vmem>>, vector<8x1xf32>
      tpu.vector_store %arg10[%c0_23, %c0_24], %89 {strides = array<i32>} : memref<8x1xf32, #tpu.memory_space<vmem>>, vector<8x1xf32>,
      %91 = arith.truncf %79 : vector<8x512xf32> to vector<8x512xbf16>
      %92 = arith.index_cast %arg1 : i32 to index
      %c0_25 = arith.constant 0 : index
      %c0_26 = arith.constant 0 : index
      %93 = vector.load %arg8[%92, %c0_25, %c0_26] : memref<1x8x512xbf16, #tpu.memory_space<vmem>>, vector<1x8x512xbf16>
      %94 = vector.shape_cast %93 : vector<1x8x512xbf16> to vector<8x512xbf16>
      %95 = vector.shape_cast %91 : vector<8x512xbf16> to vector<1x8x512xbf16>
      tpu.vector_store %arg8[%92, %c0_25, %c0_26], %95 {strides = array<i32>} : memref<1x8x512xbf16, #tpu.memory_space<vmem>>, vector<1x8x512xbf16>,
    } else {
    }
    %c1_i32 = arith.constant 1 : i32
    %8 = arith.cmpi eq, %arg0, %c1_i32 : i32
    %9 = arith.extui %8 : i1 to i32
    %c0_i32_4 = arith.constant 0 : i32
    %10 = arith.cmpi ne, %9, %c0_i32_4 : i32
    scf.if %10 {
      %11 = arith.index_cast %arg1 : i32 to index
      %c0 = arith.constant 0 : index
      %c0_5 = arith.constant 0 : index
      %12 = vector.load %arg8[%11, %c0, %c0_5] : memref<1x8x512xbf16, #tpu.memory_space<vmem>>, vector<1x8x512xbf16>
      %13 = vector.shape_cast %12 : vector<1x8x512xbf16> to vector<8x512xbf16>
      %14 = arith.extf %13 : vector<8x512xbf16> to vector<8x512xf32>
      %c0_6 = arith.constant 0 : index
      %c0_7 = arith.constant 0 : index
      %15 = vector.load %arg9[%c0_6, %c0_7] : memref<8x1xf32, #tpu.memory_space<vmem>>, vector<8x1xf32>
      %cst = arith.constant 0.001953125 : f32
      %16 = vector.broadcast %cst : f32 to vector<8x1xf32>
      %17 = arith.mulf %15, %16 : vector<8x1xf32>
      %c0_8 = arith.constant 0 : index
      %c0_9 = arith.constant 0 : index
      %18 = vector.load %arg10[%c0_8, %c0_9] : memref<8x1xf32, #tpu.memory_space<vmem>>, vector<8x1xf32>
      %cst_10 = arith.constant 0.001953125 : f32
      %19 = vector.broadcast %cst_10 : f32 to vector<8x1xf32>
      %20 = arith.mulf %18, %19 : vector<8x1xf32>
      %21 = arith.mulf %17, %17 : vector<8x1xf32>
      %22 = arith.subf %20, %21 : vector<8x1xf32>
      %cst_11 = arith.constant 0.000000e+00 : f32
      %23 = vector.broadcast %cst_11 : f32 to vector<8x1xf32>
      %24 = arith.maximumf %22, %23 : vector<8x1xf32>
      %c0_12 = arith.constant 0 : index
      %c0_13 = arith.constant 0 : index
      %25 = vector.load %arg5[%c0_12, %c0_13] : memref<8x1xf32, #tpu.memory_space<vmem>>, vector<8x1xf32>
      %cst_14 = arith.constant 9.99999974E-6 : f32
      %26 = vector.broadcast %cst_14 : f32 to vector<8x1xf32>
      %27 = arith.addf %24, %26 : vector<8x1xf32>
      %28 = math.rsqrt %27 : vector<8x1xf32>
      %29 = arith.mulf %25, %28 : vector<8x1xf32>
      %c0_15 = arith.constant 0 : index
      %c0_16 = arith.constant 0 : index
      %30 = vector.load %arg6[%c0_15, %c0_16] : memref<8x1xf32, #tpu.memory_space<vmem>>, vector<8x1xf32>
      %31 = arith.mulf %17, %29 : vector<8x1xf32>
      %32 = arith.subf %30, %31 : vector<8x1xf32>
      %33 = vector.broadcast %29 : vector<8x1xf32> to vector<8x512xf32>
      %34 = arith.mulf %14, %33 : vector<8x512xf32>
      %35 = vector.broadcast %32 : vector<8x1xf32> to vector<8x512xf32>
      %36 = arith.addf %34, %35 : vector<8x512xf32>
      %cst_17 = arith.constant 0.000000e+00 : f32
      %37 = vector.broadcast %cst_17 : f32 to vector<8x512xf32>
      %38 = arith.maximumf %36, %37 : vector<8x512xf32>
      %39 = arith.truncf %38 : vector<8x512xf32> to vector<8x512xbf16>
      %c0_18 = arith.constant 0 : index
      %c0_19 = arith.constant 0 : index
      %40 = vector.load %arg7[%c0_18, %c0_19] : memref<8x512xbf16, #tpu.memory_space<vmem>>, vector<8x512xbf16>
      tpu.vector_store %arg7[%c0_18, %c0_19], %39 {strides = array<i32>} : memref<8x512xbf16, #tpu.memory_space<vmem>>, vector<8x512xbf16>,
    } else {
    }
    return
  }
  func.func @transform_0(%arg0: i32, %arg1: i32) -> (i32, i32) {
    %c0_i32 = arith.constant 0 : i32
    %c0_i32_0 = arith.constant 0 : i32
    %c0_i32_1 = arith.constant 0 : i32
    return %c0_i32, %c0_i32_0 : i32, i32
  }
  func.func @transform_1(%arg0: i32, %arg1: i32) -> (i32, i32) {
    %c1_i32 = arith.constant 1 : i32
    %0 = arith.subi %c1_i32, %arg0 : i32
    %1 = arith.muli %0, %arg1 : i32
    %c0_i32 = arith.constant 0 : i32
    %2 = arith.muli %arg0, %c0_i32 : i32
    %3 = arith.addi %1, %2 : i32
    %c0_i32_0 = arith.constant 0 : i32
    %c0_i32_1 = arith.constant 0 : i32
    return %c0_i32_0, %3 : i32, i32
  }
  func.func @transform_2(%arg0: i32, %arg1: i32) -> (i32, i32) {
    %c0_i32 = arith.constant 0 : i32
    %c0_i32_0 = arith.constant 0 : i32
    %c0_i32_1 = arith.constant 0 : i32
    return %c0_i32, %c0_i32_0 : i32, i32
  }
  func.func @transform_3(%arg0: i32, %arg1: i32) -> (i32, i32) {
    %c0_i32 = arith.constant 0 : i32
    %c0_i32_0 = arith.constant 0 : i32
    %c0_i32_1 = arith.constant 0 : i32
    return %c0_i32, %c0_i32_0 : i32, i32
  }
  func.func @transform_4(%arg0: i32, %arg1: i32) -> (i32, i32) {
    %c0_i32 = arith.constant 0 : i32
    %c0_i32_0 = arith.constant 0 : i32
    %c0_i32_1 = arith.constant 0 : i32
    return %c0_i32, %c0_i32_0 : i32, i32
  }
  func.func @transform_5(%arg0: i32, %arg1: i32) -> (i32, i32) {
    %0 = arith.muli %arg0, %arg1 : i32
    %c0_i32 = arith.constant 0 : i32
    %c0_i32_0 = arith.constant 0 : i32
    return %c0_i32, %0 : i32, i32
  }
}

module attributes {stable_mosaic.version = 11 : i64} {
  func.func @_conv_bn_relu_kernel(%arg0: i32, %arg1: i32, %arg2: memref<1x512xi32, #tpu.memory_space<vmem>>, %arg3: memref<8x512xf32, #tpu.memory_space<vmem>>, %arg4: memref<8x72xbf16, #tpu.memory_space<vmem>>, %arg5: memref<8x1xf32, #tpu.memory_space<vmem>>, %arg6: memref<8x1xf32, #tpu.memory_space<vmem>>, %arg7: memref<8x512xbf16, #tpu.memory_space<vmem>>, %arg8: memref<1x8x512xbf16, #tpu.memory_space<vmem>>, %arg9: memref<8x1xf32, #tpu.memory_space<vmem>>, %arg10: memref<8x1xf32, #tpu.memory_space<vmem>>) attributes {dimension_semantics = [#tpu.dimension_semantics<arbitrary>, #tpu.dimension_semantics<arbitrary>], iteration_bounds = array<i64: 2, 1>, scalar_prefetch = 0 : i64, scratch_operands = 3 : i64, tpu.core_type = #tpu.core_type<tc>, window_params = [{pipeline_mode = #tpu.pipeline_mode<synchronous>, transform_indices = @transform_0, window_bounds = array<i64: 1, 512>}, {transform_indices = @transform_1, window_bounds = array<i64: 8, 512>}, {pipeline_mode = #tpu.pipeline_mode<synchronous>, transform_indices = @transform_2, window_bounds = array<i64: 8, 72>}, {pipeline_mode = #tpu.pipeline_mode<synchronous>, transform_indices = @transform_3, window_bounds = array<i64: 8, 1>}, {pipeline_mode = #tpu.pipeline_mode<synchronous>, transform_indices = @transform_4, window_bounds = array<i64: 8, 1>}, {transform_indices = @transform_5, window_bounds = array<i64: 8, 512>}]} {
    %c0_i32 = arith.constant 0 : i32
    %0 = arith.cmpi eq, %arg0, %c0_i32 : i32
    %c0_i32_0 = arith.constant 0 : i32
    %1 = arith.cmpi eq, %arg1, %c0_i32_0 : i32
    %2 = arith.andi %0, %1 : i1
    %3 = arith.extui %2 : i1 to i32
    %c0_i32_1 = arith.constant 0 : i32
    %4 = arith.cmpi ne, %3, %c0_i32_1 : i32
    scf.if %4 {
      %cst = arith.constant 0.000000e+00 : f32
      %11 = vector.broadcast %cst : f32 to vector<8x1xf32>
      %c0 = arith.constant 0 : index
      %c0_5 = arith.constant 0 : index
      %12 = vector.load %arg9[%c0, %c0_5] : memref<8x1xf32, #tpu.memory_space<vmem>>, vector<8x1xf32>
      tpu.vector_store %arg9[%c0, %c0_5], %11 {strides = array<i32>} : memref<8x1xf32, #tpu.memory_space<vmem>>, vector<8x1xf32>,
      %cst_6 = arith.constant 0.000000e+00 : f32
      %13 = vector.broadcast %cst_6 : f32 to vector<8x1xf32>
      %c0_7 = arith.constant 0 : index
      %c0_8 = arith.constant 0 : index
      %14 = vector.load %arg10[%c0_7, %c0_8] : memref<8x1xf32, #tpu.memory_space<vmem>>, vector<8x1xf32>
      tpu.vector_store %arg10[%c0_7, %c0_8], %13 {strides = array<i32>} : memref<8x1xf32, #tpu.memory_space<vmem>>, vector<8x1xf32>,
    } else {
    }
    %c0_i32_2 = arith.constant 0 : i32
    %5 = arith.cmpi eq, %arg0, %c0_i32_2 : i32
    %6 = arith.extui %5 : i1 to i32
    %c0_i32_3 = arith.constant 0 : i32
    %7 = arith.cmpi ne, %6, %c0_i32_3 : i32
    scf.if %7 {
      %c0 = arith.constant 0 : index
      %c0_5 = arith.constant 0 : index
      %11 = vector.load %arg3[%c0, %c0_5] : memref<8x512xf32, #tpu.memory_space<vmem>>, vector<8x512xf32>
      %12 = arith.truncf %11 : vector<8x512xf32> to vector<8x512xbf16>
      %c0_6 = arith.constant 0 : index
      %c0_7 = arith.constant 0 : index
      %13 = vector.load %arg2[%c0_6, %c0_7] : memref<1x512xi32, #tpu.memory_space<vmem>>, vector<1x512xi32>
      %c1_i32_8 = arith.constant 1 : i32
      %14 = vector.broadcast %c1_i32_8 : i32 to vector<1x512xi32>
      %15 = arith.andi %13, %14 : vector<1x512xi32>
      %c0_i32_9 = arith.constant 0 : i32
      %16 = vector.broadcast %c0_i32_9 : i32 to vector<1x512xi32>
      %17 = arith.cmpi ne, %15, %16 : vector<1x512xi32>
      %c2_i32 = arith.constant 2 : i32
      %18 = vector.broadcast %c2_i32 : i32 to vector<1x512xi32>
      %19 = arith.andi %13, %18 : vector<1x512xi32>
      %c0_i32_10 = arith.constant 0 : i32
      %20 = vector.broadcast %c0_i32_10 : i32 to vector<1x512xi32>
      %21 = arith.cmpi ne, %19, %20 : vector<1x512xi32>
      %c4_i32 = arith.constant 4 : i32
      %22 = vector.broadcast %c4_i32 : i32 to vector<1x512xi32>
      %23 = arith.andi %13, %22 : vector<1x512xi32>
      %c0_i32_11 = arith.constant 0 : i32
      %24 = vector.broadcast %c0_i32_11 : i32 to vector<1x512xi32>
      %25 = arith.cmpi ne, %23, %24 : vector<1x512xi32>
      %c8_i32 = arith.constant 8 : i32
      %26 = vector.broadcast %c8_i32 : i32 to vector<1x512xi32>
      %27 = arith.andi %13, %26 : vector<1x512xi32>
      %c0_i32_12 = arith.constant 0 : i32
      %28 = vector.broadcast %c0_i32_12 : i32 to vector<1x512xi32>
      %29 = arith.cmpi ne, %27, %28 : vector<1x512xi32>
      %30 = vector.extract_strided_slice %12 {offsets = [0, 1], sizes = [8, 511], strides = [1, 1]} : vector<8x512xbf16> to vector<8x511xbf16>
      %31 = vector.extract_strided_slice %12 {offsets = [0, 0], sizes = [8, 1], strides = [1, 1]} : vector<8x512xbf16> to vector<8x1xbf16>
      %32 = tpu.concatenate %30, %31 in 1 : vector<8x511xbf16>, vector<8x1xbf16> -> vector<8x512xbf16>
      %33 = vector.extract_strided_slice %12 {offsets = [0, 511], sizes = [8, 1], strides = [1, 1]} : vector<8x512xbf16> to vector<8x1xbf16>
      %34 = vector.extract_strided_slice %12 {offsets = [0, 0], sizes = [8, 511], strides = [1, 1]} : vector<8x512xbf16> to vector<8x511xbf16>
      %35 = tpu.concatenate %33, %34 in 1 : vector<8x1xbf16>, vector<8x511xbf16> -> vector<8x512xbf16>
      %36 = vector.shape_cast %17 : vector<1x512xi1> to vector<1x512xi1>
      %37 = vector.broadcast %36 : vector<1x512xi1> to vector<8x512xi1>
      %38 = arith.select %37, %32, %35 : vector<8x512xi1>, vector<8x512xbf16>
      %39 = vector.shape_cast %21 : vector<1x512xi1> to vector<1x512xi1>
      %40 = vector.broadcast %39 : vector<1x512xi1> to vector<8x512xi1>
      %41 = arith.select %40, %35, %32 : vector<8x512xi1>, vector<8x512xbf16>
      %42 = vector.extract_strided_slice %38 {offsets = [0, 16], sizes = [8, 496], strides = [1, 1]} : vector<8x512xbf16> to vector<8x496xbf16>
      %43 = vector.extract_strided_slice %38 {offsets = [0, 0], sizes = [8, 16], strides = [1, 1]} : vector<8x512xbf16> to vector<8x16xbf16>
      %44 = tpu.concatenate %42, %43 in 1 : vector<8x496xbf16>, vector<8x16xbf16> -> vector<8x512xbf16>
      %45 = vector.extract_strided_slice %38 {offsets = [0, 496], sizes = [8, 16], strides = [1, 1]} : vector<8x512xbf16> to vector<8x16xbf16>
      %46 = vector.extract_strided_slice %38 {offsets = [0, 0], sizes = [8, 496], strides = [1, 1]} : vector<8x512xbf16> to vector<8x496xbf16>
      %47 = tpu.concatenate %45, %46 in 1 : vector<8x16xbf16>, vector<8x496xbf16> -> vector<8x512xbf16>
      %48 = vector.shape_cast %25 : vector<1x512xi1> to vector<1x512xi1>
      %49 = vector.broadcast %48 : vector<1x512xi1> to vector<8x512xi1>
      %50 = arith.select %49, %44, %47 : vector<8x512xi1>, vector<8x512xbf16>
      %51 = vector.shape_cast %29 : vector<1x512xi1> to vector<1x512xi1>
      %52 = vector.broadcast %51 : vector<1x512xi1> to vector<8x512xi1>
      %53 = arith.select %52, %47, %44 : vector<8x512xi1>, vector<8x512xbf16>
      %54 = vector.extract_strided_slice %12 {offsets = [0, 16], sizes = [8, 496], strides = [1, 1]} : vector<8x512xbf16> to vector<8x496xbf16>
      %55 = vector.extract_strided_slice %12 {offsets = [0, 0], sizes = [8, 16], strides = [1, 1]} : vector<8x512xbf16> to vector<8x16xbf16>
      %56 = tpu.concatenate %54, %55 in 1 : vector<8x496xbf16>, vector<8x16xbf16> -> vector<8x512xbf16>
      %57 = vector.extract_strided_slice %12 {offsets = [0, 496], sizes = [8, 16], strides = [1, 1]} : vector<8x512xbf16> to vector<8x16xbf16>
      %58 = vector.extract_strided_slice %12 {offsets = [0, 0], sizes = [8, 496], strides = [1, 1]} : vector<8x512xbf16> to vector<8x496xbf16>
      %59 = tpu.concatenate %57, %58 in 1 : vector<8x16xbf16>, vector<8x496xbf16> -> vector<8x512xbf16>
      %60 = vector.shape_cast %25 : vector<1x512xi1> to vector<1x512xi1>
      %61 = vector.broadcast %60 : vector<1x512xi1> to vector<8x512xi1>
      %62 = arith.select %61, %56, %59 : vector<8x512xi1>, vector<8x512xbf16>
      %63 = vector.shape_cast %29 : vector<1x512xi1> to vector<1x512xi1>
      %64 = vector.broadcast %63 : vector<1x512xi1> to vector<8x512xi1>
      %65 = arith.select %64, %59, %56 : vector<8x512xi1>, vector<8x512xbf16>
      %66 = vector.extract_strided_slice %41 {offsets = [0, 16], sizes = [8, 496], strides = [1, 1]} : vector<8x512xbf16> to vector<8x496xbf16>
      %67 = vector.extract_strided_slice %41 {offsets = [0, 0], sizes = [8, 16], strides = [1, 1]} : vector<8x512xbf16> to vector<8x16xbf16>
      %68 = tpu.concatenate %66, %67 in 1 : vector<8x496xbf16>, vector<8x16xbf16> -> vector<8x512xbf16>
      %69 = vector.extract_strided_slice %41 {offsets = [0, 496], sizes = [8, 16], strides = [1, 1]} : vector<8x512xbf16> to vector<8x16xbf16>
      %70 = vector.extract_strided_slice %41 {offsets = [0, 0], sizes = [8, 496], strides = [1, 1]} : vector<8x512xbf16> to vector<8x496xbf16>
      %71 = tpu.concatenate %69, %70 in 1 : vector<8x16xbf16>, vector<8x496xbf16> -> vector<8x512xbf16>
      %72 = vector.shape_cast %25 : vector<1x512xi1> to vector<1x512xi1>
      %73 = vector.broadcast %72 : vector<1x512xi1> to vector<8x512xi1>
      %74 = arith.select %73, %68, %71 : vector<8x512xi1>, vector<8x512xbf16>
      %75 = vector.shape_cast %29 : vector<1x512xi1> to vector<1x512xi1>
      %76 = vector.broadcast %75 : vector<1x512xi1> to vector<8x512xi1>
      %77 = arith.select %76, %71, %68 : vector<8x512xi1>, vector<8x512xbf16>
      %78 = tpu.concatenate %50, %62, %74, %38, %12, %41, %53, %65, %77 in 0 : vector<8x512xbf16>, vector<8x512xbf16>, vector<8x512xbf16>, vector<8x512xbf16>, vector<8x512xbf16>, vector<8x512xbf16>, vector<8x512xbf16>, vector<8x512xbf16>, vector<8x512xbf16> -> vector<72x512xbf16>
      %c0_13 = arith.constant 0 : index
      %c0_14 = arith.constant 0 : index
      %79 = vector.load %arg4[%c0_13, %c0_14] : memref<8x72xbf16, #tpu.memory_space<vmem>>, vector<8x72xbf16>
      %cst = arith.constant dense<0.000000e+00> : vector<8x512xf32>
      %80 = tpu.matmul %79, %78, %cst {dimension_numbers = #tpu.dot_dimension_numbers<[1], [0], [0], [1], [0, 0, 1, 1], [], []>} : vector<8x72xbf16>, vector<72x512xbf16>, vector<8x512xf32> -> vector<8x512xf32>
      %c0_15 = arith.constant 0 : index
      %c0_16 = arith.constant 0 : index
      %81 = vector.load %arg9[%c0_15, %c0_16] : memref<8x1xf32, #tpu.memory_space<vmem>>, vector<8x1xf32>
      %cst_17 = arith.constant dense<0.000000e+00> : vector<8xf32>
      %82 = vector.multi_reduction <add>, %80, %cst_17 [1] : vector<8x512xf32> to vector<8xf32>
      %83 = vector.shape_cast %82 : vector<8xf32> to vector<8x1xf32>
      %84 = arith.addf %81, %83 : vector<8x1xf32>
      %c0_18 = arith.constant 0 : index
      %c0_19 = arith.constant 0 : index
      %85 = vector.load %arg9[%c0_18, %c0_19] : memref<8x1xf32, #tpu.memory_space<vmem>>, vector<8x1xf32>
      tpu.vector_store %arg9[%c0_18, %c0_19], %84 {strides = array<i32>} : memref<8x1xf32, #tpu.memory_space<vmem>>, vector<8x1xf32>,
      %c0_20 = arith.constant 0 : index
      %c0_21 = arith.constant 0 : index
      %86 = vector.load %arg10[%c0_20, %c0_21] : memref<8x1xf32, #tpu.memory_space<vmem>>, vector<8x1xf32>
      %87 = arith.mulf %80, %80 : vector<8x512xf32>
      %cst_22 = arith.constant dense<0.000000e+00> : vector<8xf32>
      %88 = vector.multi_reduction <add>, %87, %cst_22 [1] : vector<8x512xf32> to vector<8xf32>
      %89 = vector.shape_cast %88 : vector<8xf32> to vector<8x1xf32>
      %90 = arith.addf %86, %89 : vector<8x1xf32>
      %c0_23 = arith.constant 0 : index
      %c0_24 = arith.constant 0 : index
      %91 = vector.load %arg10[%c0_23, %c0_24] : memref<8x1xf32, #tpu.memory_space<vmem>>, vector<8x1xf32>
      tpu.vector_store %arg10[%c0_23, %c0_24], %90 {strides = array<i32>} : memref<8x1xf32, #tpu.memory_space<vmem>>, vector<8x1xf32>,
      %92 = arith.truncf %80 : vector<8x512xf32> to vector<8x512xbf16>
      %93 = arith.index_cast %arg1 : i32 to index
      %c0_25 = arith.constant 0 : index
      %c0_26 = arith.constant 0 : index
      %94 = vector.load %arg8[%93, %c0_25, %c0_26] : memref<1x8x512xbf16, #tpu.memory_space<vmem>>, vector<1x8x512xbf16>
      %95 = vector.shape_cast %94 : vector<1x8x512xbf16> to vector<8x512xbf16>
      %96 = vector.shape_cast %92 : vector<8x512xbf16> to vector<1x8x512xbf16>
      tpu.vector_store %arg8[%93, %c0_25, %c0_26], %96 {strides = array<i32>} : memref<1x8x512xbf16, #tpu.memory_space<vmem>>, vector<1x8x512xbf16>,
    } else {
    }
    %c1_i32 = arith.constant 1 : i32
    %8 = arith.cmpi eq, %arg0, %c1_i32 : i32
    %9 = arith.extui %8 : i1 to i32
    %c0_i32_4 = arith.constant 0 : i32
    %10 = arith.cmpi ne, %9, %c0_i32_4 : i32
    scf.if %10 {
      %11 = arith.index_cast %arg1 : i32 to index
      %c0 = arith.constant 0 : index
      %c0_5 = arith.constant 0 : index
      %12 = vector.load %arg8[%11, %c0, %c0_5] : memref<1x8x512xbf16, #tpu.memory_space<vmem>>, vector<1x8x512xbf16>
      %13 = vector.shape_cast %12 : vector<1x8x512xbf16> to vector<8x512xbf16>
      %14 = arith.extf %13 : vector<8x512xbf16> to vector<8x512xf32>
      %c0_6 = arith.constant 0 : index
      %c0_7 = arith.constant 0 : index
      %15 = vector.load %arg9[%c0_6, %c0_7] : memref<8x1xf32, #tpu.memory_space<vmem>>, vector<8x1xf32>
      %cst = arith.constant 0.001953125 : f32
      %16 = vector.broadcast %cst : f32 to vector<8x1xf32>
      %17 = arith.mulf %15, %16 : vector<8x1xf32>
      %c0_8 = arith.constant 0 : index
      %c0_9 = arith.constant 0 : index
      %18 = vector.load %arg10[%c0_8, %c0_9] : memref<8x1xf32, #tpu.memory_space<vmem>>, vector<8x1xf32>
      %cst_10 = arith.constant 0.001953125 : f32
      %19 = vector.broadcast %cst_10 : f32 to vector<8x1xf32>
      %20 = arith.mulf %18, %19 : vector<8x1xf32>
      %21 = arith.mulf %17, %17 : vector<8x1xf32>
      %22 = arith.subf %20, %21 : vector<8x1xf32>
      %cst_11 = arith.constant 0.000000e+00 : f32
      %23 = vector.broadcast %cst_11 : f32 to vector<8x1xf32>
      %24 = arith.maximumf %22, %23 : vector<8x1xf32>
      %c0_12 = arith.constant 0 : index
      %c0_13 = arith.constant 0 : index
      %25 = vector.load %arg5[%c0_12, %c0_13] : memref<8x1xf32, #tpu.memory_space<vmem>>, vector<8x1xf32>
      %cst_14 = arith.constant 9.99999974E-6 : f32
      %26 = vector.broadcast %cst_14 : f32 to vector<8x1xf32>
      %27 = arith.addf %24, %26 : vector<8x1xf32>
      %28 = math.rsqrt %27 : vector<8x1xf32>
      %29 = arith.mulf %25, %28 : vector<8x1xf32>
      %c0_15 = arith.constant 0 : index
      %c0_16 = arith.constant 0 : index
      %30 = vector.load %arg6[%c0_15, %c0_16] : memref<8x1xf32, #tpu.memory_space<vmem>>, vector<8x1xf32>
      %31 = arith.mulf %17, %29 : vector<8x1xf32>
      %32 = arith.subf %30, %31 : vector<8x1xf32>
      %33 = vector.broadcast %29 : vector<8x1xf32> to vector<8x512xf32>
      %34 = arith.mulf %14, %33 : vector<8x512xf32>
      %35 = vector.broadcast %32 : vector<8x1xf32> to vector<8x512xf32>
      %36 = arith.addf %34, %35 : vector<8x512xf32>
      %cst_17 = arith.constant 0.000000e+00 : f32
      %37 = vector.broadcast %cst_17 : f32 to vector<8x512xf32>
      %38 = arith.maximumf %36, %37 : vector<8x512xf32>
      %39 = arith.truncf %38 : vector<8x512xf32> to vector<8x512xbf16>
      %c0_18 = arith.constant 0 : index
      %c0_19 = arith.constant 0 : index
      %40 = vector.load %arg7[%c0_18, %c0_19] : memref<8x512xbf16, #tpu.memory_space<vmem>>, vector<8x512xbf16>
      tpu.vector_store %arg7[%c0_18, %c0_19], %39 {strides = array<i32>} : memref<8x512xbf16, #tpu.memory_space<vmem>>, vector<8x512xbf16>,
    } else {
    }
    return
  }
  func.func @transform_0(%arg0: i32, %arg1: i32) -> (i32, i32) {
    %c0_i32 = arith.constant 0 : i32
    %c0_i32_0 = arith.constant 0 : i32
    %c0_i32_1 = arith.constant 0 : i32
    return %c0_i32, %c0_i32_0 : i32, i32
  }
  func.func @transform_1(%arg0: i32, %arg1: i32) -> (i32, i32) {
    %c1_i32 = arith.constant 1 : i32
    %0 = arith.subi %c1_i32, %arg0 : i32
    %1 = arith.muli %0, %arg1 : i32
    %c0_i32 = arith.constant 0 : i32
    %2 = arith.muli %arg0, %c0_i32 : i32
    %3 = arith.addi %1, %2 : i32
    %c0_i32_0 = arith.constant 0 : i32
    %c0_i32_1 = arith.constant 0 : i32
    return %c0_i32_0, %3 : i32, i32
  }
  func.func @transform_2(%arg0: i32, %arg1: i32) -> (i32, i32) {
    %c0_i32 = arith.constant 0 : i32
    %c0_i32_0 = arith.constant 0 : i32
    %c0_i32_1 = arith.constant 0 : i32
    return %c0_i32, %c0_i32_0 : i32, i32
  }
  func.func @transform_3(%arg0: i32, %arg1: i32) -> (i32, i32) {
    %c0_i32 = arith.constant 0 : i32
    %c0_i32_0 = arith.constant 0 : i32
    %c0_i32_1 = arith.constant 0 : i32
    return %c0_i32, %c0_i32_0 : i32, i32
  }
  func.func @transform_4(%arg0: i32, %arg1: i32) -> (i32, i32) {
    %c0_i32 = arith.constant 0 : i32
    %c0_i32_0 = arith.constant 0 : i32
    %c0_i32_1 = arith.constant 0 : i32
    return %c0_i32, %c0_i32_0 : i32, i32
  }
  func.func @transform_5(%arg0: i32, %arg1: i32) -> (i32, i32) {
    %0 = arith.muli %arg0, %arg1 : i32
    %c0_i32 = arith.constant 0 : i32
    %c0_i32_0 = arith.constant 0 : i32
    return %c0_i32, %0 : i32, i32
  }
}

module attributes {stable_mosaic.version = 11 : i64} {
  func.func @_conv_bn_relu_kernel(%arg0: i32, %arg1: i32, %arg2: memref<1x512xi32, #tpu.memory_space<vmem>>, %arg3: memref<8x512xbf16, #tpu.memory_space<vmem>>, %arg4: memref<8x72xbf16, #tpu.memory_space<vmem>>, %arg5: memref<8x1xf32, #tpu.memory_space<vmem>>, %arg6: memref<8x1xf32, #tpu.memory_space<vmem>>, %arg7: memref<8x512xf32, #tpu.memory_space<vmem>>, %arg8: memref<1x8x512xbf16, #tpu.memory_space<vmem>>, %arg9: memref<8x1xf32, #tpu.memory_space<vmem>>, %arg10: memref<8x1xf32, #tpu.memory_space<vmem>>) attributes {dimension_semantics = [#tpu.dimension_semantics<arbitrary>, #tpu.dimension_semantics<arbitrary>], iteration_bounds = array<i64: 2, 1>, scalar_prefetch = 0 : i64, scratch_operands = 3 : i64, tpu.core_type = #tpu.core_type<tc>, window_params = [{pipeline_mode = #tpu.pipeline_mode<synchronous>, transform_indices = @transform_0, window_bounds = array<i64: 1, 512>}, {transform_indices = @transform_1, window_bounds = array<i64: 8, 512>}, {pipeline_mode = #tpu.pipeline_mode<synchronous>, transform_indices = @transform_2, window_bounds = array<i64: 8, 72>}, {pipeline_mode = #tpu.pipeline_mode<synchronous>, transform_indices = @transform_3, window_bounds = array<i64: 8, 1>}, {pipeline_mode = #tpu.pipeline_mode<synchronous>, transform_indices = @transform_4, window_bounds = array<i64: 8, 1>}, {transform_indices = @transform_5, window_bounds = array<i64: 8, 512>}]} {
    %c0_i32 = arith.constant 0 : i32
    %0 = arith.cmpi eq, %arg0, %c0_i32 : i32
    %c0_i32_0 = arith.constant 0 : i32
    %1 = arith.cmpi eq, %arg1, %c0_i32_0 : i32
    %2 = arith.andi %0, %1 : i1
    %3 = arith.extui %2 : i1 to i32
    %c0_i32_1 = arith.constant 0 : i32
    %4 = arith.cmpi ne, %3, %c0_i32_1 : i32
    scf.if %4 {
      %cst = arith.constant 0.000000e+00 : f32
      %11 = vector.broadcast %cst : f32 to vector<8x1xf32>
      %c0 = arith.constant 0 : index
      %c0_5 = arith.constant 0 : index
      %12 = vector.load %arg9[%c0, %c0_5] : memref<8x1xf32, #tpu.memory_space<vmem>>, vector<8x1xf32>
      tpu.vector_store %arg9[%c0, %c0_5], %11 {strides = array<i32>} : memref<8x1xf32, #tpu.memory_space<vmem>>, vector<8x1xf32>,
      %cst_6 = arith.constant 0.000000e+00 : f32
      %13 = vector.broadcast %cst_6 : f32 to vector<8x1xf32>
      %c0_7 = arith.constant 0 : index
      %c0_8 = arith.constant 0 : index
      %14 = vector.load %arg10[%c0_7, %c0_8] : memref<8x1xf32, #tpu.memory_space<vmem>>, vector<8x1xf32>
      tpu.vector_store %arg10[%c0_7, %c0_8], %13 {strides = array<i32>} : memref<8x1xf32, #tpu.memory_space<vmem>>, vector<8x1xf32>,
    } else {
    }
    %c0_i32_2 = arith.constant 0 : i32
    %5 = arith.cmpi eq, %arg0, %c0_i32_2 : i32
    %6 = arith.extui %5 : i1 to i32
    %c0_i32_3 = arith.constant 0 : i32
    %7 = arith.cmpi ne, %6, %c0_i32_3 : i32
    scf.if %7 {
      %c0 = arith.constant 0 : index
      %c0_5 = arith.constant 0 : index
      %11 = vector.load %arg3[%c0, %c0_5] : memref<8x512xbf16, #tpu.memory_space<vmem>>, vector<8x512xbf16>
      %c0_6 = arith.constant 0 : index
      %c0_7 = arith.constant 0 : index
      %12 = vector.load %arg2[%c0_6, %c0_7] : memref<1x512xi32, #tpu.memory_space<vmem>>, vector<1x512xi32>
      %c1_i32_8 = arith.constant 1 : i32
      %13 = vector.broadcast %c1_i32_8 : i32 to vector<1x512xi32>
      %14 = arith.andi %12, %13 : vector<1x512xi32>
      %c0_i32_9 = arith.constant 0 : i32
      %15 = vector.broadcast %c0_i32_9 : i32 to vector<1x512xi32>
      %16 = arith.cmpi ne, %14, %15 : vector<1x512xi32>
      %c2_i32 = arith.constant 2 : i32
      %17 = vector.broadcast %c2_i32 : i32 to vector<1x512xi32>
      %18 = arith.andi %12, %17 : vector<1x512xi32>
      %c0_i32_10 = arith.constant 0 : i32
      %19 = vector.broadcast %c0_i32_10 : i32 to vector<1x512xi32>
      %20 = arith.cmpi ne, %18, %19 : vector<1x512xi32>
      %c4_i32 = arith.constant 4 : i32
      %21 = vector.broadcast %c4_i32 : i32 to vector<1x512xi32>
      %22 = arith.andi %12, %21 : vector<1x512xi32>
      %c0_i32_11 = arith.constant 0 : i32
      %23 = vector.broadcast %c0_i32_11 : i32 to vector<1x512xi32>
      %24 = arith.cmpi ne, %22, %23 : vector<1x512xi32>
      %c8_i32 = arith.constant 8 : i32
      %25 = vector.broadcast %c8_i32 : i32 to vector<1x512xi32>
      %26 = arith.andi %12, %25 : vector<1x512xi32>
      %c0_i32_12 = arith.constant 0 : i32
      %27 = vector.broadcast %c0_i32_12 : i32 to vector<1x512xi32>
      %28 = arith.cmpi ne, %26, %27 : vector<1x512xi32>
      %29 = vector.extract_strided_slice %11 {offsets = [0, 1], sizes = [8, 511], strides = [1, 1]} : vector<8x512xbf16> to vector<8x511xbf16>
      %30 = vector.extract_strided_slice %11 {offsets = [0, 0], sizes = [8, 1], strides = [1, 1]} : vector<8x512xbf16> to vector<8x1xbf16>
      %31 = tpu.concatenate %29, %30 in 1 : vector<8x511xbf16>, vector<8x1xbf16> -> vector<8x512xbf16>
      %32 = vector.extract_strided_slice %11 {offsets = [0, 511], sizes = [8, 1], strides = [1, 1]} : vector<8x512xbf16> to vector<8x1xbf16>
      %33 = vector.extract_strided_slice %11 {offsets = [0, 0], sizes = [8, 511], strides = [1, 1]} : vector<8x512xbf16> to vector<8x511xbf16>
      %34 = tpu.concatenate %32, %33 in 1 : vector<8x1xbf16>, vector<8x511xbf16> -> vector<8x512xbf16>
      %35 = vector.shape_cast %16 : vector<1x512xi1> to vector<1x512xi1>
      %36 = vector.broadcast %35 : vector<1x512xi1> to vector<8x512xi1>
      %37 = arith.select %36, %31, %34 : vector<8x512xi1>, vector<8x512xbf16>
      %38 = vector.shape_cast %20 : vector<1x512xi1> to vector<1x512xi1>
      %39 = vector.broadcast %38 : vector<1x512xi1> to vector<8x512xi1>
      %40 = arith.select %39, %34, %31 : vector<8x512xi1>, vector<8x512xbf16>
      %41 = vector.extract_strided_slice %37 {offsets = [0, 16], sizes = [8, 496], strides = [1, 1]} : vector<8x512xbf16> to vector<8x496xbf16>
      %42 = vector.extract_strided_slice %37 {offsets = [0, 0], sizes = [8, 16], strides = [1, 1]} : vector<8x512xbf16> to vector<8x16xbf16>
      %43 = tpu.concatenate %41, %42 in 1 : vector<8x496xbf16>, vector<8x16xbf16> -> vector<8x512xbf16>
      %44 = vector.extract_strided_slice %37 {offsets = [0, 496], sizes = [8, 16], strides = [1, 1]} : vector<8x512xbf16> to vector<8x16xbf16>
      %45 = vector.extract_strided_slice %37 {offsets = [0, 0], sizes = [8, 496], strides = [1, 1]} : vector<8x512xbf16> to vector<8x496xbf16>
      %46 = tpu.concatenate %44, %45 in 1 : vector<8x16xbf16>, vector<8x496xbf16> -> vector<8x512xbf16>
      %47 = vector.shape_cast %24 : vector<1x512xi1> to vector<1x512xi1>
      %48 = vector.broadcast %47 : vector<1x512xi1> to vector<8x512xi1>
      %49 = arith.select %48, %43, %46 : vector<8x512xi1>, vector<8x512xbf16>
      %50 = vector.shape_cast %28 : vector<1x512xi1> to vector<1x512xi1>
      %51 = vector.broadcast %50 : vector<1x512xi1> to vector<8x512xi1>
      %52 = arith.select %51, %46, %43 : vector<8x512xi1>, vector<8x512xbf16>
      %53 = vector.extract_strided_slice %11 {offsets = [0, 16], sizes = [8, 496], strides = [1, 1]} : vector<8x512xbf16> to vector<8x496xbf16>
      %54 = vector.extract_strided_slice %11 {offsets = [0, 0], sizes = [8, 16], strides = [1, 1]} : vector<8x512xbf16> to vector<8x16xbf16>
      %55 = tpu.concatenate %53, %54 in 1 : vector<8x496xbf16>, vector<8x16xbf16> -> vector<8x512xbf16>
      %56 = vector.extract_strided_slice %11 {offsets = [0, 496], sizes = [8, 16], strides = [1, 1]} : vector<8x512xbf16> to vector<8x16xbf16>
      %57 = vector.extract_strided_slice %11 {offsets = [0, 0], sizes = [8, 496], strides = [1, 1]} : vector<8x512xbf16> to vector<8x496xbf16>
      %58 = tpu.concatenate %56, %57 in 1 : vector<8x16xbf16>, vector<8x496xbf16> -> vector<8x512xbf16>
      %59 = vector.shape_cast %24 : vector<1x512xi1> to vector<1x512xi1>
      %60 = vector.broadcast %59 : vector<1x512xi1> to vector<8x512xi1>
      %61 = arith.select %60, %55, %58 : vector<8x512xi1>, vector<8x512xbf16>
      %62 = vector.shape_cast %28 : vector<1x512xi1> to vector<1x512xi1>
      %63 = vector.broadcast %62 : vector<1x512xi1> to vector<8x512xi1>
      %64 = arith.select %63, %58, %55 : vector<8x512xi1>, vector<8x512xbf16>
      %65 = vector.extract_strided_slice %40 {offsets = [0, 16], sizes = [8, 496], strides = [1, 1]} : vector<8x512xbf16> to vector<8x496xbf16>
      %66 = vector.extract_strided_slice %40 {offsets = [0, 0], sizes = [8, 16], strides = [1, 1]} : vector<8x512xbf16> to vector<8x16xbf16>
      %67 = tpu.concatenate %65, %66 in 1 : vector<8x496xbf16>, vector<8x16xbf16> -> vector<8x512xbf16>
      %68 = vector.extract_strided_slice %40 {offsets = [0, 496], sizes = [8, 16], strides = [1, 1]} : vector<8x512xbf16> to vector<8x16xbf16>
      %69 = vector.extract_strided_slice %40 {offsets = [0, 0], sizes = [8, 496], strides = [1, 1]} : vector<8x512xbf16> to vector<8x496xbf16>
      %70 = tpu.concatenate %68, %69 in 1 : vector<8x16xbf16>, vector<8x496xbf16> -> vector<8x512xbf16>
      %71 = vector.shape_cast %24 : vector<1x512xi1> to vector<1x512xi1>
      %72 = vector.broadcast %71 : vector<1x512xi1> to vector<8x512xi1>
      %73 = arith.select %72, %67, %70 : vector<8x512xi1>, vector<8x512xbf16>
      %74 = vector.shape_cast %28 : vector<1x512xi1> to vector<1x512xi1>
      %75 = vector.broadcast %74 : vector<1x512xi1> to vector<8x512xi1>
      %76 = arith.select %75, %70, %67 : vector<8x512xi1>, vector<8x512xbf16>
      %77 = tpu.concatenate %49, %61, %73, %37, %11, %40, %52, %64, %76 in 0 : vector<8x512xbf16>, vector<8x512xbf16>, vector<8x512xbf16>, vector<8x512xbf16>, vector<8x512xbf16>, vector<8x512xbf16>, vector<8x512xbf16>, vector<8x512xbf16>, vector<8x512xbf16> -> vector<72x512xbf16>
      %c0_13 = arith.constant 0 : index
      %c0_14 = arith.constant 0 : index
      %78 = vector.load %arg4[%c0_13, %c0_14] : memref<8x72xbf16, #tpu.memory_space<vmem>>, vector<8x72xbf16>
      %cst = arith.constant dense<0.000000e+00> : vector<8x512xf32>
      %79 = tpu.matmul %78, %77, %cst {dimension_numbers = #tpu.dot_dimension_numbers<[1], [0], [0], [1], [0, 0, 1, 1], [], []>} : vector<8x72xbf16>, vector<72x512xbf16>, vector<8x512xf32> -> vector<8x512xf32>
      %c0_15 = arith.constant 0 : index
      %c0_16 = arith.constant 0 : index
      %80 = vector.load %arg9[%c0_15, %c0_16] : memref<8x1xf32, #tpu.memory_space<vmem>>, vector<8x1xf32>
      %cst_17 = arith.constant dense<0.000000e+00> : vector<8xf32>
      %81 = vector.multi_reduction <add>, %79, %cst_17 [1] : vector<8x512xf32> to vector<8xf32>
      %82 = vector.shape_cast %81 : vector<8xf32> to vector<8x1xf32>
      %83 = arith.addf %80, %82 : vector<8x1xf32>
      %c0_18 = arith.constant 0 : index
      %c0_19 = arith.constant 0 : index
      %84 = vector.load %arg9[%c0_18, %c0_19] : memref<8x1xf32, #tpu.memory_space<vmem>>, vector<8x1xf32>
      tpu.vector_store %arg9[%c0_18, %c0_19], %83 {strides = array<i32>} : memref<8x1xf32, #tpu.memory_space<vmem>>, vector<8x1xf32>,
      %c0_20 = arith.constant 0 : index
      %c0_21 = arith.constant 0 : index
      %85 = vector.load %arg10[%c0_20, %c0_21] : memref<8x1xf32, #tpu.memory_space<vmem>>, vector<8x1xf32>
      %86 = arith.mulf %79, %79 : vector<8x512xf32>
      %cst_22 = arith.constant dense<0.000000e+00> : vector<8xf32>
      %87 = vector.multi_reduction <add>, %86, %cst_22 [1] : vector<8x512xf32> to vector<8xf32>
      %88 = vector.shape_cast %87 : vector<8xf32> to vector<8x1xf32>
      %89 = arith.addf %85, %88 : vector<8x1xf32>
      %c0_23 = arith.constant 0 : index
      %c0_24 = arith.constant 0 : index
      %90 = vector.load %arg10[%c0_23, %c0_24] : memref<8x1xf32, #tpu.memory_space<vmem>>, vector<8x1xf32>
      tpu.vector_store %arg10[%c0_23, %c0_24], %89 {strides = array<i32>} : memref<8x1xf32, #tpu.memory_space<vmem>>, vector<8x1xf32>,
      %91 = arith.truncf %79 : vector<8x512xf32> to vector<8x512xbf16>
      %92 = arith.index_cast %arg1 : i32 to index
      %c0_25 = arith.constant 0 : index
      %c0_26 = arith.constant 0 : index
      %93 = vector.load %arg8[%92, %c0_25, %c0_26] : memref<1x8x512xbf16, #tpu.memory_space<vmem>>, vector<1x8x512xbf16>
      %94 = vector.shape_cast %93 : vector<1x8x512xbf16> to vector<8x512xbf16>
      %95 = vector.shape_cast %91 : vector<8x512xbf16> to vector<1x8x512xbf16>
      tpu.vector_store %arg8[%92, %c0_25, %c0_26], %95 {strides = array<i32>} : memref<1x8x512xbf16, #tpu.memory_space<vmem>>, vector<1x8x512xbf16>,
    } else {
    }
    %c1_i32 = arith.constant 1 : i32
    %8 = arith.cmpi eq, %arg0, %c1_i32 : i32
    %9 = arith.extui %8 : i1 to i32
    %c0_i32_4 = arith.constant 0 : i32
    %10 = arith.cmpi ne, %9, %c0_i32_4 : i32
    scf.if %10 {
      %11 = arith.index_cast %arg1 : i32 to index
      %c0 = arith.constant 0 : index
      %c0_5 = arith.constant 0 : index
      %12 = vector.load %arg8[%11, %c0, %c0_5] : memref<1x8x512xbf16, #tpu.memory_space<vmem>>, vector<1x8x512xbf16>
      %13 = vector.shape_cast %12 : vector<1x8x512xbf16> to vector<8x512xbf16>
      %14 = arith.extf %13 : vector<8x512xbf16> to vector<8x512xf32>
      %c0_6 = arith.constant 0 : index
      %c0_7 = arith.constant 0 : index
      %15 = vector.load %arg9[%c0_6, %c0_7] : memref<8x1xf32, #tpu.memory_space<vmem>>, vector<8x1xf32>
      %cst = arith.constant 0.001953125 : f32
      %16 = vector.broadcast %cst : f32 to vector<8x1xf32>
      %17 = arith.mulf %15, %16 : vector<8x1xf32>
      %c0_8 = arith.constant 0 : index
      %c0_9 = arith.constant 0 : index
      %18 = vector.load %arg10[%c0_8, %c0_9] : memref<8x1xf32, #tpu.memory_space<vmem>>, vector<8x1xf32>
      %cst_10 = arith.constant 0.001953125 : f32
      %19 = vector.broadcast %cst_10 : f32 to vector<8x1xf32>
      %20 = arith.mulf %18, %19 : vector<8x1xf32>
      %21 = arith.mulf %17, %17 : vector<8x1xf32>
      %22 = arith.subf %20, %21 : vector<8x1xf32>
      %cst_11 = arith.constant 0.000000e+00 : f32
      %23 = vector.broadcast %cst_11 : f32 to vector<8x1xf32>
      %24 = arith.maximumf %22, %23 : vector<8x1xf32>
      %c0_12 = arith.constant 0 : index
      %c0_13 = arith.constant 0 : index
      %25 = vector.load %arg5[%c0_12, %c0_13] : memref<8x1xf32, #tpu.memory_space<vmem>>, vector<8x1xf32>
      %cst_14 = arith.constant 9.99999974E-6 : f32
      %26 = vector.broadcast %cst_14 : f32 to vector<8x1xf32>
      %27 = arith.addf %24, %26 : vector<8x1xf32>
      %28 = math.rsqrt %27 : vector<8x1xf32>
      %29 = arith.mulf %25, %28 : vector<8x1xf32>
      %c0_15 = arith.constant 0 : index
      %c0_16 = arith.constant 0 : index
      %30 = vector.load %arg6[%c0_15, %c0_16] : memref<8x1xf32, #tpu.memory_space<vmem>>, vector<8x1xf32>
      %31 = arith.mulf %17, %29 : vector<8x1xf32>
      %32 = arith.subf %30, %31 : vector<8x1xf32>
      %33 = vector.broadcast %29 : vector<8x1xf32> to vector<8x512xf32>
      %34 = arith.mulf %14, %33 : vector<8x512xf32>
      %35 = vector.broadcast %32 : vector<8x1xf32> to vector<8x512xf32>
      %36 = arith.addf %34, %35 : vector<8x512xf32>
      %cst_17 = arith.constant 0.000000e+00 : f32
      %37 = vector.broadcast %cst_17 : f32 to vector<8x512xf32>
      %38 = arith.maximumf %36, %37 : vector<8x512xf32>
      %c0_18 = arith.constant 0 : index
      %c0_19 = arith.constant 0 : index
      %39 = vector.load %arg3[%c0_18, %c0_19] : memref<8x512xbf16, #tpu.memory_space<vmem>>, vector<8x512xbf16>
      %40 = arith.extf %39 : vector<8x512xbf16> to vector<8x512xf32>
      %41 = arith.addf %38, %40 : vector<8x512xf32>
      %c0_20 = arith.constant 0 : index
      %c0_21 = arith.constant 0 : index
      %42 = vector.load %arg7[%c0_20, %c0_21] : memref<8x512xf32, #tpu.memory_space<vmem>>, vector<8x512xf32>
      tpu.vector_store %arg7[%c0_20, %c0_21], %41 {strides = array<i32>} : memref<8x512xf32, #tpu.memory_space<vmem>>, vector<8x512xf32>,
    } else {
    }
    return
  }
  func.func @transform_0(%arg0: i32, %arg1: i32) -> (i32, i32) {
    %c0_i32 = arith.constant 0 : i32
    %c0_i32_0 = arith.constant 0 : i32
    %c0_i32_1 = arith.constant 0 : i32
    return %c0_i32, %c0_i32_0 : i32, i32
  }
  func.func @transform_1(%arg0: i32, %arg1: i32) -> (i32, i32) {
    %c0_i32 = arith.constant 0 : i32
    %c0_i32_0 = arith.constant 0 : i32
    return %c0_i32, %arg1 : i32, i32
  }
  func.func @transform_2(%arg0: i32, %arg1: i32) -> (i32, i32) {
    %c0_i32 = arith.constant 0 : i32
    %c0_i32_0 = arith.constant 0 : i32
    %c0_i32_1 = arith.constant 0 : i32
    return %c0_i32, %c0_i32_0 : i32, i32
  }
  func.func @transform_3(%arg0: i32, %arg1: i32) -> (i32, i32) {
    %c0_i32 = arith.constant 0 : i32
    %c0_i32_0 = arith.constant 0 : i32
    %c0_i32_1 = arith.constant 0 : i32
    return %c0_i32, %c0_i32_0 : i32, i32
  }
  func.func @transform_4(%arg0: i32, %arg1: i32) -> (i32, i32) {
    %c0_i32 = arith.constant 0 : i32
    %c0_i32_0 = arith.constant 0 : i32
    %c0_i32_1 = arith.constant 0 : i32
    return %c0_i32, %c0_i32_0 : i32, i32
  }
  func.func @transform_5(%arg0: i32, %arg1: i32) -> (i32, i32) {
    %0 = arith.muli %arg0, %arg1 : i32
    %c0_i32 = arith.constant 0 : i32
    %c0_i32_0 = arith.constant 0 : i32
    return %c0_i32, %0 : i32, i32
  }
}

</mosaic_0001>

<llo_original>
// kernel: down_conv_block_forward.4
$region0: #{down_conv_block_forward.4}
  #allocation0 [shape = 'u32[]', space=smem, size = 0x4, offset = 0x4, fixed_abs, tag = 'smem constant byte address 0x4 - core index']
  #allocation1 [shape = 'u32[72,128]{1,0:T(1,128)}', space=vmem, size = 0x9000, scoped, tag = 'internal scratch']
  #allocation2 [shape = 'bf16[1,8,512]{2,1,0:T(8,128)(2,1)}', space=vmem, size = 0x2000, scoped, tag = 'scratch operand']
  #allocation3 [shape = 'f32[8,1]{1,0:T(8,128)}', space=vmem, size = 0x1000, scoped, tag = 'scratch operand']
  #allocation4 [shape = 'f32[8,1]{1,0:T(8,128)}', space=vmem, size = 0x1000, scoped, tag = 'scratch operand']
  %s0 = inlined_call_operand.vmem [shape: s32[1,512], index: 0, kind: input, shape index: {}]
  %s1 = inlined_call_operand.vmem [shape: bf16[8,512], index: 1, kind: input, shape index: {}]
  %s2 = inlined_call_operand.vmem [shape: bf16[8,72], index: 2, kind: input, shape index: {}]
  %s3 = inlined_call_operand.vmem [shape: f32[8,1], index: 3, kind: input, shape index: {}]
  %s4 = inlined_call_operand.vmem [shape: f32[8,1], index: 4, kind: input, shape index: {}]
  %s5 = inlined_call_operand.vmem [shape: bf16[8,512], index: 5, kind: output, shape index: {}]
  %s6 = sld [smem:[#allocation0]]
  $region65: #{down_conv_block_forward.4} parent=0
    _
  %s8 = ssub.s32 1, %s6
  %s9 = scalar_select 0, %s8, %s6
  loop: start=0, step=1, limit=4
  $region2: #{down_conv_block_forward.4} parent=0 // loop_pre_header
    _
  $region3: #{down_conv_block_forward.4} parent=0 // loop_header
    %s11 = sphi 0, %s15
    %p12 = scmp.ge.s32.totalorder %s11, 4
    %s18 = sphi 0, %s30
    %s19 = sphi 0, %s26
    %s20 = sphi 0, %s18
    %s21 = sphi 0, %s19
    %s22 = sphi 0, %s20
    %s23 = sphi 0, %s21
    %s31 = sphi 0, %s31
    %s33 = sphi 0, %s31
    %s34 = sphi 0, %s33
    %s48 = sphi 0, %s34
    %s58 = sphi 0, %s60
    %s61 = sphi 0, %s58
    %s62 = sphi 0, %s61
    %s78 = sphi 0, %s62
    %s82 = sphi 0, %s82
    %s84 = sphi 0, %s82
    %s85 = sphi 0, %s84
    %s99 = sphi 0, %s85
    %s103 = sphi 0, %s103
    %s105 = sphi 0, %s103
    %s106 = sphi 0, %s105
    %s120 = sphi 0, %s106
    %s124 = sphi 0, %s124
    %s126 = sphi 0, %s124
    %s127 = sphi 0, %s126
    %s141 = sphi 0, %s127
    %s149 = sphi 0, %s151
    %s152 = sphi 0, %s149
    %s153 = sphi 0, %s152
    %s169 = sphi 0, %s153
  $region4: #{down_conv_block_forward.4} parent=0 // loop_header_branch
    %14 = sbr.rel (%p12) target = $region8
  $region5: #{down_conv_block_forward.4} parent=0 // loop_body
    %s16 = ssub.s32 %s11, 1
    %s17 = ssub.s32 %s11, 2
    %s24 = sadd.s32 1, %s19
    %p25 = scmp.ge.s32.totalorder %s24, 1
    %s26 = scalar_select %p25, 0, %s24
    %s27 = sadd.s32 1, %s18
    %s28 = scalar_select %p25, %s27, %s18
    %p29 = scmp.ge.s32.totalorder %s28, 2
    %s30 = scalar_select %p29, 0, %s28
    %s32 = sadd.s32 %s31, 1
    %p35 = scmp.eq.s32.totalorder %s11, 1
    %p36 = scmp.ne.s32.totalorder %s31, %s33
    %p37 = scmp.eq.s32.totalorder %s11, 0
    %p38 = por %p36, %p37
    %p39 = scmp.ne.s32.totalorder %s31, %s33
    %p40 = scmp.eq.s32.totalorder %s16, 1
    %p41 = por %p39, %p40
    %p42 = scmp.ne.s32.totalorder %s33, %s34
    %p43 = scmp.eq.s32.totalorder %s16, 0
    %p44 = por %p42, %p43
    %p45 = scmp.ne.s32.totalorder %s33, %s34
    %p46 = scmp.eq.s32.totalorder %s17, 1
    %p47 = por %p45, %p46
    %p49 = scmp.ne.s32.totalorder %s34, %s48
    %p50 = scmp.eq.s32.totalorder %s17, 0
    %p51 = por %p49, %p50
    %s52 = ssub.s32 1, %s18
    %s53 = smul.u32 %s52, %s19
    %s54 = ssub.s32 1, %s30
    %s55 = smul.u32 %s54, %s26
    %s56 = ssub.s32 %s53, %s55
    %p57 = scmp.eq.s32.totalorder %s56, 0
    %s59 = sadd.s32 %s58, 1
    %s60 = scalar_select %p57, %s58, %s59
    %p63 = pneg %p57
    %p64 = scmp.eq.s32.totalorder %s11, 1
    %p65 = por %p63, %p64
    %p66 = scmp.ne.s32.totalorder %s58, %s61
    %p67 = scmp.eq.s32.totalorder %s11, 0
    %p68 = por %p66, %p67
    %p69 = scmp.ne.s32.totalorder %s58, %s61
    %p70 = scmp.eq.s32.totalorder %s16, 1
    %p71 = por %p69, %p70
    %p72 = scmp.ne.s32.totalorder %s61, %s62
    %p73 = scmp.eq.s32.totalorder %s16, 0
    %p74 = por %p72, %p73
    %p75 = scmp.ne.s32.totalorder %s61, %s62
    %p76 = scmp.eq.s32.totalorder %s17, 1
    %p77 = por %p75, %p76
    %p79 = scmp.ne.s32.totalorder %s62, %s78
    %p80 = scmp.eq.s32.totalorder %s17, 0
    %p81 = por %p79, %p80
    %s83 = sadd.s32 %s82, 1
    %p86 = scmp.eq.s32.totalorder %s11, 1
    %p87 = scmp.ne.s32.totalorder %s82, %s84
    %p88 = scmp.eq.s32.totalorder %s11, 0
    %p89 = por %p87, %p88
    %p90 = scmp.ne.s32.totalorder %s82, %s84
    %p91 = scmp.eq.s32.totalorder %s16, 1
    %p92 = por %p90, %p91
    %p93 = scmp.ne.s32.totalorder %s84, %s85
    %p94 = scmp.eq.s32.totalorder %s16, 0
    %p95 = por %p93, %p94
    %p96 = scmp.ne.s32.totalorder %s84, %s85
    %p97 = scmp.eq.s32.totalorder %s17, 1
    %p98 = por %p96, %p97
    %p100 = scmp.ne.s32.totalorder %s85, %s99
    %p101 = scmp.eq.s32.totalorder %s17, 0
    %p102 = por %p100, %p101
    %s104 = sadd.s32 %s103, 1
    %p107 = scmp.eq.s32.totalorder %s11, 1
    %p108 = scmp.ne.s32.totalorder %s103, %s105
    %p109 = scmp.eq.s32.totalorder %s11, 0
    %p110 = por %p108, %p109
    %p111 = scmp.ne.s32.totalorder %s103, %s105
    %p112 = scmp.eq.s32.totalorder %s16, 1
    %p113 = por %p111, %p112
    %p114 = scmp.ne.s32.totalorder %s105, %s106
    %p115 = scmp.eq.s32.totalorder %s16, 0
    %p116 = por %p114, %p115
    %p117 = scmp.ne.s32.totalorder %s105, %s106
    %p118 = scmp.eq.s32.totalorder %s17, 1
    %p119 = por %p117, %p118
    %p121 = scmp.ne.s32.totalorder %s106, %s120
    %p122 = scmp.eq.s32.totalorder %s17, 0
    %p123 = por %p121, %p122
    %s125 = sadd.s32 %s124, 1
    %p128 = scmp.eq.s32.totalorder %s11, 1
    %p129 = scmp.ne.s32.totalorder %s124, %s126
    %p130 = scmp.eq.s32.totalorder %s11, 0
    %p131 = por %p129, %p130
    %p132 = scmp.ne.s32.totalorder %s124, %s126
    %p133 = scmp.eq.s32.totalorder %s16, 1
    %p134 = por %p132, %p133
    %p135 = scmp.ne.s32.totalorder %s126, %s127
    %p136 = scmp.eq.s32.totalorder %s16, 0
    %p137 = por %p135, %p136
    %p138 = scmp.ne.s32.totalorder %s126, %s127
    %p139 = scmp.eq.s32.totalorder %s17, 1
    %p140 = por %p138, %p139
    %p142 = scmp.ne.s32.totalorder %s127, %s141
    %p143 = scmp.eq.s32.totalorder %s17, 0
    %p144 = por %p142, %p143
    %s145 = smul.u32 %s18, %s19
    %s146 = smul.u32 %s30, %s26
    %s147 = ssub.s32 %s145, %s146
    %p148 = scmp.eq.s32.totalorder %s147, 0
    %s150 = sadd.s32 %s149, 1
    %s151 = scalar_select %p148, %s149, %s150
    %p154 = pneg %p148
    %p155 = scmp.eq.s32.totalorder %s11, 1
    %p156 = por %p154, %p155
    %p157 = scmp.ne.s32.totalorder %s149, %s152
    %p158 = scmp.eq.s32.totalorder %s11, 0
    %p159 = por %p157, %p158
    %p160 = scmp.ne.s32.totalorder %s149, %s152
    %p161 = scmp.eq.s32.totalorder %s16, 1
    %p162 = por %p160, %p161
    %p163 = scmp.ne.s32.totalorder %s152, %s153
    %p164 = scmp.eq.s32.totalorder %s16, 0
    %p165 = por %p163, %p164
    %p166 = scmp.ne.s32.totalorder %s152, %s153
    %p167 = scmp.eq.s32.totalorder %s17, 1
    %p168 = por %p166, %p167
    %p170 = scmp.ne.s32.totalorder %s153, %s169
    %p171 = scmp.eq.s32.totalorder %s17, 0
    %p172 = por %p170, %p171
    %p173 = scmp.le.s32.totalorder 1, %s11
    %p174 = scmp.lt.s32.totalorder %s11, 3
    %p175 = pnand %p173, %p174
    %p176 = pneg %p175
    // Predicated region
    $region9: #{down_conv_block_forward.4} parent=5 // pred_check
      _
    $region10: #{down_conv_block_forward.4} parent=5 // pred_check_branch
      %178 = sbr.rel (%p175) target = $region12
    $region11: #{down_conv_block_forward.4} parent=5 // pred_region
      %s179 = ssub.s32 %s11, 1
      // Predicated region
      $region13: #{down_conv_block_forward.4} parent=11 // pred_check
        %p180 = pneg %p44
      $region14: #{down_conv_block_forward.4} parent=11 // pred_check_branch
        %182 = sbr.rel (%p180) target = $region16
      $region15: #{down_conv_block_forward.4} parent=11 // pred_region
        _
      $region16: #{down_conv_block_forward.4} parent=11 // pred_fallthru
        _
      // Predicated region
      $region17: #{down_conv_block_forward.4} parent=11 // pred_check
        %p183 = pneg %p95
      $region18: #{down_conv_block_forward.4} parent=11 // pred_check_branch
        %185 = sbr.rel (%p183) target = $region20
      $region19: #{down_conv_block_forward.4} parent=11 // pred_region
        _
      $region20: #{down_conv_block_forward.4} parent=11 // pred_fallthru
        _
      // Predicated region
      $region21: #{down_conv_block_forward.4} parent=11 // pred_check
        %p186 = pneg %p116
      $region22: #{down_conv_block_forward.4} parent=11 // pred_check_branch
        %188 = sbr.rel (%p186) target = $region24
      $region23: #{down_conv_block_forward.4} parent=11 // pred_region
        _
      $region24: #{down_conv_block_forward.4} parent=11 // pred_fallthru
        _
      // Predicated region
      $region25: #{down_conv_block_forward.4} parent=11 // pred_check
        %p189 = pneg %p137
      $region26: #{down_conv_block_forward.4} parent=11 // pred_check_branch
        %191 = sbr.rel (%p189) target = $region28
      $region27: #{down_conv_block_forward.4} parent=11 // pred_region
        _
      $region28: #{down_conv_block_forward.4} parent=11 // pred_fallthru
        _
    $region12: #{down_conv_block_forward.4} parent=5 // pred_fallthru
      _
    %p192 = scmp.lt.s32.totalorder %s11, 2
    // Predicated region
    $region29: #{down_conv_block_forward.4} parent=5 // pred_check
      %p193 = pneg %p192
    $region30: #{down_conv_block_forward.4} parent=5 // pred_check_branch
      %195 = sbr.rel (%p193) target = $region32
    $region31: #{down_conv_block_forward.4} parent=5 // pred_region
      // Predicated region
      $region33: #{down_conv_block_forward.4} parent=31 // pred_check
        %p196 = pneg %p68
      $region34: #{down_conv_block_forward.4} parent=31 // pred_check_branch
        %198 = sbr.rel (%p196) target = $region36
      $region35: #{down_conv_block_forward.4} parent=31 // pred_region
        %s199 = ssub.s32 1, %s18
        %s200 = smul.u32 %s199, %s19
        %s201 = smul.u32 4, %s200
        %p202 = scmp.lt.s32.totalorder %s201, 3
        %s203 = scalar_select %p202, %s201, 3
        %s204 = smul.addr %s203, 4
        %s205 = scalar_lea.vmem %s1, %s204
        %s206 = ssub.s32 1, %s18
        %s207 = smul.u32 %s206, %s19
        %s208 = smul.u32 4, %s207
      $region36: #{down_conv_block_forward.4} parent=31 // pred_fallthru
        _
    $region32: #{down_conv_block_forward.4} parent=5 // pred_fallthru
      _
    %p209 = scmp.le.s32.totalorder 1, %s11
    %p210 = scmp.lt.s32.totalorder %s11, 3
    %p211 = pnand %p209, %p210
    %p212 = pneg %p211
    // Predicated region
    $region37: #{down_conv_block_forward.4} parent=5 // pred_check
      _
    $region38: #{down_conv_block_forward.4} parent=5 // pred_check_branch
      %214 = sbr.rel (%p211) target = $region40
    $region39: #{down_conv_block_forward.4} parent=5 // pred_region
      %s215 = ssub.s32 %s11, 1
      %p216 = pneg %p44
      %p217 = pneg %p41
      %s218 = ssub.s32 1, %s20
      %s219 = smul.u32 %s218, %s21
      %s220 = smul.u32 4, %s219
      %p221 = scmp.lt.s32.totalorder %s220, 3
      %s222 = scalar_select %p221, %s220, 3
      %s223 = smul.addr %s222, 4
      %s224 = scalar_lea.vmem %s1, %s223
      %p225 = pneg %p74
      %p226 = pneg %p71
      %p227 = pneg %p95
      %p228 = pneg %p92
      %p229 = pneg %p116
      %p230 = pneg %p113
      %p231 = pneg %p137
      %p232 = pneg %p134
      %p233 = pneg %p165
      %p234 = pneg %p162
      %s235 = smul.u32 %s20, %s21
      %s236 = smul.u32 4, %s235
      %p237 = scmp.lt.s32.totalorder %s236, 3
      %s238 = scalar_select %p237, %s236, 3
      %s239 = smul.addr %s238, 4
      %s240 = scalar_lea.vmem %s5, %s239
      %s241 = ssub.s32 1, %s20
      %s242 = smul.u32 %s241, %s21
      %s243 = smul.u32 4, %s242
      %p244 = scmp.lt.s32.totalorder %s243, 3
      %s245 = scalar_select %p244, %s243, 3
      %s246 = smul.addr %s245, 4
      %s247 = scalar_lea.vmem %s1, %s246
      %s248 = ssub.s32 1, %s20
      %s249 = smul.u32 %s248, %s21
      %s250 = smul.u32 4, %s249
      %s251 = smul.u32 %s20, %s21
      %s252 = smul.u32 4, %s251
      %p253 = scmp.lt.s32.totalorder %s252, 3
      %s254 = scalar_select %p253, %s252, 3
      %s255 = smul.addr %s254, 4
      %s256 = scalar_lea.vmem %s5, %s255
      %s257 = smul.u32 %s20, %s21
      %s258 = smul.u32 4, %s257
      %p262 = scmp.eq.s32.totalorder %s20, 0
      %p263 = scmp.eq.s32.totalorder %s21, 0
      %p264 = pnand %p262, %p263
      %p265 = pneg %p264
      // Predicated region
      $region41: #{down_conv_block_forward.4} parent=39 // pred_check
        _
      $region42: #{down_conv_block_forward.4} parent=39 // pred_check_branch
        %267 = sbr.rel (%p264) target = $region44
      $region43: #{down_conv_block_forward.4} parent=39 // pred_region
        %vm268 = vcmask 7168
        %269 = vst.msk [vmem:[#allocation3] sm:$0xff] %vm268, 0.0
        %270 = vst.msk [vmem:[#allocation4] sm:$0xff] %vm268, 0.0
      $region44: #{down_conv_block_forward.4} parent=39 // pred_fallthru
        _
      // Predicated region
      $region45: #{down_conv_block_forward.4} parent=39 // pred_check
        %p271 = pneg %p262
      $region46: #{down_conv_block_forward.4} parent=39 // pred_check_branch
        %273 = sbr.rel (%p271) target = $region48
      $region47: #{down_conv_block_forward.4} parent=39 // pred_region
        %v274 = vld [vmem:[%s247] sm:$0xff]
        %v275 = vld [vmem:[%s247 + $0x8] sm:$0xff]
        %v276 = vld [vmem:[%s0] sm:$0xf]
        %v277 = vand.u32 %v276, 1
        %vm278 = vcmp.ne.s32.totalorder %v277, 0
        %v279 = vand.u32 %v276, 2
        %vm280 = vcmp.ne.s32.totalorder %v279, 0
        %v281 = vand.u32 %v276, 4
        %vm282 = vcmp.ne.s32.totalorder %v281, 0
        %v283 = vand.u32 %v276, 8
        %vm284 = vcmp.ne.s32.totalorder %v283, 0
        %v287 = vunpack.c.l.b16 %v274
        %v288 = vunpack.c.h.b16 %v274
        %v289 = vunpack.c.l.b16 %v275
        %v290 = vunpack.c.h.b16 %v275
        %v291 = vpack.c.b16 %v287, %v287
        %v292 = vpack.c.b16 %v288, %v288
        %v293 = vpack.c.b16 %v289, %v289
        %v294 = vpack.c.b16 %v290, %v290
        %295 = vrot.lane.b32.xlu0 %v291, 127
        %v296 = vpop.permute.xlu0 %295
        %297 = vrot.lane.b32.xlu0 %v292, 127
        %v298 = vpop.permute.xlu0 %297
        %299 = vrot.lane.b32.xlu0 %v293, 127
        %v300 = vpop.permute.xlu0 %299
        %301 = vrot.lane.b32.xlu0 %v294, 127
        %v302 = vpop.permute.xlu0 %301
        %vm303 = vcmask 1039360
        %v304 = vsel %vm303, %v296, %v298
        %v305 = vsel %vm303, %v298, %v300
        %v306 = vsel %vm303, %v300, %v302
        %vm310 = vcmask 1039360
        %v313 = vsel %vm310, %v302, %v296
        %315 = vrot.lane.b32.xlu0 %v294, 1
        %v316 = vpop.permute.xlu0 %315
        %317 = vrot.lane.b32.xlu0 %v291, 1
        %v318 = vpop.permute.xlu0 %317
        %319 = vrot.lane.b32.xlu0 %v292, 1
        %v320 = vpop.permute.xlu0 %319
        %321 = vrot.lane.b32.xlu0 %v293, 1
        %v322 = vpop.permute.xlu0 %321
        %vm323 = vcmask 7168
        %v324 = vsel %vm323, %v318, %v320
        %v325 = vsel %vm323, %v320, %v322
        %v326 = vsel %vm323, %v322, %v316
        %vm330 = vcmask 7168
        %v333 = vsel %vm330, %v316, %v318
        %v335 = vsel %vm278, 1, 0
        %v336 = vperm.slane %v335, 0
        %v337 = vperm.slane %v335, 1
        %v338 = vperm.slane %v335, 2
        %v339 = vperm.slane %v335, 3
        %vm340 = vcmp.eq.s32.totalorder %v336, 1
        %vm341 = vcmp.eq.s32.totalorder %v337, 1
        %vm342 = vcmp.eq.s32.totalorder %v338, 1
        %vm343 = vcmp.eq.s32.totalorder %v339, 1
        %vm344 = vmpackc.low %vm341, %vm340
        %vm345 = vmpackc.low %vm343, %vm342
        %v346 = vsel %vm344, 65537, 0
        %v347 = vsel %vm345, 65537, 0
        %v348 = vperm.slane %v346, 0
        %v349 = vperm.slane %v346, 4
        %v350 = vperm.slane %v347, 0
        %v351 = vperm.slane %v347, 4
        %v352 = vunpack.c.l.b16 %v348
        %v353 = vunpack.c.h.b16 %v348
        %v354 = vunpack.c.l.b16 0
        %v355 = vunpack.c.h.b16 0
        %vm356 = vcmp.ne.s32.totalorder %v352, %v354
        %vm357 = vcmp.ne.s32.totalorder %v353, %v355
        %vm358 = vmpackc.low %vm357, %vm356
        %v359 = vunpack.c.l.b16 %v349
        %v360 = vunpack.c.h.b16 %v349
        %v361 = vunpack.c.l.b16 0
        %v362 = vunpack.c.h.b16 0
        %vm363 = vcmp.ne.s32.totalorder %v359, %v361
        %vm364 = vcmp.ne.s32.totalorder %v360, %v362
        %vm365 = vmpackc.low %vm364, %vm363
        %v366 = vunpack.c.l.b16 %v350
        %v367 = vunpack.c.h.b16 %v350
        %v368 = vunpack.c.l.b16 0
        %v369 = vunpack.c.h.b16 0
        %vm370 = vcmp.ne.s32.totalorder %v366, %v368
        %vm371 = vcmp.ne.s32.totalorder %v367, %v369
        %vm372 = vmpackc.low %vm371, %vm370
        %v373 = vunpack.c.l.b16 %v351
        %v374 = vunpack.c.h.b16 %v351
        %v375 = vunpack.c.l.b16 0
        %v376 = vunpack.c.h.b16 0
        %vm377 = vcmp.ne.s32.totalorder %v373, %v375
        %vm378 = vcmp.ne.s32.totalorder %v374, %v376
        %vm379 = vmpackc.low %vm378, %vm377
        %v380 = vsel %vm358, %v304, %v333
        %v381 = vsel %vm365, %v305, %v324
        %v382 = vsel %vm372, %v306, %v325
        %v383 = vsel %vm379, %v313, %v326
        %v384 = vsel %vm280, 1, 0
        %v385 = vperm.slane %v384, 0
        %v386 = vperm.slane %v384, 1
        %v387 = vperm.slane %v384, 2
        %v388 = vperm.slane %v384, 3
        %vm389 = vcmp.eq.s32.totalorder %v385, 1
        %vm390 = vcmp.eq.s32.totalorder %v386, 1
        %vm391 = vcmp.eq.s32.totalorder %v387, 1
        %vm392 = vcmp.eq.s32.totalorder %v388, 1
        %vm393 = vmpackc.low %vm390, %vm389
        %vm394 = vmpackc.low %vm392, %vm391
        %v395 = vsel %vm393, 65537, 0
        %v396 = vsel %vm394, 65537, 0
        %v397 = vperm.slane %v395, 0
        %v398 = vperm.slane %v395, 4
        %v399 = vperm.slane %v396, 0
        %v400 = vperm.slane %v396, 4
        %v401 = vunpack.c.l.b16 %v397
        %v402 = vunpack.c.h.b16 %v397
        %v403 = vunpack.c.l.b16 0
        %v404 = vunpack.c.h.b16 0
        %vm405 = vcmp.ne.s32.totalorder %v401, %v403
        %vm406 = vcmp.ne.s32.totalorder %v402, %v404
        %vm407 = vmpackc.low %vm406, %vm405
        %v408 = vunpack.c.l.b16 %v398
        %v409 = vunpack.c.h.b16 %v398
        %v410 = vunpack.c.l.b16 0
        %v411 = vunpack.c.h.b16 0
        %vm412 = vcmp.ne.s32.totalorder %v408, %v410
        %vm413 = vcmp.ne.s32.totalorder %v409, %v411
        %vm414 = vmpackc.low %vm413, %vm412
        %v415 = vunpack.c.l.b16 %v399
        %v416 = vunpack.c.h.b16 %v399
        %v417 = vunpack.c.l.b16 0
        %v418 = vunpack.c.h.b16 0
        %vm419 = vcmp.ne.s32.totalorder %v415, %v417
        %vm420 = vcmp.ne.s32.totalorder %v416, %v418
        %vm421 = vmpackc.low %vm420, %vm419
        %v422 = vunpack.c.l.b16 %v400
        %v423 = vunpack.c.h.b16 %v400
        %v424 = vunpack.c.l.b16 0
        %v425 = vunpack.c.h.b16 0
        %vm426 = vcmp.ne.s32.totalorder %v422, %v424
        %vm427 = vcmp.ne.s32.totalorder %v423, %v425
        %vm428 = vmpackc.low %vm427, %vm426
        %v429 = vsel %vm407, %v333, %v304
        %v430 = vsel %vm414, %v324, %v305
        %v431 = vsel %vm421, %v325, %v306
        %v432 = vsel %vm428, %v326, %v313
        %437 = vrot.lane.b32.xlu0 %v380, 112
        %v438 = vpop.permute.xlu0 %437
        %439 = vrot.lane.b32.xlu0 %v381, 112
        %v440 = vpop.permute.xlu0 %439
        %441 = vrot.lane.b32.xlu0 %v382, 112
        %v442 = vpop.permute.xlu0 %441
        %443 = vrot.lane.b32.xlu0 %v383, 112
        %v444 = vpop.permute.xlu0 %443
        %vm445 = vcmask 916480
        %v446 = vsel %vm445, %v438, %v440
        %v447 = vsel %vm445, %v440, %v442
        %v448 = vsel %vm445, %v442, %v444
        %vm452 = vcmask 916480
        %v455 = vsel %vm452, %v444, %v438
        %457 = vrot.lane.b32.xlu0 %v383, 16
        %v458 = vpop.permute.xlu0 %457
        %459 = vrot.lane.b32.xlu0 %v380, 16
        %v460 = vpop.permute.xlu0 %459
        %461 = vrot.lane.b32.xlu0 %v381, 16
        %v462 = vpop.permute.xlu0 %461
        %463 = vrot.lane.b32.xlu0 %v382, 16
        %v464 = vpop.permute.xlu0 %463
        %vm465 = vcmask 130048
        %v466 = vsel %vm465, %v460, %v462
        %v467 = vsel %vm465, %v462, %v464
        %v468 = vsel %vm465, %v464, %v458
        %vm472 = vcmask 130048
        %v475 = vsel %vm472, %v458, %v460
        %v477 = vsel %vm282, 1, 0
        %v478 = vperm.slane %v477, 0
        %v479 = vperm.slane %v477, 1
        %v480 = vperm.slane %v477, 2
        %v481 = vperm.slane %v477, 3
        %vm482 = vcmp.eq.s32.totalorder %v478, 1
        %vm483 = vcmp.eq.s32.totalorder %v479, 1
        %vm484 = vcmp.eq.s32.totalorder %v480, 1
        %vm485 = vcmp.eq.s32.totalorder %v481, 1
        %vm486 = vmpackc.low %vm483, %vm482
        %vm487 = vmpackc.low %vm485, %vm484
        %v488 = vsel %vm486, 65537, 0
        %v489 = vsel %vm487, 65537, 0
        %v490 = vperm.slane %v488, 0
        %v491 = vperm.slane %v488, 4
        %v492 = vperm.slane %v489, 0
        %v493 = vperm.slane %v489, 4
        %v494 = vunpack.c.l.b16 %v490
        %v495 = vunpack.c.h.b16 %v490
        %v496 = vunpack.c.l.b16 0
        %v497 = vunpack.c.h.b16 0
        %vm498 = vcmp.ne.s32.totalorder %v494, %v496
        %vm499 = vcmp.ne.s32.totalorder %v495, %v497
        %vm500 = vmpackc.low %vm499, %vm498
        %v501 = vunpack.c.l.b16 %v491
        %v502 = vunpack.c.h.b16 %v491
        %v503 = vunpack.c.l.b16 0
        %v504 = vunpack.c.h.b16 0
        %vm505 = vcmp.ne.s32.totalorder %v501, %v503
        %vm506 = vcmp.ne.s32.totalorder %v502, %v504
        %vm507 = vmpackc.low %vm506, %vm505
        %v508 = vunpack.c.l.b16 %v492
        %v509 = vunpack.c.h.b16 %v492
        %v510 = vunpack.c.l.b16 0
        %v511 = vunpack.c.h.b16 0
        %vm512 = vcmp.ne.s32.totalorder %v508, %v510
        %vm513 = vcmp.ne.s32.totalorder %v509, %v511
        %vm514 = vmpackc.low %vm513, %vm512
        %v515 = vunpack.c.l.b16 %v493
        %v516 = vunpack.c.h.b16 %v493
        %v517 = vunpack.c.l.b16 0
        %v518 = vunpack.c.h.b16 0
        %vm519 = vcmp.ne.s32.totalorder %v515, %v517
        %vm520 = vcmp.ne.s32.totalorder %v516, %v518
        %vm521 = vmpackc.low %vm520, %vm519
        %v522 = vsel %vm500, %v446, %v475
        %v523 = vsel %vm507, %v447, %v466
        %v524 = vsel %vm514, %v448, %v467
        %v525 = vsel %vm521, %v455, %v468
        %v526 = vsel %vm284, 1, 0
        %v527 = vperm.slane %v526, 0
        %v528 = vperm.slane %v526, 1
        %v529 = vperm.slane %v526, 2
        %v530 = vperm.slane %v526, 3
        %vm531 = vcmp.eq.s32.totalorder %v527, 1
        %vm532 = vcmp.eq.s32.totalorder %v528, 1
        %vm533 = vcmp.eq.s32.totalorder %v529, 1
        %vm534 = vcmp.eq.s32.totalorder %v530, 1
        %vm535 = vmpackc.low %vm532, %vm531
        %vm536 = vmpackc.low %vm534, %vm533
        %v537 = vsel %vm535, 65537, 0
        %v538 = vsel %vm536, 65537, 0
        %v539 = vperm.slane %v537, 0
        %v540 = vperm.slane %v537, 4
        %v541 = vperm.slane %v538, 0
        %v542 = vperm.slane %v538, 4
        %v543 = vunpack.c.l.b16 %v539
        %v544 = vunpack.c.h.b16 %v539
        %v545 = vunpack.c.l.b16 0
        %v546 = vunpack.c.h.b16 0
        %vm547 = vcmp.ne.s32.totalorder %v543, %v545
        %vm548 = vcmp.ne.s32.totalorder %v544, %v546
        %vm549 = vmpackc.low %vm548, %vm547
        %v550 = vunpack.c.l.b16 %v540
        %v551 = vunpack.c.h.b16 %v540
        %v552 = vunpack.c.l.b16 0
        %v553 = vunpack.c.h.b16 0
        %vm554 = vcmp.ne.s32.totalorder %v550, %v552
        %vm555 = vcmp.ne.s32.totalorder %v551, %v553
        %vm556 = vmpackc.low %vm555, %vm554
        %v557 = vunpack.c.l.b16 %v541
        %v558 = vunpack.c.h.b16 %v541
        %v559 = vunpack.c.l.b16 0
        %v560 = vunpack.c.h.b16 0
        %vm561 = vcmp.ne.s32.totalorder %v557, %v559
        %vm562 = vcmp.ne.s32.totalorder %v558, %v560
        %vm563 = vmpackc.low %vm562, %vm561
        %v564 = vunpack.c.l.b16 %v542
        %v565 = vunpack.c.h.b16 %v542
        %v566 = vunpack.c.l.b16 0
        %v567 = vunpack.c.h.b16 0
        %vm568 = vcmp.ne.s32.totalorder %v564, %v566
        %vm569 = vcmp.ne.s32.totalorder %v565, %v567
        %vm570 = vmpackc.low %vm569, %vm568
        %v571 = vsel %vm549, %v475, %v446
        %v572 = vsel %vm556, %v466, %v447
        %v573 = vsel %vm563, %v467, %v448
        %v574 = vsel %vm570, %v468, %v455
        %575 = vrot.lane.b32.xlu0 %v291, 112
        %v576 = vpop.permute.xlu0 %575
        %577 = vrot.lane.b32.xlu0 %v292, 112
        %v578 = vpop.permute.xlu0 %577
        %579 = vrot.lane.b32.xlu0 %v293, 112
        %v580 = vpop.permute.xlu0 %579
        %581 = vrot.lane.b32.xlu0 %v294, 112
        %v582 = vpop.permute.xlu0 %581
        %v583 = vsel %vm445, %v576, %v578
        %v584 = vsel %vm445, %v578, %v580
        %v585 = vsel %vm445, %v580, %v582
        %v591 = vsel %vm452, %v582, %v576
        %593 = vrot.lane.b32.xlu0 %v294, 16
        %v594 = vpop.permute.xlu0 %593
        %595 = vrot.lane.b32.xlu0 %v291, 16
        %v596 = vpop.permute.xlu0 %595
        %597 = vrot.lane.b32.xlu0 %v292, 16
        %v598 = vpop.permute.xlu0 %597
        %599 = vrot.lane.b32.xlu0 %v293, 16
        %v600 = vpop.permute.xlu0 %599
        %v601 = vsel %vm465, %v596, %v598
        %v602 = vsel %vm465, %v598, %v600
        %v603 = vsel %vm465, %v600, %v594
        %v609 = vsel %vm472, %v594, %v596
        %v611 = vsel %vm500, %v583, %v609
        %v612 = vsel %vm507, %v584, %v601
        %v613 = vsel %vm514, %v585, %v602
        %v614 = vsel %vm521, %v591, %v603
        %v615 = vsel %vm549, %v609, %v583
        %v616 = vsel %vm556, %v601, %v584
        %v617 = vsel %vm563, %v602, %v585
        %v618 = vsel %vm570, %v603, %v591
        %623 = vrot.lane.b32.xlu0 %v429, 112
        %v624 = vpop.permute.xlu0 %623
        %625 = vrot.lane.b32.xlu0 %v430, 112
        %v626 = vpop.permute.xlu0 %625
        %627 = vrot.lane.b32.xlu0 %v431, 112
        %v628 = vpop.permute.xlu0 %627
        %629 = vrot.lane.b32.xlu0 %v432, 112
        %v630 = vpop.permute.xlu0 %629
        %v631 = vsel %vm445, %v624, %v626
        %v632 = vsel %vm445, %v626, %v628
        %v633 = vsel %vm445, %v628, %v630
        %v639 = vsel %vm452, %v630, %v624
        %641 = vrot.lane.b32.xlu0 %v432, 16
        %v642 = vpop.permute.xlu0 %641
        %643 = vrot.lane.b32.xlu0 %v429, 16
        %v644 = vpop.permute.xlu0 %643
        %645 = vrot.lane.b32.xlu0 %v430, 16
        %v646 = vpop.permute.xlu0 %645
        %647 = vrot.lane.b32.xlu0 %v431, 16
        %v648 = vpop.permute.xlu0 %647
        %v649 = vsel %vm465, %v644, %v646
        %v650 = vsel %vm465, %v646, %v648
        %v651 = vsel %vm465, %v648, %v642
        %v657 = vsel %vm472, %v642, %v644
        %v659 = vsel %vm500, %v631, %v657
        %v660 = vsel %vm507, %v632, %v649
        %v661 = vsel %vm514, %v633, %v650
        %v662 = vsel %vm521, %v639, %v651
        %v663 = vsel %vm549, %v657, %v631
        %v664 = vsel %vm556, %v649, %v632
        %v665 = vsel %vm563, %v650, %v633
        %v666 = vsel %vm570, %v651, %v639
        %v671 = vrot.slane %v611, 4
        %v672 = vrot.slane %v612, 4
        %v673 = vrot.slane %v613, 4
        %v674 = vrot.slane %v614, 4
        %v675 = vrot.slane %v380, 4
        %v676 = vrot.slane %v381, 4
        %v677 = vrot.slane %v382, 4
        %v678 = vrot.slane %v383, 4
        %v679 = vrot.slane %v429, 4
        %v680 = vrot.slane %v430, 4
        %v681 = vrot.slane %v431, 4
        %v682 = vrot.slane %v432, 4
        %v687 = vrot.slane %v615, 4
        %v688 = vrot.slane %v616, 4
        %v689 = vrot.slane %v617, 4
        %v690 = vrot.slane %v618, 4
        %vm691 = vcmask 1043456
        %v694 = vsel %vm691, %v522, %v671
        %v698 = vsel %vm691, %v523, %v672
        %v702 = vsel %vm691, %v524, %v673
        %v706 = vsel %vm691, %v525, %v674
        %v710 = vsel %vm691, %v659, %v675
        %v714 = vsel %vm691, %v660, %v676
        %v718 = vsel %vm691, %v661, %v677
        %v722 = vsel %vm691, %v662, %v678
        %v726 = vsel %vm691, %v291, %v679
        %v730 = vsel %vm691, %v292, %v680
        %v734 = vsel %vm691, %v293, %v681
        %v738 = vsel %vm691, %v294, %v682
        %v742 = vsel %vm691, %v571, %v687
        %v746 = vsel %vm691, %v572, %v688
        %v750 = vsel %vm691, %v573, %v689
        %v754 = vsel %vm691, %v574, %v690
        %v756 = vld [vmem:[%s2] sm:$0xf]
        %vm757 = vcmask 588800
        %v759 = vsel %vm757, %v756, 0
        %v762 = vsel %vm691, %v663, 0
        %v765 = vsel %vm691, %v664, 0
        %v768 = vsel %vm691, %v665, 0
        %v771 = vsel %vm691, %v666, 0
        %773 = vmatpush.bf16.msra.mxu0 0
        %774 = vmatpush.bf16.msra.mxu0 0
        %775 = vmatpush.bf16.msra.mxu0 0
        %776 = vmatpush.bf16.msra.mxu0 %v762
        %777 = vmatpush.bf16.msra.mxu0 %v742
        %778 = vmatpush.bf16.msra.mxu0 %v726
        %779 = vmatpush.bf16.msra.mxu0 %v710
        %780 = vmatpush.bf16.msra.mxu0 %v694
        %781 = vmatmul.bf16.gmra.mxu0 %v759
        %v782 = vpop.f32.mrf.mxu0
        %v783 = vadd.f32 0.0, %v782
        %v784 = vpop.f32.mrf.mxu0
        %785 = vdwg.mxu0
        %786 = vmatpush.bf16.msra.mxu0 0
        %787 = vmatpush.bf16.msra.mxu0 0
        %788 = vmatpush.bf16.msra.mxu0 0
        %789 = vmatpush.bf16.msra.mxu0 %v765
        %790 = vmatpush.bf16.msra.mxu0 %v746
        %791 = vmatpush.bf16.msra.mxu0 %v730
        %792 = vmatpush.bf16.msra.mxu0 %v714
        %793 = vmatpush.bf16.msra.mxu0 %v698
        %794 = vmatmul.bf16.gmra.mxu0 %v759
        %v795 = vpop.f32.mrf.mxu0
        %v796 = vadd.f32 0.0, %v795
        %v797 = vpop.f32.mrf.mxu0
        %798 = vdwg.mxu0
        %799 = vmatpush.bf16.msra.mxu0 0
        %800 = vmatpush.bf16.msra.mxu0 0
        %801 = vmatpush.bf16.msra.mxu0 0
        %802 = vmatpush.bf16.msra.mxu0 %v768
        %803 = vmatpush.bf16.msra.mxu0 %v750
        %804 = vmatpush.bf16.msra.mxu0 %v734
        %805 = vmatpush.bf16.msra.mxu0 %v718
        %806 = vmatpush.bf16.msra.mxu0 %v702
        %807 = vmatmul.bf16.gmra.mxu0 %v759
        %v808 = vpop.f32.mrf.mxu0
        %v809 = vadd.f32 0.0, %v808
        %v810 = vpop.f32.mrf.mxu0
        %811 = vdwg.mxu0
        %812 = vmatpush.bf16.msra.mxu0 0
        %813 = vmatpush.bf16.msra.mxu0 0
        %814 = vmatpush.bf16.msra.mxu0 0
        %815 = vmatpush.bf16.msra.mxu0 %v771
        %816 = vmatpush.bf16.msra.mxu0 %v754
        %817 = vmatpush.bf16.msra.mxu0 %v738
        %818 = vmatpush.bf16.msra.mxu0 %v722
        %819 = vmatpush.bf16.msra.mxu0 %v706
        %820 = vmatmul.bf16.gmra.mxu0 %v759
        %v821 = vpop.f32.mrf.mxu0
        %v822 = vadd.f32 0.0, %v821
        %v823 = vpop.f32.mrf.mxu0
        %824 = vdwg.mxu0
        %v825 = vld [vmem:[#allocation3] sm:$0xff]
        %v826 = vadd.f32 %v783, %v796
        %v827 = vadd.f32 %v826, %v809
        %v828 = vadd.f32 %v827, %v822
        %829 = vadd.xlane.f32.xlu0 %v828
        %v830 = vpop.xlane.xlu0 %829
        %v831 = vadd.f32 %v825, %v830
        %832 = vst.msk [vmem:[#allocation3] sm:$0xff] %vm330, %v831
        %v833 = vld [vmem:[#allocation4] sm:$0xff]
        %v834 = vmul.f32 %v783, %v783
        %v835 = vmul.f32 %v796, %v796
        %v836 = vmul.f32 %v809, %v809
        %v837 = vmul.f32 %v822, %v822
        %v838 = vadd.f32 %v834, %v835
        %v839 = vadd.f32 %v838, %v836
        %v840 = vadd.f32 %v839, %v837
        %841 = vadd.xlane.f32.xlu0 %v840
        %v842 = vpop.xlane.xlu0 %841
        %v843 = vadd.f32 %v833, %v842
        %844 = vst.msk [vmem:[#allocation4] sm:$0xff] %vm330, %v843
        %v845 = vpack.c.bf16 %v796, %v783
        %v846 = vpack.c.bf16 %v822, %v809
        %s847 = smul.u32 %s21, 4
        %s848 = smul.addr %s847, 4
        %s849 = scalar_lea.vmem [#allocation2], %s848
        %850 = vst [vmem:[%s849] sm:$0xff] %v845
        %851 = vst [vmem:[%s849 + $0x8] sm:$0xff] %v846
      $region48: #{down_conv_block_forward.4} parent=39 // pred_fallthru
        _
      %p852 = scmp.eq.s32.totalorder %s20, 1
      // Predicated region
      $region49: #{down_conv_block_forward.4} parent=39 // pred_check
        %p853 = pneg %p852
      $region50: #{down_conv_block_forward.4} parent=39 // pred_check_branch
        %855 = sbr.rel (%p853) target = $region52
      $region51: #{down_conv_block_forward.4} parent=39 // pred_region
        %s856 = smul.u32 %s21, 4
        %s857 = smul.addr %s856, 4
        %s858 = scalar_lea.vmem [#allocation2], %s857
        %v859 = vld [vmem:[%s858] sm:$0xff]
        %v860 = vld [vmem:[%s858 + $0x8] sm:$0xff]
        %v861 = vunpack.c.l.bf16 %v859
        %v862 = vunpack.c.h.bf16 %v859
        %v863 = vunpack.c.l.bf16 %v860
        %v864 = vunpack.c.h.bf16 %v860
        %v865 = vld [vmem:[#allocation3] sm:$0xff]
        %v866 = vmul.f32 %v865, 0.001953125
        %v867 = vld [vmem:[#allocation4] sm:$0xff]
        %v868 = vmul.f32 %v867, 0.001953125
        %v869 = vmul.f32 %v866, %v866
        %v870 = vsub.f32 %v868, %v869
        %v871 = vmax.f32 %v870, 0.0
        %v872 = vld [vmem:[%s3] sm:$0xff]
        %v873 = vadd.f32 %v871, 1e-05
        %v874 = vrsqrt.pop %v873
        %v875 = vmul.f32 %v874, %v873
        %v876 = vmul.f32 %v875, %v874
        %v877 = vmul.f32 0.5, %v876
        %v878 = vsub.f32 1.5, %v877
        %v879 = vmul.f32 %v874, %v878
        %vm880 = vweird.f32 %v873
        %vm881 = vweird.f32 %v874
        %vm882 = vmor %vm880, %vm881
        %v883 = vsel %vm882, %v874, %v879
        %v884 = vmul.f32 %v872, %v883
        %v885 = vld [vmem:[%s4] sm:$0xff]
        %v886 = vmul.f32 %v866, %v884
        %v887 = vsub.f32 %v885, %v886
        %889 = vset.pattern.permute.xlu0 0
        %890 = vperm.xlu0 %889, %v884
        %v891 = vpop.permute.xlu0 %890
        %v893 = vmul.f32 %v861, %v891
        %v894 = vmul.f32 %v862, %v891
        %v895 = vmul.f32 %v863, %v891
        %v896 = vmul.f32 %v864, %v891
        %898 = vset.pattern.permute.xlu0 0
        %899 = vperm.xlu0 %898, %v887
        %v900 = vpop.permute.xlu0 %899
        %v902 = vadd.f32 %v893, %v900
        %v903 = vadd.f32 %v894, %v900
        %v904 = vadd.f32 %v895, %v900
        %v905 = vadd.f32 %v896, %v900
        %v906 = vmax.f32 %v902, 0.0
        %v907 = vmax.f32 %v903, 0.0
        %v908 = vmax.f32 %v904, 0.0
        %v909 = vmax.f32 %v905, 0.0
        %v910 = vpack.c.bf16 %v907, %v906
        %v911 = vpack.c.bf16 %v909, %v908
        %912 = vst [vmem:[%s256] sm:$0xff] %v910
        %913 = vst [vmem:[%s256 + $0x8] sm:$0xff] %v911
      $region52: #{down_conv_block_forward.4} parent=39 // pred_fallthru
        _
      %s914 = smul.u32 %s20, %s21
      %s915 = smul.u32 4, %s914
      %p916 = scmp.lt.s32.totalorder %s915, 3
      %s917 = scalar_select %p916, %s915, 3
      %s918 = smul.addr %s917, 4
      %s919 = scalar_lea.vmem %s5, %s918
      // Predicated region
      $region53: #{down_conv_block_forward.4} parent=39 // pred_check
        %p920 = pneg %p162
      $region54: #{down_conv_block_forward.4} parent=39 // pred_check_branch
        %922 = sbr.rel (%p920) target = $region56
      $region55: #{down_conv_block_forward.4} parent=39 // pred_region
        %s923 = smul.u32 %s20, %s21
        %s924 = smul.u32 4, %s923
      $region56: #{down_conv_block_forward.4} parent=39 // pred_fallthru
        _
    $region40: #{down_conv_block_forward.4} parent=5 // pred_fallthru
      _
    %p925 = scmp.le.s32.totalorder 2, %s11
    // Predicated region
    $region57: #{down_conv_block_forward.4} parent=5 // pred_check
      %p926 = pneg %p925
    $region58: #{down_conv_block_forward.4} parent=5 // pred_check_branch
      %928 = sbr.rel (%p926) target = $region60
    $region59: #{down_conv_block_forward.4} parent=5 // pred_region
      %s929 = ssub.s32 %s11, 2
      // Predicated region
      $region61: #{down_conv_block_forward.4} parent=59 // pred_check
        %p930 = pneg %p168
      $region62: #{down_conv_block_forward.4} parent=59 // pred_check_branch
        %932 = sbr.rel (%p930) target = $region64
      $region63: #{down_conv_block_forward.4} parent=59 // pred_region
        %s933 = smul.u32 %s22, %s23
        %s934 = smul.u32 4, %s933
        %p935 = scmp.lt.s32.totalorder %s934, 3
        %s936 = scalar_select %p935, %s934, 3
        %s937 = smul.addr %s936, 4
        %s938 = scalar_lea.vmem %s5, %s937
      $region64: #{down_conv_block_forward.4} parent=59 // pred_fallthru
        _
    $region60: #{down_conv_block_forward.4} parent=5 // pred_fallthru
      _
  $region6: #{down_conv_block_forward.4} parent=0 // loop_footer
    %s15 = sadd.s32 1, %s11
  $region7: #{down_conv_block_forward.4} parent=0 // loop_footer_branch
    %10 = sbr.rel target = $region3
  $region8: #{down_conv_block_forward.4} parent=0 // loop_exit
    _

// kernel: down_conv_block_forward.5
$region0: #{down_conv_block_forward.5}
  #allocation0 [shape = 'u32[]', space=smem, size = 0x4, offset = 0x4, fixed_abs, tag = 'smem constant byte address 0x4 - core index']
  #allocation1 [shape = 'u32[72,128]{1,0:T(1,128)}', space=vmem, size = 0x9000, scoped, tag = 'internal scratch']
  #allocation2 [shape = 'bf16[1,8,512]{2,1,0:T(8,128)(2,1)}', space=vmem, size = 0x2000, scoped, tag = 'scratch operand']
  #allocation3 [shape = 'f32[8,1]{1,0:T(8,128)}', space=vmem, size = 0x1000, scoped, tag = 'scratch operand']
  #allocation4 [shape = 'f32[8,1]{1,0:T(8,128)}', space=vmem, size = 0x1000, scoped, tag = 'scratch operand']
  %s0 = inlined_call_operand.vmem [shape: s32[1,512], index: 0, kind: input, shape index: {}]
  %s1 = inlined_call_operand.vmem [shape: bf16[8,512], index: 1, kind: input, shape index: {}]
  %s2 = inlined_call_operand.vmem [shape: bf16[8,72], index: 2, kind: input, shape index: {}]
  %s3 = inlined_call_operand.vmem [shape: f32[8,1], index: 3, kind: input, shape index: {}]
  %s4 = inlined_call_operand.vmem [shape: f32[8,1], index: 4, kind: input, shape index: {}]
  %s5 = inlined_call_operand.vmem [shape: f32[8,512], index: 5, kind: output, shape index: {}]
  %s6 = sld [smem:[#allocation0]]
  $region65: #{down_conv_block_forward.5} parent=0
    _
  %s8 = ssub.s32 1, %s6
  %s9 = scalar_select 0, %s8, %s6
  loop: start=0, step=1, limit=4
  $region2: #{down_conv_block_forward.5} parent=0 // loop_pre_header
    _
  $region3: #{down_conv_block_forward.5} parent=0 // loop_header
    %s11 = sphi 0, %s15
    %p12 = scmp.ge.s32.totalorder %s11, 4
    %s18 = sphi 0, %s30
    %s19 = sphi 0, %s26
    %s20 = sphi 0, %s18
    %s21 = sphi 0, %s19
    %s22 = sphi 0, %s20
    %s23 = sphi 0, %s21
    %s31 = sphi 0, %s31
    %s33 = sphi 0, %s31
    %s34 = sphi 0, %s33
    %s48 = sphi 0, %s34
    %s54 = sphi 0, %s56
    %s57 = sphi 0, %s54
    %s58 = sphi 0, %s57
    %s74 = sphi 0, %s58
    %s78 = sphi 0, %s78
    %s80 = sphi 0, %s78
    %s81 = sphi 0, %s80
    %s95 = sphi 0, %s81
    %s99 = sphi 0, %s99
    %s101 = sphi 0, %s99
    %s102 = sphi 0, %s101
    %s116 = sphi 0, %s102
    %s120 = sphi 0, %s120
    %s122 = sphi 0, %s120
    %s123 = sphi 0, %s122
    %s137 = sphi 0, %s123
    %s145 = sphi 0, %s147
    %s148 = sphi 0, %s145
    %s149 = sphi 0, %s148
    %s165 = sphi 0, %s149
  $region4: #{down_conv_block_forward.5} parent=0 // loop_header_branch
    %14 = sbr.rel (%p12) target = $region8
  $region5: #{down_conv_block_forward.5} parent=0 // loop_body
    %s16 = ssub.s32 %s11, 1
    %s17 = ssub.s32 %s11, 2
    %s24 = sadd.s32 1, %s19
    %p25 = scmp.ge.s32.totalorder %s24, 1
    %s26 = scalar_select %p25, 0, %s24
    %s27 = sadd.s32 1, %s18
    %s28 = scalar_select %p25, %s27, %s18
    %p29 = scmp.ge.s32.totalorder %s28, 2
    %s30 = scalar_select %p29, 0, %s28
    %s32 = sadd.s32 %s31, 1
    %p35 = scmp.eq.s32.totalorder %s11, 1
    %p36 = scmp.ne.s32.totalorder %s31, %s33
    %p37 = scmp.eq.s32.totalorder %s11, 0
    %p38 = por %p36, %p37
    %p39 = scmp.ne.s32.totalorder %s31, %s33
    %p40 = scmp.eq.s32.totalorder %s16, 1
    %p41 = por %p39, %p40
    %p42 = scmp.ne.s32.totalorder %s33, %s34
    %p43 = scmp.eq.s32.totalorder %s16, 0
    %p44 = por %p42, %p43
    %p45 = scmp.ne.s32.totalorder %s33, %s34
    %p46 = scmp.eq.s32.totalorder %s17, 1
    %p47 = por %p45, %p46
    %p49 = scmp.ne.s32.totalorder %s34, %s48
    %p50 = scmp.eq.s32.totalorder %s17, 0
    %p51 = por %p49, %p50
    %s52 = ssub.s32 %s19, %s26
    %p53 = scmp.eq.s32.totalorder %s52, 0
    %s55 = sadd.s32 %s54, 1
    %s56 = scalar_select %p53, %s54, %s55
    %p59 = pneg %p53
    %p60 = scmp.eq.s32.totalorder %s11, 1
    %p61 = por %p59, %p60
    %p62 = scmp.ne.s32.totalorder %s54, %s57
    %p63 = scmp.eq.s32.totalorder %s11, 0
    %p64 = por %p62, %p63
    %p65 = scmp.ne.s32.totalorder %s54, %s57
    %p66 = scmp.eq.s32.totalorder %s16, 1
    %p67 = por %p65, %p66
    %p68 = scmp.ne.s32.totalorder %s57, %s58
    %p69 = scmp.eq.s32.totalorder %s16, 0
    %p70 = por %p68, %p69
    %p71 = scmp.ne.s32.totalorder %s57, %s58
    %p72 = scmp.eq.s32.totalorder %s17, 1
    %p73 = por %p71, %p72
    %p75 = scmp.ne.s32.totalorder %s58, %s74
    %p76 = scmp.eq.s32.totalorder %s17, 0
    %p77 = por %p75, %p76
    %s79 = sadd.s32 %s78, 1
    %p82 = scmp.eq.s32.totalorder %s11, 1
    %p83 = scmp.ne.s32.totalorder %s78, %s80
    %p84 = scmp.eq.s32.totalorder %s11, 0
    %p85 = por %p83, %p84
    %p86 = scmp.ne.s32.totalorder %s78, %s80
    %p87 = scmp.eq.s32.totalorder %s16, 1
    %p88 = por %p86, %p87
    %p89 = scmp.ne.s32.totalorder %s80, %s81
    %p90 = scmp.eq.s32.totalorder %s16, 0
    %p91 = por %p89, %p90
    %p92 = scmp.ne.s32.totalorder %s80, %s81
    %p93 = scmp.eq.s32.totalorder %s17, 1
    %p94 = por %p92, %p93
    %p96 = scmp.ne.s32.totalorder %s81, %s95
    %p97 = scmp.eq.s32.totalorder %s17, 0
    %p98 = por %p96, %p97
    %s100 = sadd.s32 %s99, 1
    %p103 = scmp.eq.s32.totalorder %s11, 1
    %p104 = scmp.ne.s32.totalorder %s99, %s101
    %p105 = scmp.eq.s32.totalorder %s11, 0
    %p106 = por %p104, %p105
    %p107 = scmp.ne.s32.totalorder %s99, %s101
    %p108 = scmp.eq.s32.totalorder %s16, 1
    %p109 = por %p107, %p108
    %p110 = scmp.ne.s32.totalorder %s101, %s102
    %p111 = scmp.eq.s32.totalorder %s16, 0
    %p112 = por %p110, %p111
    %p113 = scmp.ne.s32.totalorder %s101, %s102
    %p114 = scmp.eq.s32.totalorder %s17, 1
    %p115 = por %p113, %p114
    %p117 = scmp.ne.s32.totalorder %s102, %s116
    %p118 = scmp.eq.s32.totalorder %s17, 0
    %p119 = por %p117, %p118
    %s121 = sadd.s32 %s120, 1
    %p124 = scmp.eq.s32.totalorder %s11, 1
    %p125 = scmp.ne.s32.totalorder %s120, %s122
    %p126 = scmp.eq.s32.totalorder %s11, 0
    %p127 = por %p125, %p126
    %p128 = scmp.ne.s32.totalorder %s120, %s122
    %p129 = scmp.eq.s32.totalorder %s16, 1
    %p130 = por %p128, %p129
    %p131 = scmp.ne.s32.totalorder %s122, %s123
    %p132 = scmp.eq.s32.totalorder %s16, 0
    %p133 = por %p131, %p132
    %p134 = scmp.ne.s32.totalorder %s122, %s123
    %p135 = scmp.eq.s32.totalorder %s17, 1
    %p136 = por %p134, %p135
    %p138 = scmp.ne.s32.totalorder %s123, %s137
    %p139 = scmp.eq.s32.totalorder %s17, 0
    %p140 = por %p138, %p139
    %s141 = smul.u32 %s18, %s19
    %s142 = smul.u32 %s30, %s26
    %s143 = ssub.s32 %s141, %s142
    %p144 = scmp.eq.s32.totalorder %s143, 0
    %s146 = sadd.s32 %s145, 1
    %s147 = scalar_select %p144, %s145, %s146
    %p150 = pneg %p144
    %p151 = scmp.eq.s32.totalorder %s11, 1
    %p152 = por %p150, %p151
    %p153 = scmp.ne.s32.totalorder %s145, %s148
    %p154 = scmp.eq.s32.totalorder %s11, 0
    %p155 = por %p153, %p154
    %p156 = scmp.ne.s32.totalorder %s145, %s148
    %p157 = scmp.eq.s32.totalorder %s16, 1
    %p158 = por %p156, %p157
    %p159 = scmp.ne.s32.totalorder %s148, %s149
    %p160 = scmp.eq.s32.totalorder %s16, 0
    %p161 = por %p159, %p160
    %p162 = scmp.ne.s32.totalorder %s148, %s149
    %p163 = scmp.eq.s32.totalorder %s17, 1
    %p164 = por %p162, %p163
    %p166 = scmp.ne.s32.totalorder %s149, %s165
    %p167 = scmp.eq.s32.totalorder %s17, 0
    %p168 = por %p166, %p167
    %p169 = scmp.le.s32.totalorder 1, %s11
    %p170 = scmp.lt.s32.totalorder %s11, 3
    %p171 = pnand %p169, %p170
    %p172 = pneg %p171
    // Predicated region
    $region9: #{down_conv_block_forward.5} parent=5 // pred_check
      _
    $region10: #{down_conv_block_forward.5} parent=5 // pred_check_branch
      %174 = sbr.rel (%p171) target = $region12
    $region11: #{down_conv_block_forward.5} parent=5 // pred_region
      %s175 = ssub.s32 %s11, 1
      // Predicated region
      $region13: #{down_conv_block_forward.5} parent=11 // pred_check
        %p176 = pneg %p44
      $region14: #{down_conv_block_forward.5} parent=11 // pred_check_branch
        %178 = sbr.rel (%p176) target = $region16
      $region15: #{down_conv_block_forward.5} parent=11 // pred_region
        _
      $region16: #{down_conv_block_forward.5} parent=11 // pred_fallthru
        _
      // Predicated region
      $region17: #{down_conv_block_forward.5} parent=11 // pred_check
        %p179 = pneg %p70
      $region18: #{down_conv_block_forward.5} parent=11 // pred_check_branch
        %181 = sbr.rel (%p179) target = $region20
      $region19: #{down_conv_block_forward.5} parent=11 // pred_region
        %s182 = smul.u32 4, %s21
        %p183 = scmp.lt.s32.totalorder %s182, 3
        %s184 = scalar_select %p183, %s182, 3
        %s185 = smul.addr %s184, 4
        %s186 = scalar_lea.vmem %s1, %s185
        %s187 = smul.u32 4, %s21
      $region20: #{down_conv_block_forward.5} parent=11 // pred_fallthru
        _
      // Predicated region
      $region21: #{down_conv_block_forward.5} parent=11 // pred_check
        %p188 = pneg %p91
      $region22: #{down_conv_block_forward.5} parent=11 // pred_check_branch
        %190 = sbr.rel (%p188) target = $region24
      $region23: #{down_conv_block_forward.5} parent=11 // pred_region
        _
      $region24: #{down_conv_block_forward.5} parent=11 // pred_fallthru
        _
      // Predicated region
      $region25: #{down_conv_block_forward.5} parent=11 // pred_check
        %p191 = pneg %p112
      $region26: #{down_conv_block_forward.5} parent=11 // pred_check_branch
        %193 = sbr.rel (%p191) target = $region28
      $region27: #{down_conv_block_forward.5} parent=11 // pred_region
        _
      $region28: #{down_conv_block_forward.5} parent=11 // pred_fallthru
        _
      // Predicated region
      $region29: #{down_conv_block_forward.5} parent=11 // pred_check
        %p194 = pneg %p133
      $region30: #{down_conv_block_forward.5} parent=11 // pred_check_branch
        %196 = sbr.rel (%p194) target = $region32
      $region31: #{down_conv_block_forward.5} parent=11 // pred_region
        _
      $region32: #{down_conv_block_forward.5} parent=11 // pred_fallthru
        _
    $region12: #{down_conv_block_forward.5} parent=5 // pred_fallthru
      _
    %p197 = scmp.lt.s32.totalorder %s11, 2
    // Predicated region
    $region33: #{down_conv_block_forward.5} parent=5 // pred_check
      %p198 = pneg %p197
    $region34: #{down_conv_block_forward.5} parent=5 // pred_check_branch
      %200 = sbr.rel (%p198) target = $region36
    $region35: #{down_conv_block_forward.5} parent=5 // pred_region
      _
    $region36: #{down_conv_block_forward.5} parent=5 // pred_fallthru
      _
    %p201 = scmp.le.s32.totalorder 1, %s11
    %p202 = scmp.lt.s32.totalorder %s11, 3
    %p203 = pnand %p201, %p202
    %p204 = pneg %p203
    // Predicated region
    $region37: #{down_conv_block_forward.5} parent=5 // pred_check
      _
    $region38: #{down_conv_block_forward.5} parent=5 // pred_check_branch
      %206 = sbr.rel (%p203) target = $region40
    $region39: #{down_conv_block_forward.5} parent=5 // pred_region
      %s207 = ssub.s32 %s11, 1
      %p208 = pneg %p44
      %p209 = pneg %p41
      %s210 = smul.u32 4, %s21
      %p211 = scmp.lt.s32.totalorder %s210, 3
      %s212 = scalar_select %p211, %s210, 3
      %s213 = smul.addr %s212, 4
      %s214 = scalar_lea.vmem %s1, %s213
      %p215 = pneg %p70
      %p216 = pneg %p67
      %p217 = pneg %p91
      %p218 = pneg %p88
      %p219 = pneg %p112
      %p220 = pneg %p109
      %p221 = pneg %p133
      %p222 = pneg %p130
      %p223 = pneg %p161
      %p224 = pneg %p158
      %s225 = smul.u32 %s20, %s21
      %s226 = smul.u32 4, %s225
      %p227 = scmp.lt.s32.totalorder %s226, 3
      %s228 = scalar_select %p227, %s226, 3
      %s229 = smul.addr %s228, 8
      %s230 = scalar_lea.vmem %s5, %s229
      %s231 = smul.u32 4, %s21
      %p232 = scmp.lt.s32.totalorder %s231, 3
      %s233 = scalar_select %p232, %s231, 3
      %s234 = smul.addr %s233, 4
      %s235 = scalar_lea.vmem %s1, %s234
      %s236 = smul.u32 4, %s21
      %s237 = smul.u32 %s20, %s21
      %s238 = smul.u32 4, %s237
      %p239 = scmp.lt.s32.totalorder %s238, 3
      %s240 = scalar_select %p239, %s238, 3
      %s241 = smul.addr %s240, 8
      %s242 = scalar_lea.vmem %s5, %s241
      %s243 = smul.u32 %s20, %s21
      %s244 = smul.u32 4, %s243
      %p248 = scmp.eq.s32.totalorder %s20, 0
      %p249 = scmp.eq.s32.totalorder %s21, 0
      %p250 = pnand %p248, %p249
      %p251 = pneg %p250
      // Predicated region
      $region41: #{down_conv_block_forward.5} parent=39 // pred_check
        _
      $region42: #{down_conv_block_forward.5} parent=39 // pred_check_branch
        %253 = sbr.rel (%p250) target = $region44
      $region43: #{down_conv_block_forward.5} parent=39 // pred_region
        %vm254 = vcmask 7168
        %255 = vst.msk [vmem:[#allocation3] sm:$0xff] %vm254, 0.0
        %256 = vst.msk [vmem:[#allocation4] sm:$0xff] %vm254, 0.0
      $region44: #{down_conv_block_forward.5} parent=39 // pred_fallthru
        _
      // Predicated region
      $region45: #{down_conv_block_forward.5} parent=39 // pred_check
        %p257 = pneg %p248
      $region46: #{down_conv_block_forward.5} parent=39 // pred_check_branch
        %259 = sbr.rel (%p257) target = $region48
      $region47: #{down_conv_block_forward.5} parent=39 // pred_region
        %v260 = vld [vmem:[%s235] sm:$0xff]
        %v261 = vld [vmem:[%s235 + $0x8] sm:$0xff]
        %v262 = vld [vmem:[%s0] sm:$0xf]
        %v263 = vand.u32 %v262, 1
        %vm264 = vcmp.ne.s32.totalorder %v263, 0
        %v265 = vand.u32 %v262, 2
        %vm266 = vcmp.ne.s32.totalorder %v265, 0
        %v267 = vand.u32 %v262, 4
        %vm268 = vcmp.ne.s32.totalorder %v267, 0
        %v269 = vand.u32 %v262, 8
        %vm270 = vcmp.ne.s32.totalorder %v269, 0
        %v273 = vunpack.c.l.b16 %v260
        %v274 = vunpack.c.h.b16 %v260
        %v275 = vunpack.c.l.b16 %v261
        %v276 = vunpack.c.h.b16 %v261
        %v277 = vpack.c.b16 %v273, %v273
        %v278 = vpack.c.b16 %v274, %v274
        %v279 = vpack.c.b16 %v275, %v275
        %v280 = vpack.c.b16 %v276, %v276
        %281 = vrot.lane.b32.xlu0 %v277, 127
        %v282 = vpop.permute.xlu0 %281
        %283 = vrot.lane.b32.xlu0 %v278, 127
        %v284 = vpop.permute.xlu0 %283
        %285 = vrot.lane.b32.xlu0 %v279, 127
        %v286 = vpop.permute.xlu0 %285
        %287 = vrot.lane.b32.xlu0 %v280, 127
        %v288 = vpop.permute.xlu0 %287
        %vm289 = vcmask 1039360
        %v290 = vsel %vm289, %v282, %v284
        %v291 = vsel %vm289, %v284, %v286
        %v292 = vsel %vm289, %v286, %v288
        %vm296 = vcmask 1039360
        %v299 = vsel %vm296, %v288, %v282
        %301 = vrot.lane.b32.xlu0 %v280, 1
        %v302 = vpop.permute.xlu0 %301
        %303 = vrot.lane.b32.xlu0 %v277, 1
        %v304 = vpop.permute.xlu0 %303
        %305 = vrot.lane.b32.xlu0 %v278, 1
        %v306 = vpop.permute.xlu0 %305
        %307 = vrot.lane.b32.xlu0 %v279, 1
        %v308 = vpop.permute.xlu0 %307
        %vm309 = vcmask 7168
        %v310 = vsel %vm309, %v304, %v306
        %v311 = vsel %vm309, %v306, %v308
        %v312 = vsel %vm309, %v308, %v302
        %vm316 = vcmask 7168
        %v319 = vsel %vm316, %v302, %v304
        %v321 = vsel %vm264, 1, 0
        %v322 = vperm.slane %v321, 0
        %v323 = vperm.slane %v321, 1
        %v324 = vperm.slane %v321, 2
        %v325 = vperm.slane %v321, 3
        %vm326 = vcmp.eq.s32.totalorder %v322, 1
        %vm327 = vcmp.eq.s32.totalorder %v323, 1
        %vm328 = vcmp.eq.s32.totalorder %v324, 1
        %vm329 = vcmp.eq.s32.totalorder %v325, 1
        %vm330 = vmpackc.low %vm327, %vm326
        %vm331 = vmpackc.low %vm329, %vm328
        %v332 = vsel %vm330, 65537, 0
        %v333 = vsel %vm331, 65537, 0
        %v334 = vperm.slane %v332, 0
        %v335 = vperm.slane %v332, 4
        %v336 = vperm.slane %v333, 0
        %v337 = vperm.slane %v333, 4
        %v338 = vunpack.c.l.b16 %v334
        %v339 = vunpack.c.h.b16 %v334
        %v340 = vunpack.c.l.b16 0
        %v341 = vunpack.c.h.b16 0
        %vm342 = vcmp.ne.s32.totalorder %v338, %v340
        %vm343 = vcmp.ne.s32.totalorder %v339, %v341
        %vm344 = vmpackc.low %vm343, %vm342
        %v345 = vunpack.c.l.b16 %v335
        %v346 = vunpack.c.h.b16 %v335
        %v347 = vunpack.c.l.b16 0
        %v348 = vunpack.c.h.b16 0
        %vm349 = vcmp.ne.s32.totalorder %v345, %v347
        %vm350 = vcmp.ne.s32.totalorder %v346, %v348
        %vm351 = vmpackc.low %vm350, %vm349
        %v352 = vunpack.c.l.b16 %v336
        %v353 = vunpack.c.h.b16 %v336
        %v354 = vunpack.c.l.b16 0
        %v355 = vunpack.c.h.b16 0
        %vm356 = vcmp.ne.s32.totalorder %v352, %v354
        %vm357 = vcmp.ne.s32.totalorder %v353, %v355
        %vm358 = vmpackc.low %vm357, %vm356
        %v359 = vunpack.c.l.b16 %v337
        %v360 = vunpack.c.h.b16 %v337
        %v361 = vunpack.c.l.b16 0
        %v362 = vunpack.c.h.b16 0
        %vm363 = vcmp.ne.s32.totalorder %v359, %v361
        %vm364 = vcmp.ne.s32.totalorder %v360, %v362
        %vm365 = vmpackc.low %vm364, %vm363
        %v366 = vsel %vm344, %v290, %v319
        %v367 = vsel %vm351, %v291, %v310
        %v368 = vsel %vm358, %v292, %v311
        %v369 = vsel %vm365, %v299, %v312
        %v370 = vsel %vm266, 1, 0
        %v371 = vperm.slane %v370, 0
        %v372 = vperm.slane %v370, 1
        %v373 = vperm.slane %v370, 2
        %v374 = vperm.slane %v370, 3
        %vm375 = vcmp.eq.s32.totalorder %v371, 1
        %vm376 = vcmp.eq.s32.totalorder %v372, 1
        %vm377 = vcmp.eq.s32.totalorder %v373, 1
        %vm378 = vcmp.eq.s32.totalorder %v374, 1
        %vm379 = vmpackc.low %vm376, %vm375
        %vm380 = vmpackc.low %vm378, %vm377
        %v381 = vsel %vm379, 65537, 0
        %v382 = vsel %vm380, 65537, 0
        %v383 = vperm.slane %v381, 0
        %v384 = vperm.slane %v381, 4
        %v385 = vperm.slane %v382, 0
        %v386 = vperm.slane %v382, 4
        %v387 = vunpack.c.l.b16 %v383
        %v388 = vunpack.c.h.b16 %v383
        %v389 = vunpack.c.l.b16 0
        %v390 = vunpack.c.h.b16 0
        %vm391 = vcmp.ne.s32.totalorder %v387, %v389
        %vm392 = vcmp.ne.s32.totalorder %v388, %v390
        %vm393 = vmpackc.low %vm392, %vm391
        %v394 = vunpack.c.l.b16 %v384
        %v395 = vunpack.c.h.b16 %v384
        %v396 = vunpack.c.l.b16 0
        %v397 = vunpack.c.h.b16 0
        %vm398 = vcmp.ne.s32.totalorder %v394, %v396
        %vm399 = vcmp.ne.s32.totalorder %v395, %v397
        %vm400 = vmpackc.low %vm399, %vm398
        %v401 = vunpack.c.l.b16 %v385
        %v402 = vunpack.c.h.b16 %v385
        %v403 = vunpack.c.l.b16 0
        %v404 = vunpack.c.h.b16 0
        %vm405 = vcmp.ne.s32.totalorder %v401, %v403
        %vm406 = vcmp.ne.s32.totalorder %v402, %v404
        %vm407 = vmpackc.low %vm406, %vm405
        %v408 = vunpack.c.l.b16 %v386
        %v409 = vunpack.c.h.b16 %v386
        %v410 = vunpack.c.l.b16 0
        %v411 = vunpack.c.h.b16 0
        %vm412 = vcmp.ne.s32.totalorder %v408, %v410
        %vm413 = vcmp.ne.s32.totalorder %v409, %v411
        %vm414 = vmpackc.low %vm413, %vm412
        %v415 = vsel %vm393, %v319, %v290
        %v416 = vsel %vm400, %v310, %v291
        %v417 = vsel %vm407, %v311, %v292
        %v418 = vsel %vm414, %v312, %v299
        %423 = vrot.lane.b32.xlu0 %v366, 112
        %v424 = vpop.permute.xlu0 %423
        %425 = vrot.lane.b32.xlu0 %v367, 112
        %v426 = vpop.permute.xlu0 %425
        %427 = vrot.lane.b32.xlu0 %v368, 112
        %v428 = vpop.permute.xlu0 %427
        %429 = vrot.lane.b32.xlu0 %v369, 112
        %v430 = vpop.permute.xlu0 %429
        %vm431 = vcmask 916480
        %v432 = vsel %vm431, %v424, %v426
        %v433 = vsel %vm431, %v426, %v428
        %v434 = vsel %vm431, %v428, %v430
        %vm438 = vcmask 916480
        %v441 = vsel %vm438, %v430, %v424
        %443 = vrot.lane.b32.xlu0 %v369, 16
        %v444 = vpop.permute.xlu0 %443
        %445 = vrot.lane.b32.xlu0 %v366, 16
        %v446 = vpop.permute.xlu0 %445
        %447 = vrot.lane.b32.xlu0 %v367, 16
        %v448 = vpop.permute.xlu0 %447
        %449 = vrot.lane.b32.xlu0 %v368, 16
        %v450 = vpop.permute.xlu0 %449
        %vm451 = vcmask 130048
        %v452 = vsel %vm451, %v446, %v448
        %v453 = vsel %vm451, %v448, %v450
        %v454 = vsel %vm451, %v450, %v444
        %vm458 = vcmask 130048
        %v461 = vsel %vm458, %v444, %v446
        %v463 = vsel %vm268, 1, 0
        %v464 = vperm.slane %v463, 0
        %v465 = vperm.slane %v463, 1
        %v466 = vperm.slane %v463, 2
        %v467 = vperm.slane %v463, 3
        %vm468 = vcmp.eq.s32.totalorder %v464, 1
        %vm469 = vcmp.eq.s32.totalorder %v465, 1
        %vm470 = vcmp.eq.s32.totalorder %v466, 1
        %vm471 = vcmp.eq.s32.totalorder %v467, 1
        %vm472 = vmpackc.low %vm469, %vm468
        %vm473 = vmpackc.low %vm471, %vm470
        %v474 = vsel %vm472, 65537, 0
        %v475 = vsel %vm473, 65537, 0
        %v476 = vperm.slane %v474, 0
        %v477 = vperm.slane %v474, 4
        %v478 = vperm.slane %v475, 0
        %v479 = vperm.slane %v475, 4
        %v480 = vunpack.c.l.b16 %v476
        %v481 = vunpack.c.h.b16 %v476
        %v482 = vunpack.c.l.b16 0
        %v483 = vunpack.c.h.b16 0
        %vm484 = vcmp.ne.s32.totalorder %v480, %v482
        %vm485 = vcmp.ne.s32.totalorder %v481, %v483
        %vm486 = vmpackc.low %vm485, %vm484
        %v487 = vunpack.c.l.b16 %v477
        %v488 = vunpack.c.h.b16 %v477
        %v489 = vunpack.c.l.b16 0
        %v490 = vunpack.c.h.b16 0
        %vm491 = vcmp.ne.s32.totalorder %v487, %v489
        %vm492 = vcmp.ne.s32.totalorder %v488, %v490
        %vm493 = vmpackc.low %vm492, %vm491
        %v494 = vunpack.c.l.b16 %v478
        %v495 = vunpack.c.h.b16 %v478
        %v496 = vunpack.c.l.b16 0
        %v497 = vunpack.c.h.b16 0
        %vm498 = vcmp.ne.s32.totalorder %v494, %v496
        %vm499 = vcmp.ne.s32.totalorder %v495, %v497
        %vm500 = vmpackc.low %vm499, %vm498
        %v501 = vunpack.c.l.b16 %v479
        %v502 = vunpack.c.h.b16 %v479
        %v503 = vunpack.c.l.b16 0
        %v504 = vunpack.c.h.b16 0
        %vm505 = vcmp.ne.s32.totalorder %v501, %v503
        %vm506 = vcmp.ne.s32.totalorder %v502, %v504
        %vm507 = vmpackc.low %vm506, %vm505
        %v508 = vsel %vm486, %v432, %v461
        %v509 = vsel %vm493, %v433, %v452
        %v510 = vsel %vm500, %v434, %v453
        %v511 = vsel %vm507, %v441, %v454
        %v512 = vsel %vm270, 1, 0
        %v513 = vperm.slane %v512, 0
        %v514 = vperm.slane %v512, 1
        %v515 = vperm.slane %v512, 2
        %v516 = vperm.slane %v512, 3
        %vm517 = vcmp.eq.s32.totalorder %v513, 1
        %vm518 = vcmp.eq.s32.totalorder %v514, 1
        %vm519 = vcmp.eq.s32.totalorder %v515, 1
        %vm520 = vcmp.eq.s32.totalorder %v516, 1
        %vm521 = vmpackc.low %vm518, %vm517
        %vm522 = vmpackc.low %vm520, %vm519
        %v523 = vsel %vm521, 65537, 0
        %v524 = vsel %vm522, 65537, 0
        %v525 = vperm.slane %v523, 0
        %v526 = vperm.slane %v523, 4
        %v527 = vperm.slane %v524, 0
        %v528 = vperm.slane %v524, 4
        %v529 = vunpack.c.l.b16 %v525
        %v530 = vunpack.c.h.b16 %v525
        %v531 = vunpack.c.l.b16 0
        %v532 = vunpack.c.h.b16 0
        %vm533 = vcmp.ne.s32.totalorder %v529, %v531
        %vm534 = vcmp.ne.s32.totalorder %v530, %v532
        %vm535 = vmpackc.low %vm534, %vm533
        %v536 = vunpack.c.l.b16 %v526
        %v537 = vunpack.c.h.b16 %v526
        %v538 = vunpack.c.l.b16 0
        %v539 = vunpack.c.h.b16 0
        %vm540 = vcmp.ne.s32.totalorder %v536, %v538
        %vm541 = vcmp.ne.s32.totalorder %v537, %v539
        %vm542 = vmpackc.low %vm541, %vm540
        %v543 = vunpack.c.l.b16 %v527
        %v544 = vunpack.c.h.b16 %v527
        %v545 = vunpack.c.l.b16 0
        %v546 = vunpack.c.h.b16 0
        %vm547 = vcmp.ne.s32.totalorder %v543, %v545
        %vm548 = vcmp.ne.s32.totalorder %v544, %v546
        %vm549 = vmpackc.low %vm548, %vm547
        %v550 = vunpack.c.l.b16 %v528
        %v551 = vunpack.c.h.b16 %v528
        %v552 = vunpack.c.l.b16 0
        %v553 = vunpack.c.h.b16 0
        %vm554 = vcmp.ne.s32.totalorder %v550, %v552
        %vm555 = vcmp.ne.s32.totalorder %v551, %v553
        %vm556 = vmpackc.low %vm555, %vm554
        %v557 = vsel %vm535, %v461, %v432
        %v558 = vsel %vm542, %v452, %v433
        %v559 = vsel %vm549, %v453, %v434
        %v560 = vsel %vm556, %v454, %v441
        %561 = vrot.lane.b32.xlu0 %v277, 112
        %v562 = vpop.permute.xlu0 %561
        %563 = vrot.lane.b32.xlu0 %v278, 112
        %v564 = vpop.permute.xlu0 %563
        %565 = vrot.lane.b32.xlu0 %v279, 112
        %v566 = vpop.permute.xlu0 %565
        %567 = vrot.lane.b32.xlu0 %v280, 112
        %v568 = vpop.permute.xlu0 %567
        %v569 = vsel %vm431, %v562, %v564
        %v570 = vsel %vm431, %v564, %v566
        %v571 = vsel %vm431, %v566, %v568
        %v577 = vsel %vm438, %v568, %v562
        %579 = vrot.lane.b32.xlu0 %v280, 16
        %v580 = vpop.permute.xlu0 %579
        %581 = vrot.lane.b32.xlu0 %v277, 16
        %v582 = vpop.permute.xlu0 %581
        %583 = vrot.lane.b32.xlu0 %v278, 16
        %v584 = vpop.permute.xlu0 %583
        %585 = vrot.lane.b32.xlu0 %v279, 16
        %v586 = vpop.permute.xlu0 %585
        %v587 = vsel %vm451, %v582, %v584
        %v588 = vsel %vm451, %v584, %v586
        %v589 = vsel %vm451, %v586, %v580
        %v595 = vsel %vm458, %v580, %v582
        %v597 = vsel %vm486, %v569, %v595
        %v598 = vsel %vm493, %v570, %v587
        %v599 = vsel %vm500, %v571, %v588
        %v600 = vsel %vm507, %v577, %v589
        %v601 = vsel %vm535, %v595, %v569
        %v602 = vsel %vm542, %v587, %v570
        %v603 = vsel %vm549, %v588, %v571
        %v604 = vsel %vm556, %v589, %v577
        %609 = vrot.lane.b32.xlu0 %v415, 112
        %v610 = vpop.permute.xlu0 %609
        %611 = vrot.lane.b32.xlu0 %v416, 112
        %v612 = vpop.permute.xlu0 %611
        %613 = vrot.lane.b32.xlu0 %v417, 112
        %v614 = vpop.permute.xlu0 %613
        %615 = vrot.lane.b32.xlu0 %v418, 112
        %v616 = vpop.permute.xlu0 %615
        %v617 = vsel %vm431, %v610, %v612
        %v618 = vsel %vm431, %v612, %v614
        %v619 = vsel %vm431, %v614, %v616
        %v625 = vsel %vm438, %v616, %v610
        %627 = vrot.lane.b32.xlu0 %v418, 16
        %v628 = vpop.permute.xlu0 %627
        %629 = vrot.lane.b32.xlu0 %v415, 16
        %v630 = vpop.permute.xlu0 %629
        %631 = vrot.lane.b32.xlu0 %v416, 16
        %v632 = vpop.permute.xlu0 %631
        %633 = vrot.lane.b32.xlu0 %v417, 16
        %v634 = vpop.permute.xlu0 %633
        %v635 = vsel %vm451, %v630, %v632
        %v636 = vsel %vm451, %v632, %v634
        %v637 = vsel %vm451, %v634, %v628
        %v643 = vsel %vm458, %v628, %v630
        %v645 = vsel %vm486, %v617, %v643
        %v646 = vsel %vm493, %v618, %v635
        %v647 = vsel %vm500, %v619, %v636
        %v648 = vsel %vm507, %v625, %v637
        %v649 = vsel %vm535, %v643, %v617
        %v650 = vsel %vm542, %v635, %v618
        %v651 = vsel %vm549, %v636, %v619
        %v652 = vsel %vm556, %v637, %v625
        %v657 = vrot.slane %v597, 4
        %v658 = vrot.slane %v598, 4
        %v659 = vrot.slane %v599, 4
        %v660 = vrot.slane %v600, 4
        %v661 = vrot.slane %v366, 4
        %v662 = vrot.slane %v367, 4
        %v663 = vrot.slane %v368, 4
        %v664 = vrot.slane %v369, 4
        %v665 = vrot.slane %v415, 4
        %v666 = vrot.slane %v416, 4
        %v667 = vrot.slane %v417, 4
        %v668 = vrot.slane %v418, 4
        %v673 = vrot.slane %v601, 4
        %v674 = vrot.slane %v602, 4
        %v675 = vrot.slane %v603, 4
        %v676 = vrot.slane %v604, 4
        %vm677 = vcmask 1043456
        %v680 = vsel %vm677, %v508, %v657
        %v684 = vsel %vm677, %v509, %v658
        %v688 = vsel %vm677, %v510, %v659
        %v692 = vsel %vm677, %v511, %v660
        %v696 = vsel %vm677, %v645, %v661
        %v700 = vsel %vm677, %v646, %v662
        %v704 = vsel %vm677, %v647, %v663
        %v708 = vsel %vm677, %v648, %v664
        %v712 = vsel %vm677, %v277, %v665
        %v716 = vsel %vm677, %v278, %v666
        %v720 = vsel %vm677, %v279, %v667
        %v724 = vsel %vm677, %v280, %v668
        %v728 = vsel %vm677, %v557, %v673
        %v732 = vsel %vm677, %v558, %v674
        %v736 = vsel %vm677, %v559, %v675
        %v740 = vsel %vm677, %v560, %v676
        %v742 = vld [vmem:[%s2] sm:$0xf]
        %vm743 = vcmask 588800
        %v745 = vsel %vm743, %v742, 0
        %v748 = vsel %vm677, %v649, 0
        %v751 = vsel %vm677, %v650, 0
        %v754 = vsel %vm677, %v651, 0
        %v757 = vsel %vm677, %v652, 0
        %759 = vmatpush.bf16.msra.mxu0 0
        %760 = vmatpush.bf16.msra.mxu0 0
        %761 = vmatpush.bf16.msra.mxu0 0
        %762 = vmatpush.bf16.msra.mxu0 %v748
        %763 = vmatpush.bf16.msra.mxu0 %v728
        %764 = vmatpush.bf16.msra.mxu0 %v712
        %765 = vmatpush.bf16.msra.mxu0 %v696
        %766 = vmatpush.bf16.msra.mxu0 %v680
        %767 = vmatmul.bf16.gmra.mxu0 %v745
        %v768 = vpop.f32.mrf.mxu0
        %v769 = vadd.f32 0.0, %v768
        %v770 = vpop.f32.mrf.mxu0
        %771 = vdwg.mxu0
        %772 = vmatpush.bf16.msra.mxu0 0
        %773 = vmatpush.bf16.msra.mxu0 0
        %774 = vmatpush.bf16.msra.mxu0 0
        %775 = vmatpush.bf16.msra.mxu0 %v751
        %776 = vmatpush.bf16.msra.mxu0 %v732
        %777 = vmatpush.bf16.msra.mxu0 %v716
        %778 = vmatpush.bf16.msra.mxu0 %v700
        %779 = vmatpush.bf16.msra.mxu0 %v684
        %780 = vmatmul.bf16.gmra.mxu0 %v745
        %v781 = vpop.f32.mrf.mxu0
        %v782 = vadd.f32 0.0, %v781
        %v783 = vpop.f32.mrf.mxu0
        %784 = vdwg.mxu0
        %785 = vmatpush.bf16.msra.mxu0 0
        %786 = vmatpush.bf16.msra.mxu0 0
        %787 = vmatpush.bf16.msra.mxu0 0
        %788 = vmatpush.bf16.msra.mxu0 %v754
        %789 = vmatpush.bf16.msra.mxu0 %v736
        %790 = vmatpush.bf16.msra.mxu0 %v720
        %791 = vmatpush.bf16.msra.mxu0 %v704
        %792 = vmatpush.bf16.msra.mxu0 %v688
        %793 = vmatmul.bf16.gmra.mxu0 %v745
        %v794 = vpop.f32.mrf.mxu0
        %v795 = vadd.f32 0.0, %v794
        %v796 = vpop.f32.mrf.mxu0
        %797 = vdwg.mxu0
        %798 = vmatpush.bf16.msra.mxu0 0
        %799 = vmatpush.bf16.msra.mxu0 0
        %800 = vmatpush.bf16.msra.mxu0 0
        %801 = vmatpush.bf16.msra.mxu0 %v757
        %802 = vmatpush.bf16.msra.mxu0 %v740
        %803 = vmatpush.bf16.msra.mxu0 %v724
        %804 = vmatpush.bf16.msra.mxu0 %v708
        %805 = vmatpush.bf16.msra.mxu0 %v692
        %806 = vmatmul.bf16.gmra.mxu0 %v745
        %v807 = vpop.f32.mrf.mxu0
        %v808 = vadd.f32 0.0, %v807
        %v809 = vpop.f32.mrf.mxu0
        %810 = vdwg.mxu0
        %v811 = vld [vmem:[#allocation3] sm:$0xff]
        %v812 = vadd.f32 %v769, %v782
        %v813 = vadd.f32 %v812, %v795
        %v814 = vadd.f32 %v813, %v808
        %815 = vadd.xlane.f32.xlu0 %v814
        %v816 = vpop.xlane.xlu0 %815
        %v817 = vadd.f32 %v811, %v816
        %818 = vst.msk [vmem:[#allocation3] sm:$0xff] %vm316, %v817
        %v819 = vld [vmem:[#allocation4] sm:$0xff]
        %v820 = vmul.f32 %v769, %v769
        %v821 = vmul.f32 %v782, %v782
        %v822 = vmul.f32 %v795, %v795
        %v823 = vmul.f32 %v808, %v808
        %v824 = vadd.f32 %v820, %v821
        %v825 = vadd.f32 %v824, %v822
        %v826 = vadd.f32 %v825, %v823
        %827 = vadd.xlane.f32.xlu0 %v826
        %v828 = vpop.xlane.xlu0 %827
        %v829 = vadd.f32 %v819, %v828
        %830 = vst.msk [vmem:[#allocation4] sm:$0xff] %vm316, %v829
        %v831 = vpack.c.bf16 %v782, %v769
        %v832 = vpack.c.bf16 %v808, %v795
        %s833 = smul.u32 %s21, 4
        %s834 = smul.addr %s833, 4
        %s835 = scalar_lea.vmem [#allocation2], %s834
        %836 = vst [vmem:[%s835] sm:$0xff] %v831
        %837 = vst [vmem:[%s835 + $0x8] sm:$0xff] %v832
      $region48: #{down_conv_block_forward.5} parent=39 // pred_fallthru
        _
      %p838 = scmp.eq.s32.totalorder %s20, 1
      // Predicated region
      $region49: #{down_conv_block_forward.5} parent=39 // pred_check
        %p839 = pneg %p838
      $region50: #{down_conv_block_forward.5} parent=39 // pred_check_branch
        %841 = sbr.rel (%p839) target = $region52
      $region51: #{down_conv_block_forward.5} parent=39 // pred_region
        %s842 = smul.u32 %s21, 4
        %s843 = smul.addr %s842, 4
        %s844 = scalar_lea.vmem [#allocation2], %s843
        %v845 = vld [vmem:[%s844] sm:$0xff]
        %v846 = vld [vmem:[%s844 + $0x8] sm:$0xff]
        %v847 = vunpack.c.l.bf16 %v845
        %v848 = vunpack.c.h.bf16 %v845
        %v849 = vunpack.c.l.bf16 %v846
        %v850 = vunpack.c.h.bf16 %v846
        %v851 = vld [vmem:[#allocation3] sm:$0xff]
        %v852 = vmul.f32 %v851, 0.001953125
        %v853 = vld [vmem:[#allocation4] sm:$0xff]
        %v854 = vmul.f32 %v853, 0.001953125
        %v855 = vmul.f32 %v852, %v852
        %v856 = vsub.f32 %v854, %v855
        %v857 = vmax.f32 %v856, 0.0
        %v858 = vld [vmem:[%s3] sm:$0xff]
        %v859 = vadd.f32 %v857, 1e-05
        %v860 = vrsqrt.pop %v859
        %v861 = vmul.f32 %v860, %v859
        %v862 = vmul.f32 %v861, %v860
        %v863 = vmul.f32 0.5, %v862
        %v864 = vsub.f32 1.5, %v863
        %v865 = vmul.f32 %v860, %v864
        %vm866 = vweird.f32 %v859
        %vm867 = vweird.f32 %v860
        %vm868 = vmor %vm866, %vm867
        %v869 = vsel %vm868, %v860, %v865
        %v870 = vmul.f32 %v858, %v869
        %v871 = vld [vmem:[%s4] sm:$0xff]
        %v872 = vmul.f32 %v852, %v870
        %v873 = vsub.f32 %v871, %v872
        %875 = vset.pattern.permute.xlu0 0
        %876 = vperm.xlu0 %875, %v870
        %v877 = vpop.permute.xlu0 %876
        %v879 = vmul.f32 %v847, %v877
        %v880 = vmul.f32 %v848, %v877
        %v881 = vmul.f32 %v849, %v877
        %v882 = vmul.f32 %v850, %v877
        %884 = vset.pattern.permute.xlu0 0
        %885 = vperm.xlu0 %884, %v873
        %v886 = vpop.permute.xlu0 %885
        %v888 = vadd.f32 %v879, %v886
        %v889 = vadd.f32 %v880, %v886
        %v890 = vadd.f32 %v881, %v886
        %v891 = vadd.f32 %v882, %v886
        %v892 = vmax.f32 %v888, 0.0
        %v893 = vmax.f32 %v889, 0.0
        %v894 = vmax.f32 %v890, 0.0
        %v895 = vmax.f32 %v891, 0.0
        %v896 = vld [vmem:[%s235] sm:$0xff]
        %v897 = vld [vmem:[%s235 + $0x8] sm:$0xff]
        %v898 = vunpack.c.l.bf16 %v896
        %v899 = vunpack.c.h.bf16 %v896
        %v900 = vunpack.c.l.bf16 %v897
        %v901 = vunpack.c.h.bf16 %v897
        %v902 = vadd.f32 %v892, %v898
        %v903 = vadd.f32 %v893, %v899
        %v904 = vadd.f32 %v894, %v900
        %v905 = vadd.f32 %v895, %v901
        %906 = vst [vmem:[%s242] sm:$0xff] %v902
        %907 = vst [vmem:[%s242 + $0x8] sm:$0xff] %v903
        %908 = vst [vmem:[%s242 + $0x10] sm:$0xff] %v904
        %909 = vst [vmem:[%s242 + $0x18] sm:$0xff] %v905
      $region52: #{down_conv_block_forward.5} parent=39 // pred_fallthru
        _
      %s910 = smul.u32 %s20, %s21
      %s911 = smul.u32 4, %s910
      %p912 = scmp.lt.s32.totalorder %s911, 3
      %s913 = scalar_select %p912, %s911, 3
      %s914 = smul.addr %s913, 8
      %s915 = scalar_lea.vmem %s5, %s914
      // Predicated region
      $region53: #{down_conv_block_forward.5} parent=39 // pred_check
        %p916 = pneg %p158
      $region54: #{down_conv_block_forward.5} parent=39 // pred_check_branch
        %918 = sbr.rel (%p916) target = $region56
      $region55: #{down_conv_block_forward.5} parent=39 // pred_region
        %s919 = smul.u32 %s20, %s21
        %s920 = smul.u32 4, %s919
      $region56: #{down_conv_block_forward.5} parent=39 // pred_fallthru
        _
    $region40: #{down_conv_block_forward.5} parent=5 // pred_fallthru
      _
    %p921 = scmp.le.s32.totalorder 2, %s11
    // Predicated region
    $region57: #{down_conv_block_forward.5} parent=5 // pred_check
      %p922 = pneg %p921
    $region58: #{down_conv_block_forward.5} parent=5 // pred_check_branch
      %924 = sbr.rel (%p922) target = $region60
    $region59: #{down_conv_block_forward.5} parent=5 // pred_region
      %s925 = ssub.s32 %s11, 2
      // Predicated region
      $region61: #{down_conv_block_forward.5} parent=59 // pred_check
        %p926 = pneg %p164
      $region62: #{down_conv_block_forward.5} parent=59 // pred_check_branch
        %928 = sbr.rel (%p926) target = $region64
      $region63: #{down_conv_block_forward.5} parent=59 // pred_region
        %s929 = smul.u32 %s22, %s23
        %s930 = smul.u32 4, %s929
        %p931 = scmp.lt.s32.totalorder %s930, 3
        %s932 = scalar_select %p931, %s930, 3
        %s933 = smul.addr %s932, 8
        %s934 = scalar_lea.vmem %s5, %s933
      $region64: #{down_conv_block_forward.5} parent=59 // pred_fallthru
        _
    $region60: #{down_conv_block_forward.5} parent=5 // pred_fallthru
      _
  $region6: #{down_conv_block_forward.5} parent=0 // loop_footer
    %s15 = sadd.s32 1, %s11
  $region7: #{down_conv_block_forward.5} parent=0 // loop_footer_branch
    %10 = sbr.rel target = $region3
  $region8: #{down_conv_block_forward.5} parent=0 // loop_exit
    _

// kernel: down_conv_block_forward.3
$region0: #{down_conv_block_forward.3}
  #allocation0 [shape = 'u32[]', space=smem, size = 0x4, offset = 0x4, fixed_abs, tag = 'smem constant byte address 0x4 - core index']
  #allocation1 [shape = 'u32[72,128]{1,0:T(1,128)}', space=vmem, size = 0x9000, scoped, tag = 'internal scratch']
  #allocation2 [shape = 'bf16[1,8,512]{2,1,0:T(8,128)(2,1)}', space=vmem, size = 0x2000, scoped, tag = 'scratch operand']
  #allocation3 [shape = 'f32[8,1]{1,0:T(8,128)}', space=vmem, size = 0x1000, scoped, tag = 'scratch operand']
  #allocation4 [shape = 'f32[8,1]{1,0:T(8,128)}', space=vmem, size = 0x1000, scoped, tag = 'scratch operand']
  %s0 = inlined_call_operand.vmem [shape: s32[1,512], index: 0, kind: input, shape index: {}]
  %s1 = inlined_call_operand.vmem [shape: f32[8,512], index: 1, kind: input, shape index: {}]
  %s2 = inlined_call_operand.vmem [shape: bf16[8,72], index: 2, kind: input, shape index: {}]
  %s3 = inlined_call_operand.vmem [shape: f32[8,1], index: 3, kind: input, shape index: {}]
  %s4 = inlined_call_operand.vmem [shape: f32[8,1], index: 4, kind: input, shape index: {}]
  %s5 = inlined_call_operand.vmem [shape: bf16[8,512], index: 5, kind: output, shape index: {}]
  %s6 = sld [smem:[#allocation0]]
  $region65: #{down_conv_block_forward.3} parent=0
    _
  %s8 = ssub.s32 1, %s6
  %s9 = scalar_select 0, %s8, %s6
  loop: start=0, step=1, limit=4
  $region2: #{down_conv_block_forward.3} parent=0 // loop_pre_header
    _
  $region3: #{down_conv_block_forward.3} parent=0 // loop_header
    %s11 = sphi 0, %s15
    %p12 = scmp.ge.s32.totalorder %s11, 4
    %s18 = sphi 0, %s30
    %s19 = sphi 0, %s26
    %s20 = sphi 0, %s18
    %s21 = sphi 0, %s19
    %s22 = sphi 0, %s20
    %s23 = sphi 0, %s21
    %s31 = sphi 0, %s31
    %s33 = sphi 0, %s31
    %s34 = sphi 0, %s33
    %s48 = sphi 0, %s34
    %s58 = sphi 0, %s60
    %s61 = sphi 0, %s58
    %s62 = sphi 0, %s61
    %s78 = sphi 0, %s62
    %s82 = sphi 0, %s82
    %s84 = sphi 0, %s82
    %s85 = sphi 0, %s84
    %s99 = sphi 0, %s85
    %s103 = sphi 0, %s103
    %s105 = sphi 0, %s103
    %s106 = sphi 0, %s105
    %s120 = sphi 0, %s106
    %s124 = sphi 0, %s124
    %s126 = sphi 0, %s124
    %s127 = sphi 0, %s126
    %s141 = sphi 0, %s127
    %s149 = sphi 0, %s151
    %s152 = sphi 0, %s149
    %s153 = sphi 0, %s152
    %s169 = sphi 0, %s153
  $region4: #{down_conv_block_forward.3} parent=0 // loop_header_branch
    %14 = sbr.rel (%p12) target = $region8
  $region5: #{down_conv_block_forward.3} parent=0 // loop_body
    %s16 = ssub.s32 %s11, 1
    %s17 = ssub.s32 %s11, 2
    %s24 = sadd.s32 1, %s19
    %p25 = scmp.ge.s32.totalorder %s24, 1
    %s26 = scalar_select %p25, 0, %s24
    %s27 = sadd.s32 1, %s18
    %s28 = scalar_select %p25, %s27, %s18
    %p29 = scmp.ge.s32.totalorder %s28, 2
    %s30 = scalar_select %p29, 0, %s28
    %s32 = sadd.s32 %s31, 1
    %p35 = scmp.eq.s32.totalorder %s11, 1
    %p36 = scmp.ne.s32.totalorder %s31, %s33
    %p37 = scmp.eq.s32.totalorder %s11, 0
    %p38 = por %p36, %p37
    %p39 = scmp.ne.s32.totalorder %s31, %s33
    %p40 = scmp.eq.s32.totalorder %s16, 1
    %p41 = por %p39, %p40
    %p42 = scmp.ne.s32.totalorder %s33, %s34
    %p43 = scmp.eq.s32.totalorder %s16, 0
    %p44 = por %p42, %p43
    %p45 = scmp.ne.s32.totalorder %s33, %s34
    %p46 = scmp.eq.s32.totalorder %s17, 1
    %p47 = por %p45, %p46
    %p49 = scmp.ne.s32.totalorder %s34, %s48
    %p50 = scmp.eq.s32.totalorder %s17, 0
    %p51 = por %p49, %p50
    %s52 = ssub.s32 1, %s18
    %s53 = smul.u32 %s52, %s19
    %s54 = ssub.s32 1, %s30
    %s55 = smul.u32 %s54, %s26
    %s56 = ssub.s32 %s53, %s55
    %p57 = scmp.eq.s32.totalorder %s56, 0
    %s59 = sadd.s32 %s58, 1
    %s60 = scalar_select %p57, %s58, %s59
    %p63 = pneg %p57
    %p64 = scmp.eq.s32.totalorder %s11, 1
    %p65 = por %p63, %p64
    %p66 = scmp.ne.s32.totalorder %s58, %s61
    %p67 = scmp.eq.s32.totalorder %s11, 0
    %p68 = por %p66, %p67
    %p69 = scmp.ne.s32.totalorder %s58, %s61
    %p70 = scmp.eq.s32.totalorder %s16, 1
    %p71 = por %p69, %p70
    %p72 = scmp.ne.s32.totalorder %s61, %s62
    %p73 = scmp.eq.s32.totalorder %s16, 0
    %p74 = por %p72, %p73
    %p75 = scmp.ne.s32.totalorder %s61, %s62
    %p76 = scmp.eq.s32.totalorder %s17, 1
    %p77 = por %p75, %p76
    %p79 = scmp.ne.s32.totalorder %s62, %s78
    %p80 = scmp.eq.s32.totalorder %s17, 0
    %p81 = por %p79, %p80
    %s83 = sadd.s32 %s82, 1
    %p86 = scmp.eq.s32.totalorder %s11, 1
    %p87 = scmp.ne.s32.totalorder %s82, %s84
    %p88 = scmp.eq.s32.totalorder %s11, 0
    %p89 = por %p87, %p88
    %p90 = scmp.ne.s32.totalorder %s82, %s84
    %p91 = scmp.eq.s32.totalorder %s16, 1
    %p92 = por %p90, %p91
    %p93 = scmp.ne.s32.totalorder %s84, %s85
    %p94 = scmp.eq.s32.totalorder %s16, 0
    %p95 = por %p93, %p94
    %p96 = scmp.ne.s32.totalorder %s84, %s85
    %p97 = scmp.eq.s32.totalorder %s17, 1
    %p98 = por %p96, %p97
    %p100 = scmp.ne.s32.totalorder %s85, %s99
    %p101 = scmp.eq.s32.totalorder %s17, 0
    %p102 = por %p100, %p101
    %s104 = sadd.s32 %s103, 1
    %p107 = scmp.eq.s32.totalorder %s11, 1
    %p108 = scmp.ne.s32.totalorder %s103, %s105
    %p109 = scmp.eq.s32.totalorder %s11, 0
    %p110 = por %p108, %p109
    %p111 = scmp.ne.s32.totalorder %s103, %s105
    %p112 = scmp.eq.s32.totalorder %s16, 1
    %p113 = por %p111, %p112
    %p114 = scmp.ne.s32.totalorder %s105, %s106
    %p115 = scmp.eq.s32.totalorder %s16, 0
    %p116 = por %p114, %p115
    %p117 = scmp.ne.s32.totalorder %s105, %s106
    %p118 = scmp.eq.s32.totalorder %s17, 1
    %p119 = por %p117, %p118
    %p121 = scmp.ne.s32.totalorder %s106, %s120
    %p122 = scmp.eq.s32.totalorder %s17, 0
    %p123 = por %p121, %p122
    %s125 = sadd.s32 %s124, 1
    %p128 = scmp.eq.s32.totalorder %s11, 1
    %p129 = scmp.ne.s32.totalorder %s124, %s126
    %p130 = scmp.eq.s32.totalorder %s11, 0
    %p131 = por %p129, %p130
    %p132 = scmp.ne.s32.totalorder %s124, %s126
    %p133 = scmp.eq.s32.totalorder %s16, 1
    %p134 = por %p132, %p133
    %p135 = scmp.ne.s32.totalorder %s126, %s127
    %p136 = scmp.eq.s32.totalorder %s16, 0
    %p137 = por %p135, %p136
    %p138 = scmp.ne.s32.totalorder %s126, %s127
    %p139 = scmp.eq.s32.totalorder %s17, 1
    %p140 = por %p138, %p139
    %p142 = scmp.ne.s32.totalorder %s127, %s141
    %p143 = scmp.eq.s32.totalorder %s17, 0
    %p144 = por %p142, %p143
    %s145 = smul.u32 %s18, %s19
    %s146 = smul.u32 %s30, %s26
    %s147 = ssub.s32 %s145, %s146
    %p148 = scmp.eq.s32.totalorder %s147, 0
    %s150 = sadd.s32 %s149, 1
    %s151 = scalar_select %p148, %s149, %s150
    %p154 = pneg %p148
    %p155 = scmp.eq.s32.totalorder %s11, 1
    %p156 = por %p154, %p155
    %p157 = scmp.ne.s32.totalorder %s149, %s152
    %p158 = scmp.eq.s32.totalorder %s11, 0
    %p159 = por %p157, %p158
    %p160 = scmp.ne.s32.totalorder %s149, %s152
    %p161 = scmp.eq.s32.totalorder %s16, 1
    %p162 = por %p160, %p161
    %p163 = scmp.ne.s32.totalorder %s152, %s153
    %p164 = scmp.eq.s32.totalorder %s16, 0
    %p165 = por %p163, %p164
    %p166 = scmp.ne.s32.totalorder %s152, %s153
    %p167 = scmp.eq.s32.totalorder %s17, 1
    %p168 = por %p166, %p167
    %p170 = scmp.ne.s32.totalorder %s153, %s169
    %p171 = scmp.eq.s32.totalorder %s17, 0
    %p172 = por %p170, %p171
    %p173 = scmp.le.s32.totalorder 1, %s11
    %p174 = scmp.lt.s32.totalorder %s11, 3
    %p175 = pnand %p173, %p174
    %p176 = pneg %p175
    // Predicated region
    $region9: #{down_conv_block_forward.3} parent=5 // pred_check
      _
    $region10: #{down_conv_block_forward.3} parent=5 // pred_check_branch
      %178 = sbr.rel (%p175) target = $region12
    $region11: #{down_conv_block_forward.3} parent=5 // pred_region
      %s179 = ssub.s32 %s11, 1
      // Predicated region
      $region13: #{down_conv_block_forward.3} parent=11 // pred_check
        %p180 = pneg %p44
      $region14: #{down_conv_block_forward.3} parent=11 // pred_check_branch
        %182 = sbr.rel (%p180) target = $region16
      $region15: #{down_conv_block_forward.3} parent=11 // pred_region
        _
      $region16: #{down_conv_block_forward.3} parent=11 // pred_fallthru
        _
      // Predicated region
      $region17: #{down_conv_block_forward.3} parent=11 // pred_check
        %p183 = pneg %p95
      $region18: #{down_conv_block_forward.3} parent=11 // pred_check_branch
        %185 = sbr.rel (%p183) target = $region20
      $region19: #{down_conv_block_forward.3} parent=11 // pred_region
        _
      $region20: #{down_conv_block_forward.3} parent=11 // pred_fallthru
        _
      // Predicated region
      $region21: #{down_conv_block_forward.3} parent=11 // pred_check
        %p186 = pneg %p116
      $region22: #{down_conv_block_forward.3} parent=11 // pred_check_branch
        %188 = sbr.rel (%p186) target = $region24
      $region23: #{down_conv_block_forward.3} parent=11 // pred_region
        _
      $region24: #{down_conv_block_forward.3} parent=11 // pred_fallthru
        _
      // Predicated region
      $region25: #{down_conv_block_forward.3} parent=11 // pred_check
        %p189 = pneg %p137
      $region26: #{down_conv_block_forward.3} parent=11 // pred_check_branch
        %191 = sbr.rel (%p189) target = $region28
      $region27: #{down_conv_block_forward.3} parent=11 // pred_region
        _
      $region28: #{down_conv_block_forward.3} parent=11 // pred_fallthru
        _
    $region12: #{down_conv_block_forward.3} parent=5 // pred_fallthru
      _
    %p192 = scmp.lt.s32.totalorder %s11, 2
    // Predicated region
    $region29: #{down_conv_block_forward.3} parent=5 // pred_check
      %p193 = pneg %p192
    $region30: #{down_conv_block_forward.3} parent=5 // pred_check_branch
      %195 = sbr.rel (%p193) target = $region32
    $region31: #{down_conv_block_forward.3} parent=5 // pred_region
      // Predicated region
      $region33: #{down_conv_block_forward.3} parent=31 // pred_check
        %p196 = pneg %p68
      $region34: #{down_conv_block_forward.3} parent=31 // pred_check_branch
        %198 = sbr.rel (%p196) target = $region36
      $region35: #{down_conv_block_forward.3} parent=31 // pred_region
        %s199 = ssub.s32 1, %s18
        %s200 = smul.u32 %s199, %s19
        %s201 = smul.u32 4, %s200
        %p202 = scmp.lt.s32.totalorder %s201, 3
        %s203 = scalar_select %p202, %s201, 3
        %s204 = smul.addr %s203, 8
        %s205 = scalar_lea.vmem %s1, %s204
        %s206 = ssub.s32 1, %s18
        %s207 = smul.u32 %s206, %s19
        %s208 = smul.u32 4, %s207
      $region36: #{down_conv_block_forward.3} parent=31 // pred_fallthru
        _
    $region32: #{down_conv_block_forward.3} parent=5 // pred_fallthru
      _
    %p209 = scmp.le.s32.totalorder 1, %s11
    %p210 = scmp.lt.s32.totalorder %s11, 3
    %p211 = pnand %p209, %p210
    %p212 = pneg %p211
    // Predicated region
    $region37: #{down_conv_block_forward.3} parent=5 // pred_check
      _
    $region38: #{down_conv_block_forward.3} parent=5 // pred_check_branch
      %214 = sbr.rel (%p211) target = $region40
    $region39: #{down_conv_block_forward.3} parent=5 // pred_region
      %s215 = ssub.s32 %s11, 1
      %p216 = pneg %p44
      %p217 = pneg %p41
      %s218 = ssub.s32 1, %s20
      %s219 = smul.u32 %s218, %s21
      %s220 = smul.u32 4, %s219
      %p221 = scmp.lt.s32.totalorder %s220, 3
      %s222 = scalar_select %p221, %s220, 3
      %s223 = smul.addr %s222, 8
      %s224 = scalar_lea.vmem %s1, %s223
      %p225 = pneg %p74
      %p226 = pneg %p71
      %p227 = pneg %p95
      %p228 = pneg %p92
      %p229 = pneg %p116
      %p230 = pneg %p113
      %p231 = pneg %p137
      %p232 = pneg %p134
      %p233 = pneg %p165
      %p234 = pneg %p162
      %s235 = smul.u32 %s20, %s21
      %s236 = smul.u32 4, %s235
      %p237 = scmp.lt.s32.totalorder %s236, 3
      %s238 = scalar_select %p237, %s236, 3
      %s239 = smul.addr %s238, 4
      %s240 = scalar_lea.vmem %s5, %s239
      %s241 = ssub.s32 1, %s20
      %s242 = smul.u32 %s241, %s21
      %s243 = smul.u32 4, %s242
      %p244 = scmp.lt.s32.totalorder %s243, 3
      %s245 = scalar_select %p244, %s243, 3
      %s246 = smul.addr %s245, 8
      %s247 = scalar_lea.vmem %s1, %s246
      %s248 = ssub.s32 1, %s20
      %s249 = smul.u32 %s248, %s21
      %s250 = smul.u32 4, %s249
      %s251 = smul.u32 %s20, %s21
      %s252 = smul.u32 4, %s251
      %p253 = scmp.lt.s32.totalorder %s252, 3
      %s254 = scalar_select %p253, %s252, 3
      %s255 = smul.addr %s254, 4
      %s256 = scalar_lea.vmem %s5, %s255
      %s257 = smul.u32 %s20, %s21
      %s258 = smul.u32 4, %s257
      %p262 = scmp.eq.s32.totalorder %s20, 0
      %p263 = scmp.eq.s32.totalorder %s21, 0
      %p264 = pnand %p262, %p263
      %p265 = pneg %p264
      // Predicated region
      $region41: #{down_conv_block_forward.3} parent=39 // pred_check
        _
      $region42: #{down_conv_block_forward.3} parent=39 // pred_check_branch
        %267 = sbr.rel (%p264) target = $region44
      $region43: #{down_conv_block_forward.3} parent=39 // pred_region
        %vm268 = vcmask 7168
        %269 = vst.msk [vmem:[#allocation3] sm:$0xff] %vm268, 0.0
        %270 = vst.msk [vmem:[#allocation4] sm:$0xff] %vm268, 0.0
      $region44: #{down_conv_block_forward.3} parent=39 // pred_fallthru
        _
      // Predicated region
      $region45: #{down_conv_block_forward.3} parent=39 // pred_check
        %p271 = pneg %p262
      $region46: #{down_conv_block_forward.3} parent=39 // pred_check_branch
        %273 = sbr.rel (%p271) target = $region48
      $region47: #{down_conv_block_forward.3} parent=39 // pred_region
        %v274 = vld [vmem:[%s247] sm:$0xff]
        %v275 = vld [vmem:[%s247 + $0x8] sm:$0xff]
        %v276 = vld [vmem:[%s247 + $0x10] sm:$0xff]
        %v277 = vld [vmem:[%s247 + $0x18] sm:$0xff]
        %v278 = vpack.c.bf16 %v275, %v274
        %v279 = vpack.c.bf16 %v277, %v276
        %v280 = vld [vmem:[%s0] sm:$0xf]
        %v281 = vand.u32 %v280, 1
        %vm282 = vcmp.ne.s32.totalorder %v281, 0
        %v283 = vand.u32 %v280, 2
        %vm284 = vcmp.ne.s32.totalorder %v283, 0
        %v285 = vand.u32 %v280, 4
        %vm286 = vcmp.ne.s32.totalorder %v285, 0
        %v287 = vand.u32 %v280, 8
        %vm288 = vcmp.ne.s32.totalorder %v287, 0
        %v291 = vunpack.c.l.b16 %v278
        %v292 = vunpack.c.h.b16 %v278
        %v293 = vunpack.c.l.b16 %v279
        %v294 = vunpack.c.h.b16 %v279
        %v295 = vpack.c.b16 %v291, %v291
        %v296 = vpack.c.b16 %v292, %v292
        %v297 = vpack.c.b16 %v293, %v293
        %v298 = vpack.c.b16 %v294, %v294
        %299 = vrot.lane.b32.xlu0 %v295, 127
        %v300 = vpop.permute.xlu0 %299
        %301 = vrot.lane.b32.xlu0 %v296, 127
        %v302 = vpop.permute.xlu0 %301
        %303 = vrot.lane.b32.xlu0 %v297, 127
        %v304 = vpop.permute.xlu0 %303
        %305 = vrot.lane.b32.xlu0 %v298, 127
        %v306 = vpop.permute.xlu0 %305
        %vm307 = vcmask 1039360
        %v308 = vsel %vm307, %v300, %v302
        %v309 = vsel %vm307, %v302, %v304
        %v310 = vsel %vm307, %v304, %v306
        %vm314 = vcmask 1039360
        %v317 = vsel %vm314, %v306, %v300
        %319 = vrot.lane.b32.xlu0 %v298, 1
        %v320 = vpop.permute.xlu0 %319
        %321 = vrot.lane.b32.xlu0 %v295, 1
        %v322 = vpop.permute.xlu0 %321
        %323 = vrot.lane.b32.xlu0 %v296, 1
        %v324 = vpop.permute.xlu0 %323
        %325 = vrot.lane.b32.xlu0 %v297, 1
        %v326 = vpop.permute.xlu0 %325
        %vm327 = vcmask 7168
        %v328 = vsel %vm327, %v322, %v324
        %v329 = vsel %vm327, %v324, %v326
        %v330 = vsel %vm327, %v326, %v320
        %vm334 = vcmask 7168
        %v337 = vsel %vm334, %v320, %v322
        %v339 = vsel %vm282, 1, 0
        %v340 = vperm.slane %v339, 0
        %v341 = vperm.slane %v339, 1
        %v342 = vperm.slane %v339, 2
        %v343 = vperm.slane %v339, 3
        %vm344 = vcmp.eq.s32.totalorder %v340, 1
        %vm345 = vcmp.eq.s32.totalorder %v341, 1
        %vm346 = vcmp.eq.s32.totalorder %v342, 1
        %vm347 = vcmp.eq.s32.totalorder %v343, 1
        %vm348 = vmpackc.low %vm345, %vm344
        %vm349 = vmpackc.low %vm347, %vm346
        %v350 = vsel %vm348, 65537, 0
        %v351 = vsel %vm349, 65537, 0
        %v352 = vperm.slane %v350, 0
        %v353 = vperm.slane %v350, 4
        %v354 = vperm.slane %v351, 0
        %v355 = vperm.slane %v351, 4
        %v356 = vunpack.c.l.b16 %v352
        %v357 = vunpack.c.h.b16 %v352
        %v358 = vunpack.c.l.b16 0
        %v359 = vunpack.c.h.b16 0
        %vm360 = vcmp.ne.s32.totalorder %v356, %v358
        %vm361 = vcmp.ne.s32.totalorder %v357, %v359
        %vm362 = vmpackc.low %vm361, %vm360
        %v363 = vunpack.c.l.b16 %v353
        %v364 = vunpack.c.h.b16 %v353
        %v365 = vunpack.c.l.b16 0
        %v366 = vunpack.c.h.b16 0
        %vm367 = vcmp.ne.s32.totalorder %v363, %v365
        %vm368 = vcmp.ne.s32.totalorder %v364, %v366
        %vm369 = vmpackc.low %vm368, %vm367
        %v370 = vunpack.c.l.b16 %v354
        %v371 = vunpack.c.h.b16 %v354
        %v372 = vunpack.c.l.b16 0
        %v373 = vunpack.c.h.b16 0
        %vm374 = vcmp.ne.s32.totalorder %v370, %v372
        %vm375 = vcmp.ne.s32.totalorder %v371, %v373
        %vm376 = vmpackc.low %vm375, %vm374
        %v377 = vunpack.c.l.b16 %v355
        %v378 = vunpack.c.h.b16 %v355
        %v379 = vunpack.c.l.b16 0
        %v380 = vunpack.c.h.b16 0
        %vm381 = vcmp.ne.s32.totalorder %v377, %v379
        %vm382 = vcmp.ne.s32.totalorder %v378, %v380
        %vm383 = vmpackc.low %vm382, %vm381
        %v384 = vsel %vm362, %v308, %v337
        %v385 = vsel %vm369, %v309, %v328
        %v386 = vsel %vm376, %v310, %v329
        %v387 = vsel %vm383, %v317, %v330
        %v388 = vsel %vm284, 1, 0
        %v389 = vperm.slane %v388, 0
        %v390 = vperm.slane %v388, 1
        %v391 = vperm.slane %v388, 2
        %v392 = vperm.slane %v388, 3
        %vm393 = vcmp.eq.s32.totalorder %v389, 1
        %vm394 = vcmp.eq.s32.totalorder %v390, 1
        %vm395 = vcmp.eq.s32.totalorder %v391, 1
        %vm396 = vcmp.eq.s32.totalorder %v392, 1
        %vm397 = vmpackc.low %vm394, %vm393
        %vm398 = vmpackc.low %vm396, %vm395
        %v399 = vsel %vm397, 65537, 0
        %v400 = vsel %vm398, 65537, 0
        %v401 = vperm.slane %v399, 0
        %v402 = vperm.slane %v399, 4
        %v403 = vperm.slane %v400, 0
        %v404 = vperm.slane %v400, 4
        %v405 = vunpack.c.l.b16 %v401
        %v406 = vunpack.c.h.b16 %v401
        %v407 = vunpack.c.l.b16 0
        %v408 = vunpack.c.h.b16 0
        %vm409 = vcmp.ne.s32.totalorder %v405, %v407
        %vm410 = vcmp.ne.s32.totalorder %v406, %v408
        %vm411 = vmpackc.low %vm410, %vm409
        %v412 = vunpack.c.l.b16 %v402
        %v413 = vunpack.c.h.b16 %v402
        %v414 = vunpack.c.l.b16 0
        %v415 = vunpack.c.h.b16 0
        %vm416 = vcmp.ne.s32.totalorder %v412, %v414
        %vm417 = vcmp.ne.s32.totalorder %v413, %v415
        %vm418 = vmpackc.low %vm417, %vm416
        %v419 = vunpack.c.l.b16 %v403
        %v420 = vunpack.c.h.b16 %v403
        %v421 = vunpack.c.l.b16 0
        %v422 = vunpack.c.h.b16 0
        %vm423 = vcmp.ne.s32.totalorder %v419, %v421
        %vm424 = vcmp.ne.s32.totalorder %v420, %v422
        %vm425 = vmpackc.low %vm424, %vm423
        %v426 = vunpack.c.l.b16 %v404
        %v427 = vunpack.c.h.b16 %v404
        %v428 = vunpack.c.l.b16 0
        %v429 = vunpack.c.h.b16 0
        %vm430 = vcmp.ne.s32.totalorder %v426, %v428
        %vm431 = vcmp.ne.s32.totalorder %v427, %v429
        %vm432 = vmpackc.low %vm431, %vm430
        %v433 = vsel %vm411, %v337, %v308
        %v434 = vsel %vm418, %v328, %v309
        %v435 = vsel %vm425, %v329, %v310
        %v436 = vsel %vm432, %v330, %v317
        %441 = vrot.lane.b32.xlu0 %v384, 112
        %v442 = vpop.permute.xlu0 %441
        %443 = vrot.lane.b32.xlu0 %v385, 112
        %v444 = vpop.permute.xlu0 %443
        %445 = vrot.lane.b32.xlu0 %v386, 112
        %v446 = vpop.permute.xlu0 %445
        %447 = vrot.lane.b32.xlu0 %v387, 112
        %v448 = vpop.permute.xlu0 %447
        %vm449 = vcmask 916480
        %v450 = vsel %vm449, %v442, %v444
        %v451 = vsel %vm449, %v444, %v446
        %v452 = vsel %vm449, %v446, %v448
        %vm456 = vcmask 916480
        %v459 = vsel %vm456, %v448, %v442
        %461 = vrot.lane.b32.xlu0 %v387, 16
        %v462 = vpop.permute.xlu0 %461
        %463 = vrot.lane.b32.xlu0 %v384, 16
        %v464 = vpop.permute.xlu0 %463
        %465 = vrot.lane.b32.xlu0 %v385, 16
        %v466 = vpop.permute.xlu0 %465
        %467 = vrot.lane.b32.xlu0 %v386, 16
        %v468 = vpop.permute.xlu0 %467
        %vm469 = vcmask 130048
        %v470 = vsel %vm469, %v464, %v466
        %v471 = vsel %vm469, %v466, %v468
        %v472 = vsel %vm469, %v468, %v462
        %vm476 = vcmask 130048
        %v479 = vsel %vm476, %v462, %v464
        %v481 = vsel %vm286, 1, 0
        %v482 = vperm.slane %v481, 0
        %v483 = vperm.slane %v481, 1
        %v484 = vperm.slane %v481, 2
        %v485 = vperm.slane %v481, 3
        %vm486 = vcmp.eq.s32.totalorder %v482, 1
        %vm487 = vcmp.eq.s32.totalorder %v483, 1
        %vm488 = vcmp.eq.s32.totalorder %v484, 1
        %vm489 = vcmp.eq.s32.totalorder %v485, 1
        %vm490 = vmpackc.low %vm487, %vm486
        %vm491 = vmpackc.low %vm489, %vm488
        %v492 = vsel %vm490, 65537, 0
        %v493 = vsel %vm491, 65537, 0
        %v494 = vperm.slane %v492, 0
        %v495 = vperm.slane %v492, 4
        %v496 = vperm.slane %v493, 0
        %v497 = vperm.slane %v493, 4
        %v498 = vunpack.c.l.b16 %v494
        %v499 = vunpack.c.h.b16 %v494
        %v500 = vunpack.c.l.b16 0
        %v501 = vunpack.c.h.b16 0
        %vm502 = vcmp.ne.s32.totalorder %v498, %v500
        %vm503 = vcmp.ne.s32.totalorder %v499, %v501
        %vm504 = vmpackc.low %vm503, %vm502
        %v505 = vunpack.c.l.b16 %v495
        %v506 = vunpack.c.h.b16 %v495
        %v507 = vunpack.c.l.b16 0
        %v508 = vunpack.c.h.b16 0
        %vm509 = vcmp.ne.s32.totalorder %v505, %v507
        %vm510 = vcmp.ne.s32.totalorder %v506, %v508
        %vm511 = vmpackc.low %vm510, %vm509
        %v512 = vunpack.c.l.b16 %v496
        %v513 = vunpack.c.h.b16 %v496
        %v514 = vunpack.c.l.b16 0
        %v515 = vunpack.c.h.b16 0
        %vm516 = vcmp.ne.s32.totalorder %v512, %v514
        %vm517 = vcmp.ne.s32.totalorder %v513, %v515
        %vm518 = vmpackc.low %vm517, %vm516
        %v519 = vunpack.c.l.b16 %v497
        %v520 = vunpack.c.h.b16 %v497
        %v521 = vunpack.c.l.b16 0
        %v522 = vunpack.c.h.b16 0
        %vm523 = vcmp.ne.s32.totalorder %v519, %v521
        %vm524 = vcmp.ne.s32.totalorder %v520, %v522
        %vm525 = vmpackc.low %vm524, %vm523
        %v526 = vsel %vm504, %v450, %v479
        %v527 = vsel %vm511, %v451, %v470
        %v528 = vsel %vm518, %v452, %v471
        %v529 = vsel %vm525, %v459, %v472
        %v530 = vsel %vm288, 1, 0
        %v531 = vperm.slane %v530, 0
        %v532 = vperm.slane %v530, 1
        %v533 = vperm.slane %v530, 2
        %v534 = vperm.slane %v530, 3
        %vm535 = vcmp.eq.s32.totalorder %v531, 1
        %vm536 = vcmp.eq.s32.totalorder %v532, 1
        %vm537 = vcmp.eq.s32.totalorder %v533, 1
        %vm538 = vcmp.eq.s32.totalorder %v534, 1
        %vm539 = vmpackc.low %vm536, %vm535
        %vm540 = vmpackc.low %vm538, %vm537
        %v541 = vsel %vm539, 65537, 0
        %v542 = vsel %vm540, 65537, 0
        %v543 = vperm.slane %v541, 0
        %v544 = vperm.slane %v541, 4
        %v545 = vperm.slane %v542, 0
        %v546 = vperm.slane %v542, 4
        %v547 = vunpack.c.l.b16 %v543
        %v548 = vunpack.c.h.b16 %v543
        %v549 = vunpack.c.l.b16 0
        %v550 = vunpack.c.h.b16 0
        %vm551 = vcmp.ne.s32.totalorder %v547, %v549
        %vm552 = vcmp.ne.s32.totalorder %v548, %v550
        %vm553 = vmpackc.low %vm552, %vm551
        %v554 = vunpack.c.l.b16 %v544
        %v555 = vunpack.c.h.b16 %v544
        %v556 = vunpack.c.l.b16 0
        %v557 = vunpack.c.h.b16 0
        %vm558 = vcmp.ne.s32.totalorder %v554, %v556
        %vm559 = vcmp.ne.s32.totalorder %v555, %v557
        %vm560 = vmpackc.low %vm559, %vm558
        %v561 = vunpack.c.l.b16 %v545
        %v562 = vunpack.c.h.b16 %v545
        %v563 = vunpack.c.l.b16 0
        %v564 = vunpack.c.h.b16 0
        %vm565 = vcmp.ne.s32.totalorder %v561, %v563
        %vm566 = vcmp.ne.s32.totalorder %v562, %v564
        %vm567 = vmpackc.low %vm566, %vm565
        %v568 = vunpack.c.l.b16 %v546
        %v569 = vunpack.c.h.b16 %v546
        %v570 = vunpack.c.l.b16 0
        %v571 = vunpack.c.h.b16 0
        %vm572 = vcmp.ne.s32.totalorder %v568, %v570
        %vm573 = vcmp.ne.s32.totalorder %v569, %v571
        %vm574 = vmpackc.low %vm573, %vm572
        %v575 = vsel %vm553, %v479, %v450
        %v576 = vsel %vm560, %v470, %v451
        %v577 = vsel %vm567, %v471, %v452
        %v578 = vsel %vm574, %v472, %v459
        %579 = vrot.lane.b32.xlu0 %v295, 112
        %v580 = vpop.permute.xlu0 %579
        %581 = vrot.lane.b32.xlu0 %v296, 112
        %v582 = vpop.permute.xlu0 %581
        %583 = vrot.lane.b32.xlu0 %v297, 112
        %v584 = vpop.permute.xlu0 %583
        %585 = vrot.lane.b32.xlu0 %v298, 112
        %v586 = vpop.permute.xlu0 %585
        %v587 = vsel %vm449, %v580, %v582
        %v588 = vsel %vm449, %v582, %v584
        %v589 = vsel %vm449, %v584, %v586
        %v595 = vsel %vm456, %v586, %v580
        %597 = vrot.lane.b32.xlu0 %v298, 16
        %v598 = vpop.permute.xlu0 %597
        %599 = vrot.lane.b32.xlu0 %v295, 16
        %v600 = vpop.permute.xlu0 %599
        %601 = vrot.lane.b32.xlu0 %v296, 16
        %v602 = vpop.permute.xlu0 %601
        %603 = vrot.lane.b32.xlu0 %v297, 16
        %v604 = vpop.permute.xlu0 %603
        %v605 = vsel %vm469, %v600, %v602
        %v606 = vsel %vm469, %v602, %v604
        %v607 = vsel %vm469, %v604, %v598
        %v613 = vsel %vm476, %v598, %v600
        %v615 = vsel %vm504, %v587, %v613
        %v616 = vsel %vm511, %v588, %v605
        %v617 = vsel %vm518, %v589, %v606
        %v618 = vsel %vm525, %v595, %v607
        %v619 = vsel %vm553, %v613, %v587
        %v620 = vsel %vm560, %v605, %v588
        %v621 = vsel %vm567, %v606, %v589
        %v622 = vsel %vm574, %v607, %v595
        %627 = vrot.lane.b32.xlu0 %v433, 112
        %v628 = vpop.permute.xlu0 %627
        %629 = vrot.lane.b32.xlu0 %v434, 112
        %v630 = vpop.permute.xlu0 %629
        %631 = vrot.lane.b32.xlu0 %v435, 112
        %v632 = vpop.permute.xlu0 %631
        %633 = vrot.lane.b32.xlu0 %v436, 112
        %v634 = vpop.permute.xlu0 %633
        %v635 = vsel %vm449, %v628, %v630
        %v636 = vsel %vm449, %v630, %v632
        %v637 = vsel %vm449, %v632, %v634
        %v643 = vsel %vm456, %v634, %v628
        %645 = vrot.lane.b32.xlu0 %v436, 16
        %v646 = vpop.permute.xlu0 %645
        %647 = vrot.lane.b32.xlu0 %v433, 16
        %v648 = vpop.permute.xlu0 %647
        %649 = vrot.lane.b32.xlu0 %v434, 16
        %v650 = vpop.permute.xlu0 %649
        %651 = vrot.lane.b32.xlu0 %v435, 16
        %v652 = vpop.permute.xlu0 %651
        %v653 = vsel %vm469, %v648, %v650
        %v654 = vsel %vm469, %v650, %v652
        %v655 = vsel %vm469, %v652, %v646
        %v661 = vsel %vm476, %v646, %v648
        %v663 = vsel %vm504, %v635, %v661
        %v664 = vsel %vm511, %v636, %v653
        %v665 = vsel %vm518, %v637, %v654
        %v666 = vsel %vm525, %v643, %v655
        %v667 = vsel %vm553, %v661, %v635
        %v668 = vsel %vm560, %v653, %v636
        %v669 = vsel %vm567, %v654, %v637
        %v670 = vsel %vm574, %v655, %v643
        %v675 = vrot.slane %v615, 4
        %v676 = vrot.slane %v616, 4
        %v677 = vrot.slane %v617, 4
        %v678 = vrot.slane %v618, 4
        %v679 = vrot.slane %v384, 4
        %v680 = vrot.slane %v385, 4
        %v681 = vrot.slane %v386, 4
        %v682 = vrot.slane %v387, 4
        %v683 = vrot.slane %v433, 4
        %v684 = vrot.slane %v434, 4
        %v685 = vrot.slane %v435, 4
        %v686 = vrot.slane %v436, 4
        %v691 = vrot.slane %v619, 4
        %v692 = vrot.slane %v620, 4
        %v693 = vrot.slane %v621, 4
        %v694 = vrot.slane %v622, 4
        %vm695 = vcmask 1043456
        %v698 = vsel %vm695, %v526, %v675
        %v702 = vsel %vm695, %v527, %v676
        %v706 = vsel %vm695, %v528, %v677
        %v710 = vsel %vm695, %v529, %v678
        %v714 = vsel %vm695, %v663, %v679
        %v718 = vsel %vm695, %v664, %v680
        %v722 = vsel %vm695, %v665, %v681
        %v726 = vsel %vm695, %v666, %v682
        %v730 = vsel %vm695, %v295, %v683
        %v734 = vsel %vm695, %v296, %v684
        %v738 = vsel %vm695, %v297, %v685
        %v742 = vsel %vm695, %v298, %v686
        %v746 = vsel %vm695, %v575, %v691
        %v750 = vsel %vm695, %v576, %v692
        %v754 = vsel %vm695, %v577, %v693
        %v758 = vsel %vm695, %v578, %v694
        %v760 = vld [vmem:[%s2] sm:$0xf]
        %vm761 = vcmask 588800
        %v763 = vsel %vm761, %v760, 0
        %v766 = vsel %vm695, %v667, 0
        %v769 = vsel %vm695, %v668, 0
        %v772 = vsel %vm695, %v669, 0
        %v775 = vsel %vm695, %v670, 0
        %777 = vmatpush.bf16.msra.mxu0 0
        %778 = vmatpush.bf16.msra.mxu0 0
        %779 = vmatpush.bf16.msra.mxu0 0
        %780 = vmatpush.bf16.msra.mxu0 %v766
        %781 = vmatpush.bf16.msra.mxu0 %v746
        %782 = vmatpush.bf16.msra.mxu0 %v730
        %783 = vmatpush.bf16.msra.mxu0 %v714
        %784 = vmatpush.bf16.msra.mxu0 %v698
        %785 = vmatmul.bf16.gmra.mxu0 %v763
        %v786 = vpop.f32.mrf.mxu0
        %v787 = vadd.f32 0.0, %v786
        %v788 = vpop.f32.mrf.mxu0
        %789 = vdwg.mxu0
        %790 = vmatpush.bf16.msra.mxu0 0
        %791 = vmatpush.bf16.msra.mxu0 0
        %792 = vmatpush.bf16.msra.mxu0 0
        %793 = vmatpush.bf16.msra.mxu0 %v769
        %794 = vmatpush.bf16.msra.mxu0 %v750
        %795 = vmatpush.bf16.msra.mxu0 %v734
        %796 = vmatpush.bf16.msra.mxu0 %v718
        %797 = vmatpush.bf16.msra.mxu0 %v702
        %798 = vmatmul.bf16.gmra.mxu0 %v763
        %v799 = vpop.f32.mrf.mxu0
        %v800 = vadd.f32 0.0, %v799
        %v801 = vpop.f32.mrf.mxu0
        %802 = vdwg.mxu0
        %803 = vmatpush.bf16.msra.mxu0 0
        %804 = vmatpush.bf16.msra.mxu0 0
        %805 = vmatpush.bf16.msra.mxu0 0
        %806 = vmatpush.bf16.msra.mxu0 %v772
        %807 = vmatpush.bf16.msra.mxu0 %v754
        %808 = vmatpush.bf16.msra.mxu0 %v738
        %809 = vmatpush.bf16.msra.mxu0 %v722
        %810 = vmatpush.bf16.msra.mxu0 %v706
        %811 = vmatmul.bf16.gmra.mxu0 %v763
        %v812 = vpop.f32.mrf.mxu0
        %v813 = vadd.f32 0.0, %v812
        %v814 = vpop.f32.mrf.mxu0
        %815 = vdwg.mxu0
        %816 = vmatpush.bf16.msra.mxu0 0
        %817 = vmatpush.bf16.msra.mxu0 0
        %818 = vmatpush.bf16.msra.mxu0 0
        %819 = vmatpush.bf16.msra.mxu0 %v775
        %820 = vmatpush.bf16.msra.mxu0 %v758
        %821 = vmatpush.bf16.msra.mxu0 %v742
        %822 = vmatpush.bf16.msra.mxu0 %v726
        %823 = vmatpush.bf16.msra.mxu0 %v710
        %824 = vmatmul.bf16.gmra.mxu0 %v763
        %v825 = vpop.f32.mrf.mxu0
        %v826 = vadd.f32 0.0, %v825
        %v827 = vpop.f32.mrf.mxu0
        %828 = vdwg.mxu0
        %v829 = vld [vmem:[#allocation3] sm:$0xff]
        %v830 = vadd.f32 %v787, %v800
        %v831 = vadd.f32 %v830, %v813
        %v832 = vadd.f32 %v831, %v826
        %833 = vadd.xlane.f32.xlu0 %v832
        %v834 = vpop.xlane.xlu0 %833
        %v835 = vadd.f32 %v829, %v834
        %836 = vst.msk [vmem:[#allocation3] sm:$0xff] %vm334, %v835
        %v837 = vld [vmem:[#allocation4] sm:$0xff]
        %v838 = vmul.f32 %v787, %v787
        %v839 = vmul.f32 %v800, %v800
        %v840 = vmul.f32 %v813, %v813
        %v841 = vmul.f32 %v826, %v826
        %v842 = vadd.f32 %v838, %v839
        %v843 = vadd.f32 %v842, %v840
        %v844 = vadd.f32 %v843, %v841
        %845 = vadd.xlane.f32.xlu0 %v844
        %v846 = vpop.xlane.xlu0 %845
        %v847 = vadd.f32 %v837, %v846
        %848 = vst.msk [vmem:[#allocation4] sm:$0xff] %vm334, %v847
        %v849 = vpack.c.bf16 %v800, %v787
        %v850 = vpack.c.bf16 %v826, %v813
        %s851 = smul.u32 %s21, 4
        %s852 = smul.addr %s851, 4
        %s853 = scalar_lea.vmem [#allocation2], %s852
        %854 = vst [vmem:[%s853] sm:$0xff] %v849
        %855 = vst [vmem:[%s853 + $0x8] sm:$0xff] %v850
      $region48: #{down_conv_block_forward.3} parent=39 // pred_fallthru
        _
      %p856 = scmp.eq.s32.totalorder %s20, 1
      // Predicated region
      $region49: #{down_conv_block_forward.3} parent=39 // pred_check
        %p857 = pneg %p856
      $region50: #{down_conv_block_forward.3} parent=39 // pred_check_branch
        %859 = sbr.rel (%p857) target = $region52
      $region51: #{down_conv_block_forward.3} parent=39 // pred_region
        %s860 = smul.u32 %s21, 4
        %s861 = smul.addr %s860, 4
        %s862 = scalar_lea.vmem [#allocation2], %s861
        %v863 = vld [vmem:[%s862] sm:$0xff]
        %v864 = vld [vmem:[%s862 + $0x8] sm:$0xff]
        %v865 = vunpack.c.l.bf16 %v863
        %v866 = vunpack.c.h.bf16 %v863
        %v867 = vunpack.c.l.bf16 %v864
        %v868 = vunpack.c.h.bf16 %v864
        %v869 = vld [vmem:[#allocation3] sm:$0xff]
        %v870 = vmul.f32 %v869, 0.001953125
        %v871 = vld [vmem:[#allocation4] sm:$0xff]
        %v872 = vmul.f32 %v871, 0.001953125
        %v873 = vmul.f32 %v870, %v870
        %v874 = vsub.f32 %v872, %v873
        %v875 = vmax.f32 %v874, 0.0
        %v876 = vld [vmem:[%s3] sm:$0xff]
        %v877 = vadd.f32 %v875, 1e-05
        %v878 = vrsqrt.pop %v877
        %v879 = vmul.f32 %v878, %v877
        %v880 = vmul.f32 %v879, %v878
        %v881 = vmul.f32 0.5, %v880
        %v882 = vsub.f32 1.5, %v881
        %v883 = vmul.f32 %v878, %v882
        %vm884 = vweird.f32 %v877
        %vm885 = vweird.f32 %v878
        %vm886 = vmor %vm884, %vm885
        %v887 = vsel %vm886, %v878, %v883
        %v888 = vmul.f32 %v876, %v887
        %v889 = vld [vmem:[%s4] sm:$0xff]
        %v890 = vmul.f32 %v870, %v888
        %v891 = vsub.f32 %v889, %v890
        %893 = vset.pattern.permute.xlu0 0
        %894 = vperm.xlu0 %893, %v888
        %v895 = vpop.permute.xlu0 %894
        %v897 = vmul.f32 %v865, %v895
        %v898 = vmul.f32 %v866, %v895
        %v899 = vmul.f32 %v867, %v895
        %v900 = vmul.f32 %v868, %v895
        %902 = vset.pattern.permute.xlu0 0
        %903 = vperm.xlu0 %902, %v891
        %v904 = vpop.permute.xlu0 %903
        %v906 = vadd.f32 %v897, %v904
        %v907 = vadd.f32 %v898, %v904
        %v908 = vadd.f32 %v899, %v904
        %v909 = vadd.f32 %v900, %v904
        %v910 = vmax.f32 %v906, 0.0
        %v911 = vmax.f32 %v907, 0.0
        %v912 = vmax.f32 %v908, 0.0
        %v913 = vmax.f32 %v909, 0.0
        %v914 = vpack.c.bf16 %v911, %v910
        %v915 = vpack.c.bf16 %v913, %v912
        %916 = vst [vmem:[%s256] sm:$0xff] %v914
        %917 = vst [vmem:[%s256 + $0x8] sm:$0xff] %v915
      $region52: #{down_conv_block_forward.3} parent=39 // pred_fallthru
        _
      %s918 = smul.u32 %s20, %s21
      %s919 = smul.u32 4, %s918
      %p920 = scmp.lt.s32.totalorder %s919, 3
      %s921 = scalar_select %p920, %s919, 3
      %s922 = smul.addr %s921, 4
      %s923 = scalar_lea.vmem %s5, %s922
      // Predicated region
      $region53: #{down_conv_block_forward.3} parent=39 // pred_check
        %p924 = pneg %p162
      $region54: #{down_conv_block_forward.3} parent=39 // pred_check_branch
        %926 = sbr.rel (%p924) target = $region56
      $region55: #{down_conv_block_forward.3} parent=39 // pred_region
        %s927 = smul.u32 %s20, %s21
        %s928 = smul.u32 4, %s927
      $region56: #{down_conv_block_forward.3} parent=39 // pred_fallthru
        _
    $region40: #{down_conv_block_forward.3} parent=5 // pred_fallthru
      _
    %p929 = scmp.le.s32.totalorder 2, %s11
    // Predicated region
    $region57: #{down_conv_block_forward.3} parent=5 // pred_check
      %p930 = pneg %p929
    $region58: #{down_conv_block_forward.3} parent=5 // pred_check_branch
      %932 = sbr.rel (%p930) target = $region60
    $region59: #{down_conv_block_forward.3} parent=5 // pred_region
      %s933 = ssub.s32 %s11, 2
      // Predicated region
      $region61: #{down_conv_block_forward.3} parent=59 // pred_check
        %p934 = pneg %p168
      $region62: #{down_conv_block_forward.3} parent=59 // pred_check_branch
        %936 = sbr.rel (%p934) target = $region64
      $region63: #{down_conv_block_forward.3} parent=59 // pred_region
        %s937 = smul.u32 %s22, %s23
        %s938 = smul.u32 4, %s937
        %p939 = scmp.lt.s32.totalorder %s938, 3
        %s940 = scalar_select %p939, %s938, 3
        %s941 = smul.addr %s940, 4
        %s942 = scalar_lea.vmem %s5, %s941
      $region64: #{down_conv_block_forward.3} parent=59 // pred_fallthru
        _
    $region60: #{down_conv_block_forward.3} parent=5 // pred_fallthru
      _
  $region6: #{down_conv_block_forward.3} parent=0 // loop_footer
    %s15 = sadd.s32 1, %s11
  $region7: #{down_conv_block_forward.3} parent=0 // loop_footer_branch
    %10 = sbr.rel target = $region3
  $region8: #{down_conv_block_forward.3} parent=0 // loop_exit
    _

</llo_original>
